<compile_context>
chip_gen: v6e
topology: v6e:2x2x1
jax: 0.10.0
libtpu: 0.0.40
codegen_flags: <defaults>
</compile_context>

<pallas_src>
import functools
import math

import numpy as np
import jax
import jax.numpy as jnp
from jax import lax
from jax.experimental import pallas as pl
from jax.experimental.pallas import tpu as pltpu

EPS = 1e-5
NEG = -1e30                       # additive mask for out-of-neighborhood keys
MATMUL_DTYPE = jnp.bfloat16       # MXU operand dtype (f32 accumulation everywhere)


# ----------------------------- hardware-aware knobs --------------------------------
def _vmem_capacity_bytes():
    cap = 128 * 1024 * 1024
    try:
        cap = int(getattr(pltpu.get_tpu_info(), "vmem_capacity_bytes", cap))
    except Exception:
        pass
    return cap


def _pick_q_tile(L, target=256):
    """Largest multiple-of-8 divisor of L that is <= target (or L itself)."""
    if L <= target:
        return L
    best = None
    for t in range(8, target + 1, 8):
        if L % t == 0:
            best = t
    return best if best is not None else L


# -------------------- hoisted neighborhood mask + rpb bias (no Pallas) -------------
def _neighborhood_bias(rpb, H, W, k, dtype):
    """(heads, L, L) additive bias: rpb value inside the clamped k x k window, NEG outside.

    Index math is done in integer NumPy at trace time (exact, zero runtime cost); only a
    tiny gather from the (heads, (2k-1)^2) rpb table runs on device.
    """
    heads = rpb.shape[0]
    kk = 2 * k - 1
    L = H * W
    pos = np.arange(L)
    pr, pc = pos // W, pos % W
    nb = k // 2
    sr = np.clip(pr - nb, 0, H - k)                    # clamped window start (rows)
    sc = np.clip(pc - nb, 0, W - k)                    # clamped window start (cols)
    in_r = (pr[None, :] >= sr[:, None]) & (pr[None, :] < sr[:, None] + k)
    in_c = (pc[None, :] >= sc[:, None]) & (pc[None, :] < sc[:, None] + k)
    mask = jnp.asarray(in_r & in_c)                    # (L, L) static
    rr = np.clip(pr[None, :] - pr[:, None] + (k - 1), 0, kk - 1)
    rc = np.clip(pc[None, :] - pc[:, None] + (k - 1), 0, kk - 1)
    ridx = jnp.asarray((rr * kk + rc).astype(np.int32).reshape(-1))
    table = rpb.reshape(heads, kk * kk).astype(jnp.float32)
    bias = jnp.take(table, ridx, axis=1).reshape(heads, L, L)
    bias = jnp.where(mask[None], bias, NEG)
    return bias.astype(dtype)


# --------------------- fused LayerNorm -> q / kv projections -----------------------
def _ln_qkv_kernel(x_ref, g_ref, b_ref, wq_ref, bq_ref, wkv_ref, bkv_ref,
                   q_out_ref, kv_out_ref):
    x = x_ref[...].astype(jnp.float32)
    mu = jnp.mean(x, axis=-1, keepdims=True)
    var = jnp.mean(jnp.square(x - mu), axis=-1, keepdims=True)
    xn = (x - mu) * lax.rsqrt(var + EPS)
    xn = (xn * g_ref[...] + b_ref[...]).astype(wq_ref.dtype)
    q = jnp.dot(xn, wq_ref[...], preferred_element_type=jnp.float32) + bq_ref[...]
    kv = jnp.dot(xn, wkv_ref[...], preferred_element_type=jnp.float32) + bkv_ref[...]
    q_out_ref[...] = q.astype(q_out_ref.dtype)
    kv_out_ref[...] = kv.astype(kv_out_ref.dtype)


# -- neighborhood attention + out-proj + residual + LN2 + MLP + residual (per q-tile) --
def _na2d_block_kernel(bias_ref, q_ref, kv_ref, x_ref, pw_ref, pb_ref,
                       g2_ref, be2_ref, w1_ref, fb1_ref, w2_ref, fb2_ref, o_ref,
                       *, heads, dh, scale):
    C = heads * dh
    q = q_ref[...]                                   # (tq, C)  bf16, heads on lanes
    kv = kv_ref[...]                                 # (L, 2C)  bf16
    pw = pw_ref[...]                                 # (C, C)   bf16

    # Per-head attention; each head's P@V is projected through the matching dh-row
    # slice of proj_w and accumulated -> lane-dense (tq, C), no concat, no scratch.
    acc = jnp.zeros((q.shape[0], C), jnp.float32)
    for h in range(heads):
        qh = q[:, h * dh:(h + 1) * dh]
        kh = kv[:, h * dh:(h + 1) * dh]
        vh = kv[:, C + h * dh:C + (h + 1) * dh]
        s = lax.dot_general(qh, kh, (((1,), (1,)), ((), ())),
                            preferred_element_type=jnp.float32)         # (tq, L)
        s = s * scale + bias_ref[h].astype(jnp.float32)                  # hoisted bias
        s = s - jnp.max(s, axis=-1, keepdims=True)
        p = jnp.exp(s)
        p = p * pl.reciprocal(jnp.sum(p, axis=-1, keepdims=True), approx=True)
        pv = jnp.dot(p.astype(kv.dtype), vh,
                     preferred_element_type=jnp.float32)                 # (tq, dh)
        acc = acc + jnp.dot(pv.astype(pw.dtype), pw[h * dh:(h + 1) * dh, :],
                            preferred_element_type=jnp.float32)          # (tq, C)

    # out-projection bias + first residual
    x2 = acc + pb_ref[...] + x_ref[...].astype(jnp.float32)             # (tq, C) f32

    # fused LN2 -> fc1 -> GELU -> fc2 -> +residual (hidden never leaves VMEM)
    mu = jnp.mean(x2, axis=-1, keepdims=True)
    var = jnp.mean(jnp.square(x2 - mu), axis=-1, keepdims=True)
    xn = (x2 - mu) * lax.rsqrt(var + EPS)
    xn = (xn * g2_ref[...] + be2_ref[...]).astype(w1_ref.dtype)
    hid = jnp.dot(xn, w1_ref[...], preferred_element_type=jnp.float32) + fb1_ref[...]
    hid = 0.5 * hid * (1.0 + lax.erf(hid * (1.0 / math.sqrt(2.0))))      # exact GELU
    y = jnp.dot(hid.astype(w2_ref.dtype), w2_ref[...],
                preferred_element_type=jnp.float32) + fb2_ref[...]
    o_ref[...] = (x2 + y).astype(o_ref.dtype)


# ------------------------------ full block forward --------------------------------
def nat_block_2d(x, params, *, kernel_size, num_heads, row_tile=None, q_tile=256):
    B, H, W, C = x.shape
    assert C % num_heads == 0 and H >= kernel_size and W >= kernel_size
    L = H * W
    N = B * L
    Dh = C // num_heads
    scale = Dh ** -0.5
    hidden = params["fc1_w"].shape[1]
    md = MATMUL_DTYPE

    # hardware-aware limits (v7x has 64 MiB VMEM per TC; v5e/v6e have 128 MiB)
    vmem_cap = _vmem_capacity_bytes()
    vmem_limit = min(int(vmem_cap * 3 // 4), 64 * 1024 * 1024)
    if row_tile is None:
        row_tile = 256 if vmem_cap <= 96 * 1024 * 1024 else 512

    xf = x.reshape(N, C)
    tile = min(row_tile, N)
    grid_rows = pl.cdiv(N, tile)
    tq = _pick_q_tile(L, q_tile)
    nq = L // tq

    # host-side weight prep (cast once -> halves weight DMA)
    wq = params["qkv_w"][:, :C].astype(md)
    wkv = params["qkv_w"][:, C:].astype(md)
    bq = params["qkv_b"][:C].reshape(1, C)
    bkv = params["qkv_b"][C:].reshape(1, 2 * C)
    proj_w = params["proj_w"].astype(md)
    fc1_w = params["fc1_w"].astype(md)
    fc2_w = params["fc2_w"].astype(md)
    g1 = params["norm1_g"].reshape(1, C)
    b1 = params["norm1_b"].reshape(1, C)
    g2 = params["norm2_g"].reshape(1, C)
    b2 = params["norm2_b"].reshape(1, C)
    proj_b = params["proj_b"].reshape(1, C)
    fc1_b = params["fc1_b"].reshape(1, hidden)
    fc2_b = params["fc2_b"].reshape(1, C)

    # hoisted neighborhood mask + rpb bias (batch-independent, built once)
    bias = _neighborhood_bias(params["rpb"], H, W, kernel_size, md)      # (heads, L, L)

    cp_rows = pltpu.CompilerParams(dimension_semantics=("parallel",),
                                   vmem_limit_bytes=vmem_limit)
    cp_attn = pltpu.CompilerParams(dimension_semantics=("parallel", "parallel"),
                                   vmem_limit_bytes=vmem_limit)

    # ---- 1) fused LN1 + q/kv projections: (N, C) -> (N, C), (N, 2C) (bf16) ----
    q_buf, kv_buf = pl.pallas_call(
        _ln_qkv_kernel,
        out_shape=(jax.ShapeDtypeStruct((N, C), md),
                   jax.ShapeDtypeStruct((N, 2 * C), md)),
        grid_spec=pltpu.PrefetchScalarGridSpec(
            num_scalar_prefetch=0,
            grid=(grid_rows,),
            in_specs=[
                pl.BlockSpec((tile, C), lambda i: (i, 0)),
                pl.BlockSpec((1, C), lambda i: (0, 0)),
                pl.BlockSpec((1, C), lambda i: (0, 0)),
                pl.BlockSpec((C, C), lambda i: (0, 0)),
                pl.BlockSpec((1, C), lambda i: (0, 0)),
                pl.BlockSpec((C, 2 * C), lambda i: (0, 0)),
                pl.BlockSpec((1, 2 * C), lambda i: (0, 0)),
            ],
            out_specs=[pl.BlockSpec((tile, C), lambda i: (i, 0)),
                       pl.BlockSpec((tile, 2 * C), lambda i: (i, 0))],
        ),
        compiler_params=cp_rows,
    )(xf, g1, b1, wq, bq, wkv, bkv)

    # ---- 2) neighborhood attention + proj + residual + LN2 + MLP + residual ----
    # grid = (q-tile, batch); batch is the inner axis so the bias block (index map
    # independent of b) is fetched once per q-tile and stays resident across the batch.
    attn_kernel = functools.partial(_na2d_block_kernel,
                                    heads=num_heads, dh=Dh, scale=scale)
    out = pl.pallas_call(
        attn_kernel,
        out_shape=jax.ShapeDtypeStruct((B, L, C), x.dtype),
        grid_spec=pltpu.PrefetchScalarGridSpec(
            num_scalar_prefetch=0,
            grid=(nq, B),
            in_specs=[
                pl.BlockSpec((num_heads, tq, L), lambda qi, b: (0, qi, 0)),   # bias
                pl.BlockSpec((None, tq, C), lambda qi, b: (b, qi, 0)),        # q tile
                pl.BlockSpec((None, L, 2 * C), lambda qi, b: (b, 0, 0)),      # full k,v
                pl.BlockSpec((None, tq, C), lambda qi, b: (b, qi, 0)),        # shortcut x
                pl.BlockSpec((C, C), lambda qi, b: (0, 0)),                   # proj_w
                pl.BlockSpec((1, C), lambda qi, b: (0, 0)),                   # proj_b
                pl.BlockSpec((1, C), lambda qi, b: (0, 0)),                   # norm2_g
                pl.BlockSpec((1, C), lambda qi, b: (0, 0)),                   # norm2_b
                pl.BlockSpec((C, hidden), lambda qi, b: (0, 0)),              # fc1_w
                pl.BlockSpec((1, hidden), lambda qi, b: (0, 0)),              # fc1_b
                pl.BlockSpec((hidden, C), lambda qi, b: (0, 0)),              # fc2_w
                pl.BlockSpec((1, C), lambda qi, b: (0, 0)),                   # fc2_b
            ],
            out_specs=pl.BlockSpec((None, tq, C), lambda qi, b: (b, qi, 0)),
        ),
        compiler_params=cp_attn,
    )(bias, q_buf.reshape(B, L, C), kv_buf.reshape(B, L, 2 * C), xf.reshape(B, L, C),
      proj_w, proj_b, g2, b2, fc1_w, fc1_b, fc2_w, fc2_b)

    return out.reshape(B, H, W, C)


# ------------------------- pure-JAX reference (for checking) -----------------------
def nat_block_2d_reference(x, params, *, kernel_size, num_heads):
    B, H, W, C = x.shape
    L = H * W
    Dh = C // num_heads
    k = kernel_size
    kk = 2 * k - 1
    scale = Dh ** -0.5

    def ln(v, g, b):
        mu = v.mean(-1, keepdims=True)
        var = ((v - mu) ** 2).mean(-1, keepdims=True)
        return (v - mu) / jnp.sqrt(var + EPS) * g + b

    xf = x.reshape(B, L, C)
    xn = ln(xf, params["norm1_g"], params["norm1_b"])
    qkv = xn @ params["qkv_w"] + params["qkv_b"]
    qkv = qkv.reshape(B, L, 3, num_heads, Dh)
    q, kq, v = qkv[:, :, 0], qkv[:, :, 1], qkv[:, :, 2]
    s = jnp.einsum("bqhd,bkhd->bhqk", q, kq) * scale

    pos = jnp.arange(L)
    pr, pc = pos // W, pos % W
    nb = k // 2
    sr = jnp.clip(pr - nb, 0, H - k)
    sc = jnp.clip(pc - nb, 0, W - k)
    in_r = (pr[None, :] >= sr[:, None]) & (pr[None, :] < sr[:, None] + k)
    in_c = (pc[None, :] >= sc[:, None]) & (pc[None, :] < sc[:, None] + k)
    mask = in_r & in_c
    rr = jnp.clip(pr[None, :] - pr[:, None] + (k - 1), 0, kk - 1)
    rc = jnp.clip(pc[None, :] - pc[:, None] + (k - 1), 0, kk - 1)
    bias = params["rpb"][:, rr, rc]                                   # (heads, L, L)
    s = jnp.where(mask[None, None], s + bias[None], NEG)
    p = jax.nn.softmax(s, axis=-1)
    o = jnp.einsum("bhqk,bkhd->bqhd", p, v).reshape(B, L, C)
    x2 = xf + o @ params["proj_w"] + params["proj_b"]
    x2n = ln(x2, params["norm2_g"], params["norm2_b"])
    h = x2n @ params["fc1_w"] + params["fc1_b"]
    h = 0.5 * h * (1.0 + lax.erf(h / math.sqrt(2.0)))
    return (x2 + h @ params["fc2_w"] + params["fc2_b"]).reshape(B, H, W, C)


# ----------------------------- deterministic parameters ----------------------------
def init_params(key, dim, num_heads, kernel_size, mlp_ratio):
    hidden = int(dim * mlp_ratio)
    kk = 2 * kernel_size - 1

    def xavier(k_, shape):  # weights stored (in, out); xavier bound symmetric in fans
        fan_in, fan_out = shape
        a = math.sqrt(6.0 / (fan_in + fan_out))
        return jax.random.uniform(k_, shape, jnp.float32, -a, a)

    ks = jax.random.split(key, 5)
    return {
        "norm1_g": jnp.ones((dim,), jnp.float32),
        "norm1_b": jnp.zeros((dim,), jnp.float32),
        "qkv_w": xavier(ks[0], (dim, 3 * dim)),
        "qkv_b": jnp.zeros((3 * dim,), jnp.float32),
        "rpb": 0.02 * jax.random.truncated_normal(
            ks[1], -2.0, 2.0, (num_heads, kk, kk), jnp.float32),
        "proj_w": xavier(ks[2], (dim, dim)),
        "proj_b": jnp.zeros((dim,), jnp.float32),
        "norm2_g": jnp.ones((dim,), jnp.float32),
        "norm2_b": jnp.zeros((dim,), jnp.float32),
        "fc1_w": xavier(ks[3], (dim, hidden)),
        "fc1_b": jnp.zeros((hidden,), jnp.float32),
        "fc2_w": xavier(ks[4], (hidden, dim)),
        "fc2_b": jnp.zeros((dim,), jnp.float32),
    }


if __name__ == "__main__":
    B, H, W, C = 2, 8, 8, 32       # dim=32
    num_heads = 4                   # num_blocks=4 -> head_dim=8
    kernel_size = 3
    mlp_ratio = 4.0

    key = jax.random.PRNGKey(0)
    kx, kp = jax.random.split(key)
    x = jax.random.normal(kx, (B, H, W, C), jnp.float32)
    params = init_params(kp, C, num_heads, kernel_size, mlp_ratio)

    fwd = jax.jit(functools.partial(nat_block_2d,
                                    kernel_size=kernel_size,
                                    num_heads=num_heads))
    y = fwd(x, params)
    jax.block_until_ready(y)

    assert y.shape == x.shape
    assert bool(jnp.all(jnp.isfinite(y)))

    # correctness vs pure-JAX f32 reference (tolerance covers bf16 matmul operands)
    y_ref = nat_block_2d_reference(x, params, kernel_size=kernel_size,
                                   num_heads=num_heads)
    err = float(jnp.max(jnp.abs(y - y_ref)))
    assert err < 1e-1, f"max abs err vs reference = {err}"

    print("KERNEL_OK")
</pallas_src>

<mosaic_0001>
module attributes {stable_mosaic.version = 11 : i64} {
  func.func @_ln_qkv_kernel(%arg0: i32, %arg1: memref<128x32xf32, #tpu.memory_space<vmem>>, %arg2: memref<1x32xf32, #tpu.memory_space<vmem>>, %arg3: memref<1x32xf32, #tpu.memory_space<vmem>>, %arg4: memref<32x32xbf16, #tpu.memory_space<vmem>>, %arg5: memref<1x32xf32, #tpu.memory_space<vmem>>, %arg6: memref<32x64xbf16, #tpu.memory_space<vmem>>, %arg7: memref<1x64xf32, #tpu.memory_space<vmem>>, %arg8: memref<128x32xbf16, #tpu.memory_space<vmem>>, %arg9: memref<128x64xbf16, #tpu.memory_space<vmem>>) attributes {dimension_semantics = [#tpu.dimension_semantics<parallel>], iteration_bounds = array<i64: 1>, scalar_prefetch = 0 : i64, scratch_operands = 0 : i64, tpu.core_type = #tpu.core_type<tc>, window_params = [{transform_indices = @transform_0, window_bounds = array<i64: 128, 32>}, {pipeline_mode = #tpu.pipeline_mode<synchronous>, transform_indices = @transform_1, window_bounds = array<i64: 1, 32>}, {pipeline_mode = #tpu.pipeline_mode<synchronous>, transform_indices = @transform_2, window_bounds = array<i64: 1, 32>}, {pipeline_mode = #tpu.pipeline_mode<synchronous>, transform_indices = @transform_3, window_bounds = array<i64: 32, 32>}, {pipeline_mode = #tpu.pipeline_mode<synchronous>, transform_indices = @transform_4, window_bounds = array<i64: 1, 32>}, {pipeline_mode = #tpu.pipeline_mode<synchronous>, transform_indices = @transform_5, window_bounds = array<i64: 32, 64>}, {pipeline_mode = #tpu.pipeline_mode<synchronous>, transform_indices = @transform_6, window_bounds = array<i64: 1, 64>}, {transform_indices = @transform_7, window_bounds = array<i64: 128, 32>}, {transform_indices = @transform_8, window_bounds = array<i64: 128, 64>}]} {
    %c0 = arith.constant 0 : index
    %c0_0 = arith.constant 0 : index
    %0 = vector.load %arg1[%c0, %c0_0] : memref<128x32xf32, #tpu.memory_space<vmem>>, vector<128x32xf32>
    %cst = arith.constant dense<0.000000e+00> : vector<128xf32>
    %1 = vector.multi_reduction <add>, %0, %cst [1] : vector<128x32xf32> to vector<128xf32>
    %2 = vector.shape_cast %1 : vector<128xf32> to vector<128x1xf32>
    %cst_1 = arith.constant 3.200000e+01 : f32
    %3 = vector.broadcast %cst_1 : f32 to vector<128x1xf32>
    %4 = arith.divf %2, %3 : vector<128x1xf32>
    %5 = vector.broadcast %4 : vector<128x1xf32> to vector<128x32xf32>
    %6 = arith.subf %0, %5 : vector<128x32xf32>
    %7 = arith.mulf %6, %6 : vector<128x32xf32>
    %cst_2 = arith.constant dense<0.000000e+00> : vector<128xf32>
    %8 = vector.multi_reduction <add>, %7, %cst_2 [1] : vector<128x32xf32> to vector<128xf32>
    %9 = vector.shape_cast %8 : vector<128xf32> to vector<128x1xf32>
    %cst_3 = arith.constant 3.200000e+01 : f32
    %10 = vector.broadcast %cst_3 : f32 to vector<128x1xf32>
    %11 = arith.divf %9, %10 : vector<128x1xf32>
    %12 = vector.broadcast %4 : vector<128x1xf32> to vector<128x32xf32>
    %13 = arith.subf %0, %12 : vector<128x32xf32>
    %cst_4 = arith.constant 9.99999974E-6 : f32
    %14 = vector.broadcast %cst_4 : f32 to vector<128x1xf32>
    %15 = arith.addf %11, %14 : vector<128x1xf32>
    %16 = math.rsqrt %15 : vector<128x1xf32>
    %17 = vector.broadcast %16 : vector<128x1xf32> to vector<128x32xf32>
    %18 = arith.mulf %13, %17 : vector<128x32xf32>
    %c0_5 = arith.constant 0 : index
    %c0_6 = arith.constant 0 : index
    %19 = vector.load %arg2[%c0_5, %c0_6] : memref<1x32xf32, #tpu.memory_space<vmem>>, vector<1x32xf32>
    %20 = vector.broadcast %19 : vector<1x32xf32> to vector<128x32xf32>
    %21 = arith.mulf %18, %20 : vector<128x32xf32>
    %c0_7 = arith.constant 0 : index
    %c0_8 = arith.constant 0 : index
    %22 = vector.load %arg3[%c0_7, %c0_8] : memref<1x32xf32, #tpu.memory_space<vmem>>, vector<1x32xf32>
    %23 = vector.broadcast %22 : vector<1x32xf32> to vector<128x32xf32>
    %24 = arith.addf %21, %23 : vector<128x32xf32>
    %25 = arith.truncf %24 : vector<128x32xf32> to vector<128x32xbf16>
    %c0_9 = arith.constant 0 : index
    %c0_10 = arith.constant 0 : index
    %26 = vector.load %arg4[%c0_9, %c0_10] : memref<32x32xbf16, #tpu.memory_space<vmem>>, vector<32x32xbf16>
    %cst_11 = arith.constant dense<0.000000e+00> : vector<128x32xf32>
    %27 = tpu.matmul %25, %26, %cst_11 {dimension_numbers = #tpu.dot_dimension_numbers<[1], [0], [0], [1], [0, 0, 1, 1], [], []>} : vector<128x32xbf16>, vector<32x32xbf16>, vector<128x32xf32> -> vector<128x32xf32>
    %c0_12 = arith.constant 0 : index
    %c0_13 = arith.constant 0 : index
    %28 = vector.load %arg5[%c0_12, %c0_13] : memref<1x32xf32, #tpu.memory_space<vmem>>, vector<1x32xf32>
    %29 = vector.broadcast %28 : vector<1x32xf32> to vector<128x32xf32>
    %30 = arith.addf %27, %29 : vector<128x32xf32>
    %c0_14 = arith.constant 0 : index
    %c0_15 = arith.constant 0 : index
    %31 = vector.load %arg6[%c0_14, %c0_15] : memref<32x64xbf16, #tpu.memory_space<vmem>>, vector<32x64xbf16>
    %cst_16 = arith.constant dense<0.000000e+00> : vector<128x64xf32>
    %32 = tpu.matmul %25, %31, %cst_16 {dimension_numbers = #tpu.dot_dimension_numbers<[1], [0], [0], [1], [0, 0, 1, 1], [], []>} : vector<128x32xbf16>, vector<32x64xbf16>, vector<128x64xf32> -> vector<128x64xf32>
    %c0_17 = arith.constant 0 : index
    %c0_18 = arith.constant 0 : index
    %33 = vector.load %arg7[%c0_17, %c0_18] : memref<1x64xf32, #tpu.memory_space<vmem>>, vector<1x64xf32>
    %34 = vector.broadcast %33 : vector<1x64xf32> to vector<128x64xf32>
    %35 = arith.addf %32, %34 : vector<128x64xf32>
    %36 = arith.truncf %30 : vector<128x32xf32> to vector<128x32xbf16>
    %c0_19 = arith.constant 0 : index
    %c0_20 = arith.constant 0 : index
    %37 = vector.load %arg8[%c0_19, %c0_20] : memref<128x32xbf16, #tpu.memory_space<vmem>>, vector<128x32xbf16>
    tpu.vector_store %arg8[%c0_19, %c0_20], %36 {strides = array<i32>} : memref<128x32xbf16, #tpu.memory_space<vmem>>, vector<128x32xbf16>,
    %38 = arith.truncf %35 : vector<128x64xf32> to vector<128x64xbf16>
    %c0_21 = arith.constant 0 : index
    %c0_22 = arith.constant 0 : index
    %39 = vector.load %arg9[%c0_21, %c0_22] : memref<128x64xbf16, #tpu.memory_space<vmem>>, vector<128x64xbf16>
    tpu.vector_store %arg9[%c0_21, %c0_22], %38 {strides = array<i32>} : memref<128x64xbf16, #tpu.memory_space<vmem>>, vector<128x64xbf16>,
    return
  }
  func.func @transform_0(%arg0: i32) -> (i32, i32) {
    %c0_i32 = arith.constant 0 : i32
    %c0_i32_0 = arith.constant 0 : i32
    return %arg0, %c0_i32 : i32, i32
  }
  func.func @transform_1(%arg0: i32) -> (i32, i32) {
    %c0_i32 = arith.constant 0 : i32
    %c0_i32_0 = arith.constant 0 : i32
    %c0_i32_1 = arith.constant 0 : i32
    return %c0_i32, %c0_i32_0 : i32, i32
  }
  func.func @transform_2(%arg0: i32) -> (i32, i32) {
    %c0_i32 = arith.constant 0 : i32
    %c0_i32_0 = arith.constant 0 : i32
    %c0_i32_1 = arith.constant 0 : i32
    return %c0_i32, %c0_i32_0 : i32, i32
  }
  func.func @transform_3(%arg0: i32) -> (i32, i32) {
    %c0_i32 = arith.constant 0 : i32
    %c0_i32_0 = arith.constant 0 : i32
    %c0_i32_1 = arith.constant 0 : i32
    return %c0_i32, %c0_i32_0 : i32, i32
  }
  func.func @transform_4(%arg0: i32) -> (i32, i32) {
    %c0_i32 = arith.constant 0 : i32
    %c0_i32_0 = arith.constant 0 : i32
    %c0_i32_1 = arith.constant 0 : i32
    return %c0_i32, %c0_i32_0 : i32, i32
  }
  func.func @transform_5(%arg0: i32) -> (i32, i32) {
    %c0_i32 = arith.constant 0 : i32
    %c0_i32_0 = arith.constant 0 : i32
    %c0_i32_1 = arith.constant 0 : i32
    return %c0_i32, %c0_i32_0 : i32, i32
  }
  func.func @transform_6(%arg0: i32) -> (i32, i32) {
    %c0_i32 = arith.constant 0 : i32
    %c0_i32_0 = arith.constant 0 : i32
    %c0_i32_1 = arith.constant 0 : i32
    return %c0_i32, %c0_i32_0 : i32, i32
  }
  func.func @transform_7(%arg0: i32) -> (i32, i32) {
    %c0_i32 = arith.constant 0 : i32
    %c0_i32_0 = arith.constant 0 : i32
    return %arg0, %c0_i32 : i32, i32
  }
  func.func @transform_8(%arg0: i32) -> (i32, i32) {
    %c0_i32 = arith.constant 0 : i32
    %c0_i32_0 = arith.constant 0 : i32
    return %arg0, %c0_i32 : i32, i32
  }
}

module attributes {stable_mosaic.version = 11 : i64} {
  func.func @_na2d_block_kernel(%arg0: i32, %arg1: i32, %arg2: memref<4x64x64xbf16, #tpu.memory_space<vmem>>, %arg3: memref<1x64x32xbf16, #tpu.memory_space<vmem>>, %arg4: memref<1x64x64xbf16, #tpu.memory_space<vmem>>, %arg5: memref<1x64x32xf32, #tpu.memory_space<vmem>>, %arg6: memref<32x32xbf16, #tpu.memory_space<vmem>>, %arg7: memref<1x32xf32, #tpu.memory_space<vmem>>, %arg8: memref<1x32xf32, #tpu.memory_space<vmem>>, %arg9: memref<1x32xf32, #tpu.memory_space<vmem>>, %arg10: memref<32x128xbf16, #tpu.memory_space<vmem>>, %arg11: memref<1x128xf32, #tpu.memory_space<vmem>>, %arg12: memref<128x32xbf16, #tpu.memory_space<vmem>>, %arg13: memref<1x32xf32, #tpu.memory_space<vmem>>, %arg14: memref<1x64x32xf32, #tpu.memory_space<vmem>>) attributes {dimension_semantics = [#tpu.dimension_semantics<parallel>, #tpu.dimension_semantics<parallel>], iteration_bounds = array<i64: 1, 2>, scalar_prefetch = 0 : i64, scratch_operands = 0 : i64, tpu.core_type = #tpu.core_type<tc>, window_params = [{transform_indices = @transform_0, window_bounds = array<i64: 4, 64, 64>}, {transform_indices = @transform_1, window_bounds = array<i64: 1, 64, 32>}, {transform_indices = @transform_2, window_bounds = array<i64: 1, 64, 64>}, {transform_indices = @transform_3, window_bounds = array<i64: 1, 64, 32>}, {pipeline_mode = #tpu.pipeline_mode<synchronous>, transform_indices = @transform_4, window_bounds = array<i64: 32, 32>}, {pipeline_mode = #tpu.pipeline_mode<synchronous>, transform_indices = @transform_5, window_bounds = array<i64: 1, 32>}, {pipeline_mode = #tpu.pipeline_mode<synchronous>, transform_indices = @transform_6, window_bounds = array<i64: 1, 32>}, {pipeline_mode = #tpu.pipeline_mode<synchronous>, transform_indices = @transform_7, window_bounds = array<i64: 1, 32>}, {pipeline_mode = #tpu.pipeline_mode<synchronous>, transform_indices = @transform_8, window_bounds = array<i64: 32, 128>}, {pipeline_mode = #tpu.pipeline_mode<synchronous>, transform_indices = @transform_9, window_bounds = array<i64: 1, 128>}, {pipeline_mode = #tpu.pipeline_mode<synchronous>, transform_indices = @transform_10, window_bounds = array<i64: 128, 32>}, {pipeline_mode = #tpu.pipeline_mode<synchronous>, transform_indices = @transform_11, window_bounds = array<i64: 1, 32>}, {transform_indices = @transform_12, window_bounds = array<i64: 1, 64, 32>}]} {
    %c0 = arith.constant 0 : index
    %c0_0 = arith.constant 0 : index
    %c0_1 = arith.constant 0 : index
    %0 = vector.load %arg3[%c0, %c0_0, %c0_1] : memref<1x64x32xbf16, #tpu.memory_space<vmem>>, vector<1x64x32xbf16>
    %1 = vector.shape_cast %0 : vector<1x64x32xbf16> to vector<64x32xbf16>
    %c0_2 = arith.constant 0 : index
    %c0_3 = arith.constant 0 : index
    %c0_4 = arith.constant 0 : index
    %2 = vector.load %arg4[%c0_2, %c0_3, %c0_4] : memref<1x64x64xbf16, #tpu.memory_space<vmem>>, vector<1x64x64xbf16>
    %3 = vector.shape_cast %2 : vector<1x64x64xbf16> to vector<64x64xbf16>
    %c0_5 = arith.constant 0 : index
    %c0_6 = arith.constant 0 : index
    %4 = vector.load %arg6[%c0_5, %c0_6] : memref<32x32xbf16, #tpu.memory_space<vmem>>, vector<32x32xbf16>
    %cst = arith.constant 0.000000e+00 : f32
    %5 = vector.broadcast %cst : f32 to vector<64x32xf32>
    %6 = vector.extract_strided_slice %1 {offsets = [0, 0], sizes = [64, 8], strides = [1, 1]} : vector<64x32xbf16> to vector<64x8xbf16>
    %7 = vector.extract_strided_slice %3 {offsets = [0, 0], sizes = [64, 8], strides = [1, 1]} : vector<64x64xbf16> to vector<64x8xbf16>
    %8 = vector.extract_strided_slice %3 {offsets = [0, 32], sizes = [64, 8], strides = [1, 1]} : vector<64x64xbf16> to vector<64x8xbf16>
    %cst_7 = arith.constant dense<0.000000e+00> : vector<64x64xf32>
    %9 = tpu.matmul %6, %7, %cst_7 {dimension_numbers = #tpu.dot_dimension_numbers<[1], [1], [0], [0], [0, 0, 1, 0], [], []>} : vector<64x8xbf16>, vector<64x8xbf16>, vector<64x64xf32> -> vector<64x64xf32>
    %cst_8 = arith.constant 0.353553385 : f32
    %10 = vector.broadcast %cst_8 : f32 to vector<64x64xf32>
    %11 = arith.mulf %9, %10 : vector<64x64xf32>
    %c0_9 = arith.constant 0 : index
    %c0_10 = arith.constant 0 : index
    %c0_11 = arith.constant 0 : index
    %12 = vector.load %arg2[%c0_9, %c0_10, %c0_11] : memref<4x64x64xbf16, #tpu.memory_space<vmem>>, vector<1x64x64xbf16>
    %13 = vector.shape_cast %12 : vector<1x64x64xbf16> to vector<64x64xbf16>
    %14 = arith.extf %13 : vector<64x64xbf16> to vector<64x64xf32>
    %15 = arith.addf %11, %14 : vector<64x64xf32>
    %cst_12 = arith.constant dense<0xFF800000> : vector<64xf32>
    %16 = vector.multi_reduction <maximumf>, %15, %cst_12 [1] : vector<64x64xf32> to vector<64xf32>
    %17 = vector.shape_cast %16 : vector<64xf32> to vector<64x1xf32>
    %18 = vector.broadcast %17 : vector<64x1xf32> to vector<64x64xf32>
    %19 = arith.subf %15, %18 : vector<64x64xf32>
    %20 = math.exp %19 : vector<64x64xf32>
    %cst_13 = arith.constant dense<0.000000e+00> : vector<64xf32>
    %21 = vector.multi_reduction <add>, %20, %cst_13 [1] : vector<64x64xf32> to vector<64xf32>
    %22 = vector.shape_cast %21 : vector<64xf32> to vector<64x1xf32>
    %23 = tpu.reciprocal %22 {approx = true} : vector<64x1xf32> -> vector<64x1xf32>
    %24 = vector.broadcast %23 : vector<64x1xf32> to vector<64x64xf32>
    %25 = arith.mulf %20, %24 : vector<64x64xf32>
    %26 = arith.truncf %25 : vector<64x64xf32> to vector<64x64xbf16>
    %cst_14 = arith.constant dense<0.000000e+00> : vector<64x8xf32>
    %27 = tpu.matmul %26, %8, %cst_14 {dimension_numbers = #tpu.dot_dimension_numbers<[1], [0], [0], [1], [0, 0, 1, 1], [], []>} : vector<64x64xbf16>, vector<64x8xbf16>, vector<64x8xf32> -> vector<64x8xf32>
    %28 = arith.truncf %27 : vector<64x8xf32> to vector<64x8xbf16>
    %29 = vector.extract_strided_slice %4 {offsets = [0, 0], sizes = [8, 32], strides = [1, 1]} : vector<32x32xbf16> to vector<8x32xbf16>
    %cst_15 = arith.constant dense<0.000000e+00> : vector<64x32xf32>
    %30 = tpu.matmul %28, %29, %cst_15 {dimension_numbers = #tpu.dot_dimension_numbers<[1], [0], [0], [1], [0, 0, 1, 1], [], []>} : vector<64x8xbf16>, vector<8x32xbf16>, vector<64x32xf32> -> vector<64x32xf32>
    %31 = arith.addf %5, %30 : vector<64x32xf32>
    %32 = vector.extract_strided_slice %1 {offsets = [0, 8], sizes = [64, 8], strides = [1, 1]} : vector<64x32xbf16> to vector<64x8xbf16>
    %33 = vector.extract_strided_slice %3 {offsets = [0, 8], sizes = [64, 8], strides = [1, 1]} : vector<64x64xbf16> to vector<64x8xbf16>
    %34 = vector.extract_strided_slice %3 {offsets = [0, 40], sizes = [64, 8], strides = [1, 1]} : vector<64x64xbf16> to vector<64x8xbf16>
    %cst_16 = arith.constant dense<0.000000e+00> : vector<64x64xf32>
    %35 = tpu.matmul %32, %33, %cst_16 {dimension_numbers = #tpu.dot_dimension_numbers<[1], [1], [0], [0], [0, 0, 1, 0], [], []>} : vector<64x8xbf16>, vector<64x8xbf16>, vector<64x64xf32> -> vector<64x64xf32>
    %cst_17 = arith.constant 0.353553385 : f32
    %36 = vector.broadcast %cst_17 : f32 to vector<64x64xf32>
    %37 = arith.mulf %35, %36 : vector<64x64xf32>
    %c1 = arith.constant 1 : index
    %c0_18 = arith.constant 0 : index
    %c0_19 = arith.constant 0 : index
    %38 = vector.load %arg2[%c1, %c0_18, %c0_19] : memref<4x64x64xbf16, #tpu.memory_space<vmem>>, vector<1x64x64xbf16>
    %39 = vector.shape_cast %38 : vector<1x64x64xbf16> to vector<64x64xbf16>
    %40 = arith.extf %39 : vector<64x64xbf16> to vector<64x64xf32>
    %41 = arith.addf %37, %40 : vector<64x64xf32>
    %cst_20 = arith.constant dense<0xFF800000> : vector<64xf32>
    %42 = vector.multi_reduction <maximumf>, %41, %cst_20 [1] : vector<64x64xf32> to vector<64xf32>
    %43 = vector.shape_cast %42 : vector<64xf32> to vector<64x1xf32>
    %44 = vector.broadcast %43 : vector<64x1xf32> to vector<64x64xf32>
    %45 = arith.subf %41, %44 : vector<64x64xf32>
    %46 = math.exp %45 : vector<64x64xf32>
    %cst_21 = arith.constant dense<0.000000e+00> : vector<64xf32>
    %47 = vector.multi_reduction <add>, %46, %cst_21 [1] : vector<64x64xf32> to vector<64xf32>
    %48 = vector.shape_cast %47 : vector<64xf32> to vector<64x1xf32>
    %49 = tpu.reciprocal %48 {approx = true} : vector<64x1xf32> -> vector<64x1xf32>
    %50 = vector.broadcast %49 : vector<64x1xf32> to vector<64x64xf32>
    %51 = arith.mulf %46, %50 : vector<64x64xf32>
    %52 = arith.truncf %51 : vector<64x64xf32> to vector<64x64xbf16>
    %cst_22 = arith.constant dense<0.000000e+00> : vector<64x8xf32>
    %53 = tpu.matmul %52, %34, %cst_22 {dimension_numbers = #tpu.dot_dimension_numbers<[1], [0], [0], [1], [0, 0, 1, 1], [], []>} : vector<64x64xbf16>, vector<64x8xbf16>, vector<64x8xf32> -> vector<64x8xf32>
    %54 = arith.truncf %53 : vector<64x8xf32> to vector<64x8xbf16>
    %55 = vector.extract_strided_slice %4 {offsets = [8, 0], sizes = [8, 32], strides = [1, 1]} : vector<32x32xbf16> to vector<8x32xbf16>
    %cst_23 = arith.constant dense<0.000000e+00> : vector<64x32xf32>
    %56 = tpu.matmul %54, %55, %cst_23 {dimension_numbers = #tpu.dot_dimension_numbers<[1], [0], [0], [1], [0, 0, 1, 1], [], []>} : vector<64x8xbf16>, vector<8x32xbf16>, vector<64x32xf32> -> vector<64x32xf32>
    %57 = arith.addf %31, %56 : vector<64x32xf32>
    %58 = vector.extract_strided_slice %1 {offsets = [0, 16], sizes = [64, 8], strides = [1, 1]} : vector<64x32xbf16> to vector<64x8xbf16>
    %59 = vector.extract_strided_slice %3 {offsets = [0, 16], sizes = [64, 8], strides = [1, 1]} : vector<64x64xbf16> to vector<64x8xbf16>
    %60 = vector.extract_strided_slice %3 {offsets = [0, 48], sizes = [64, 8], strides = [1, 1]} : vector<64x64xbf16> to vector<64x8xbf16>
    %cst_24 = arith.constant dense<0.000000e+00> : vector<64x64xf32>
    %61 = tpu.matmul %58, %59, %cst_24 {dimension_numbers = #tpu.dot_dimension_numbers<[1], [1], [0], [0], [0, 0, 1, 0], [], []>} : vector<64x8xbf16>, vector<64x8xbf16>, vector<64x64xf32> -> vector<64x64xf32>
    %cst_25 = arith.constant 0.353553385 : f32
    %62 = vector.broadcast %cst_25 : f32 to vector<64x64xf32>
    %63 = arith.mulf %61, %62 : vector<64x64xf32>
    %c2 = arith.constant 2 : index
    %c0_26 = arith.constant 0 : index
    %c0_27 = arith.constant 0 : index
    %64 = vector.load %arg2[%c2, %c0_26, %c0_27] : memref<4x64x64xbf16, #tpu.memory_space<vmem>>, vector<1x64x64xbf16>
    %65 = vector.shape_cast %64 : vector<1x64x64xbf16> to vector<64x64xbf16>
    %66 = arith.extf %65 : vector<64x64xbf16> to vector<64x64xf32>
    %67 = arith.addf %63, %66 : vector<64x64xf32>
    %cst_28 = arith.constant dense<0xFF800000> : vector<64xf32>
    %68 = vector.multi_reduction <maximumf>, %67, %cst_28 [1] : vector<64x64xf32> to vector<64xf32>
    %69 = vector.shape_cast %68 : vector<64xf32> to vector<64x1xf32>
    %70 = vector.broadcast %69 : vector<64x1xf32> to vector<64x64xf32>
    %71 = arith.subf %67, %70 : vector<64x64xf32>
    %72 = math.exp %71 : vector<64x64xf32>
    %cst_29 = arith.constant dense<0.000000e+00> : vector<64xf32>
    %73 = vector.multi_reduction <add>, %72, %cst_29 [1] : vector<64x64xf32> to vector<64xf32>
    %74 = vector.shape_cast %73 : vector<64xf32> to vector<64x1xf32>
    %75 = tpu.reciprocal %74 {approx = true} : vector<64x1xf32> -> vector<64x1xf32>
    %76 = vector.broadcast %75 : vector<64x1xf32> to vector<64x64xf32>
    %77 = arith.mulf %72, %76 : vector<64x64xf32>
    %78 = arith.truncf %77 : vector<64x64xf32> to vector<64x64xbf16>
    %cst_30 = arith.constant dense<0.000000e+00> : vector<64x8xf32>
    %79 = tpu.matmul %78, %60, %cst_30 {dimension_numbers = #tpu.dot_dimension_numbers<[1], [0], [0], [1], [0, 0, 1, 1], [], []>} : vector<64x64xbf16>, vector<64x8xbf16>, vector<64x8xf32> -> vector<64x8xf32>
    %80 = arith.truncf %79 : vector<64x8xf32> to vector<64x8xbf16>
    %81 = vector.extract_strided_slice %4 {offsets = [16, 0], sizes = [8, 32], strides = [1, 1]} : vector<32x32xbf16> to vector<8x32xbf16>
    %cst_31 = arith.constant dense<0.000000e+00> : vector<64x32xf32>
    %82 = tpu.matmul %80, %81, %cst_31 {dimension_numbers = #tpu.dot_dimension_numbers<[1], [0], [0], [1], [0, 0, 1, 1], [], []>} : vector<64x8xbf16>, vector<8x32xbf16>, vector<64x32xf32> -> vector<64x32xf32>
    %83 = arith.addf %57, %82 : vector<64x32xf32>
    %84 = vector.extract_strided_slice %1 {offsets = [0, 24], sizes = [64, 8], strides = [1, 1]} : vector<64x32xbf16> to vector<64x8xbf16>
    %85 = vector.extract_strided_slice %3 {offsets = [0, 24], sizes = [64, 8], strides = [1, 1]} : vector<64x64xbf16> to vector<64x8xbf16>
    %86 = vector.extract_strided_slice %3 {offsets = [0, 56], sizes = [64, 8], strides = [1, 1]} : vector<64x64xbf16> to vector<64x8xbf16>
    %cst_32 = arith.constant dense<0.000000e+00> : vector<64x64xf32>
    %87 = tpu.matmul %84, %85, %cst_32 {dimension_numbers = #tpu.dot_dimension_numbers<[1], [1], [0], [0], [0, 0, 1, 0], [], []>} : vector<64x8xbf16>, vector<64x8xbf16>, vector<64x64xf32> -> vector<64x64xf32>
    %cst_33 = arith.constant 0.353553385 : f32
    %88 = vector.broadcast %cst_33 : f32 to vector<64x64xf32>
    %89 = arith.mulf %87, %88 : vector<64x64xf32>
    %c3 = arith.constant 3 : index
    %c0_34 = arith.constant 0 : index
    %c0_35 = arith.constant 0 : index
    %90 = vector.load %arg2[%c3, %c0_34, %c0_35] : memref<4x64x64xbf16, #tpu.memory_space<vmem>>, vector<1x64x64xbf16>
    %91 = vector.shape_cast %90 : vector<1x64x64xbf16> to vector<64x64xbf16>
    %92 = arith.extf %91 : vector<64x64xbf16> to vector<64x64xf32>
    %93 = arith.addf %89, %92 : vector<64x64xf32>
    %cst_36 = arith.constant dense<0xFF800000> : vector<64xf32>
    %94 = vector.multi_reduction <maximumf>, %93, %cst_36 [1] : vector<64x64xf32> to vector<64xf32>
    %95 = vector.shape_cast %94 : vector<64xf32> to vector<64x1xf32>
    %96 = vector.broadcast %95 : vector<64x1xf32> to vector<64x64xf32>
    %97 = arith.subf %93, %96 : vector<64x64xf32>
    %98 = math.exp %97 : vector<64x64xf32>
    %cst_37 = arith.constant dense<0.000000e+00> : vector<64xf32>
    %99 = vector.multi_reduction <add>, %98, %cst_37 [1] : vector<64x64xf32> to vector<64xf32>
    %100 = vector.shape_cast %99 : vector<64xf32> to vector<64x1xf32>
    %101 = tpu.reciprocal %100 {approx = true} : vector<64x1xf32> -> vector<64x1xf32>
    %102 = vector.broadcast %101 : vector<64x1xf32> to vector<64x64xf32>
    %103 = arith.mulf %98, %102 : vector<64x64xf32>
    %104 = arith.truncf %103 : vector<64x64xf32> to vector<64x64xbf16>
    %cst_38 = arith.constant dense<0.000000e+00> : vector<64x8xf32>
    %105 = tpu.matmul %104, %86, %cst_38 {dimension_numbers = #tpu.dot_dimension_numbers<[1], [0], [0], [1], [0, 0, 1, 1], [], []>} : vector<64x64xbf16>, vector<64x8xbf16>, vector<64x8xf32> -> vector<64x8xf32>
    %106 = arith.truncf %105 : vector<64x8xf32> to vector<64x8xbf16>
    %107 = vector.extract_strided_slice %4 {offsets = [24, 0], sizes = [8, 32], strides = [1, 1]} : vector<32x32xbf16> to vector<8x32xbf16>
    %cst_39 = arith.constant dense<0.000000e+00> : vector<64x32xf32>
    %108 = tpu.matmul %106, %107, %cst_39 {dimension_numbers = #tpu.dot_dimension_numbers<[1], [0], [0], [1], [0, 0, 1, 1], [], []>} : vector<64x8xbf16>, vector<8x32xbf16>, vector<64x32xf32> -> vector<64x32xf32>
    %109 = arith.addf %83, %108 : vector<64x32xf32>
    %c0_40 = arith.constant 0 : index
    %c0_41 = arith.constant 0 : index
    %110 = vector.load %arg7[%c0_40, %c0_41] : memref<1x32xf32, #tpu.memory_space<vmem>>, vector<1x32xf32>
    %111 = vector.broadcast %110 : vector<1x32xf32> to vector<64x32xf32>
    %112 = arith.addf %109, %111 : vector<64x32xf32>
    %c0_42 = arith.constant 0 : index
    %c0_43 = arith.constant 0 : index
    %c0_44 = arith.constant 0 : index
    %113 = vector.load %arg5[%c0_42, %c0_43, %c0_44] : memref<1x64x32xf32, #tpu.memory_space<vmem>>, vector<1x64x32xf32>
    %114 = vector.shape_cast %113 : vector<1x64x32xf32> to vector<64x32xf32>
    %115 = arith.addf %112, %114 : vector<64x32xf32>
    %cst_45 = arith.constant dense<0.000000e+00> : vector<64xf32>
    %116 = vector.multi_reduction <add>, %115, %cst_45 [1] : vector<64x32xf32> to vector<64xf32>
    %117 = vector.shape_cast %116 : vector<64xf32> to vector<64x1xf32>
    %cst_46 = arith.constant 3.200000e+01 : f32
    %118 = vector.broadcast %cst_46 : f32 to vector<64x1xf32>
    %119 = arith.divf %117, %118 : vector<64x1xf32>
    %120 = vector.broadcast %119 : vector<64x1xf32> to vector<64x32xf32>
    %121 = arith.subf %115, %120 : vector<64x32xf32>
    %122 = arith.mulf %121, %121 : vector<64x32xf32>
    %cst_47 = arith.constant dense<0.000000e+00> : vector<64xf32>
    %123 = vector.multi_reduction <add>, %122, %cst_47 [1] : vector<64x32xf32> to vector<64xf32>
    %124 = vector.shape_cast %123 : vector<64xf32> to vector<64x1xf32>
    %cst_48 = arith.constant 3.200000e+01 : f32
    %125 = vector.broadcast %cst_48 : f32 to vector<64x1xf32>
    %126 = arith.divf %124, %125 : vector<64x1xf32>
    %127 = vector.broadcast %119 : vector<64x1xf32> to vector<64x32xf32>
    %128 = arith.subf %115, %127 : vector<64x32xf32>
    %cst_49 = arith.constant 9.99999974E-6 : f32
    %129 = vector.broadcast %cst_49 : f32 to vector<64x1xf32>
    %130 = arith.addf %126, %129 : vector<64x1xf32>
    %131 = math.rsqrt %130 : vector<64x1xf32>
    %132 = vector.broadcast %131 : vector<64x1xf32> to vector<64x32xf32>
    %133 = arith.mulf %128, %132 : vector<64x32xf32>
    %c0_50 = arith.constant 0 : index
    %c0_51 = arith.constant 0 : index
    %134 = vector.load %arg8[%c0_50, %c0_51] : memref<1x32xf32, #tpu.memory_space<vmem>>, vector<1x32xf32>
    %135 = vector.broadcast %134 : vector<1x32xf32> to vector<64x32xf32>
    %136 = arith.mulf %133, %135 : vector<64x32xf32>
    %c0_52 = arith.constant 0 : index
    %c0_53 = arith.constant 0 : index
    %137 = vector.load %arg9[%c0_52, %c0_53] : memref<1x32xf32, #tpu.memory_space<vmem>>, vector<1x32xf32>
    %138 = vector.broadcast %137 : vector<1x32xf32> to vector<64x32xf32>
    %139 = arith.addf %136, %138 : vector<64x32xf32>
    %140 = arith.truncf %139 : vector<64x32xf32> to vector<64x32xbf16>
    %c0_54 = arith.constant 0 : index
    %c0_55 = arith.constant 0 : index
    %141 = vector.load %arg10[%c0_54, %c0_55] : memref<32x128xbf16, #tpu.memory_space<vmem>>, vector<32x128xbf16>
    %cst_56 = arith.constant dense<0.000000e+00> : vector<64x128xf32>
    %142 = tpu.matmul %140, %141, %cst_56 {dimension_numbers = #tpu.dot_dimension_numbers<[1], [0], [0], [1], [0, 0, 1, 1], [], []>} : vector<64x32xbf16>, vector<32x128xbf16>, vector<64x128xf32> -> vector<64x128xf32>
    %c0_57 = arith.constant 0 : index
    %c0_58 = arith.constant 0 : index
    %143 = vector.load %arg11[%c0_57, %c0_58] : memref<1x128xf32, #tpu.memory_space<vmem>>, vector<1x128xf32>
    %144 = vector.broadcast %143 : vector<1x128xf32> to vector<64x128xf32>
    %145 = arith.addf %142, %144 : vector<64x128xf32>
    %cst_59 = arith.constant 5.000000e-01 : f32
    %146 = vector.broadcast %cst_59 : f32 to vector<64x128xf32>
    %147 = arith.mulf %146, %145 : vector<64x128xf32>
    %cst_60 = arith.constant 0.707106769 : f32
    %148 = vector.broadcast %cst_60 : f32 to vector<64x128xf32>
    %149 = arith.mulf %145, %148 : vector<64x128xf32>
    %150 = math.erf %149 : vector<64x128xf32>
    %cst_61 = arith.constant 1.000000e+00 : f32
    %151 = vector.broadcast %cst_61 : f32 to vector<64x128xf32>
    %152 = arith.addf %151, %150 : vector<64x128xf32>
    %153 = arith.mulf %147, %152 : vector<64x128xf32>
    %154 = arith.truncf %153 : vector<64x128xf32> to vector<64x128xbf16>
    %c0_62 = arith.constant 0 : index
    %c0_63 = arith.constant 0 : index
    %155 = vector.load %arg12[%c0_62, %c0_63] : memref<128x32xbf16, #tpu.memory_space<vmem>>, vector<128x32xbf16>
    %cst_64 = arith.constant dense<0.000000e+00> : vector<64x32xf32>
    %156 = tpu.matmul %154, %155, %cst_64 {dimension_numbers = #tpu.dot_dimension_numbers<[1], [0], [0], [1], [0, 0, 1, 1], [], []>} : vector<64x128xbf16>, vector<128x32xbf16>, vector<64x32xf32> -> vector<64x32xf32>
    %c0_65 = arith.constant 0 : index
    %c0_66 = arith.constant 0 : index
    %157 = vector.load %arg13[%c0_65, %c0_66] : memref<1x32xf32, #tpu.memory_space<vmem>>, vector<1x32xf32>
    %158 = vector.broadcast %157 : vector<1x32xf32> to vector<64x32xf32>
    %159 = arith.addf %156, %158 : vector<64x32xf32>
    %160 = arith.addf %115, %159 : vector<64x32xf32>
    %c0_67 = arith.constant 0 : index
    %c0_68 = arith.constant 0 : index
    %c0_69 = arith.constant 0 : index
    %161 = vector.load %arg14[%c0_67, %c0_68, %c0_69] : memref<1x64x32xf32, #tpu.memory_space<vmem>>, vector<1x64x32xf32>
    %162 = vector.shape_cast %161 : vector<1x64x32xf32> to vector<64x32xf32>
    %163 = vector.shape_cast %160 : vector<64x32xf32> to vector<1x64x32xf32>
    tpu.vector_store %arg14[%c0_67, %c0_68, %c0_69], %163 {strides = array<i32>} : memref<1x64x32xf32, #tpu.memory_space<vmem>>, vector<1x64x32xf32>,
    return
  }
  func.func @transform_0(%arg0: i32, %arg1: i32) -> (i32, i32, i32) {
    %c0_i32 = arith.constant 0 : i32
    %c0_i32_0 = arith.constant 0 : i32
    %c0_i32_1 = arith.constant 0 : i32
    return %c0_i32, %arg0, %c0_i32_0 : i32, i32, i32
  }
  func.func @transform_1(%arg0: i32, %arg1: i32) -> (i32, i32, i32) {
    %c0_i32 = arith.constant 0 : i32
    %c0_i32_0 = arith.constant 0 : i32
    return %arg1, %arg0, %c0_i32 : i32, i32, i32
  }
  func.func @transform_2(%arg0: i32, %arg1: i32) -> (i32, i32, i32) {
    %c0_i32 = arith.constant 0 : i32
    %c0_i32_0 = arith.constant 0 : i32
    %c0_i32_1 = arith.constant 0 : i32
    return %arg1, %c0_i32, %c0_i32_0 : i32, i32, i32
  }
  func.func @transform_3(%arg0: i32, %arg1: i32) -> (i32, i32, i32) {
    %c0_i32 = arith.constant 0 : i32
    %c0_i32_0 = arith.constant 0 : i32
    return %arg1, %arg0, %c0_i32 : i32, i32, i32
  }
  func.func @transform_4(%arg0: i32, %arg1: i32) -> (i32, i32) {
    %c0_i32 = arith.constant 0 : i32
    %c0_i32_0 = arith.constant 0 : i32
    %c0_i32_1 = arith.constant 0 : i32
    return %c0_i32, %c0_i32_0 : i32, i32
  }
  func.func @transform_5(%arg0: i32, %arg1: i32) -> (i32, i32) {
    %c0_i32 = arith.constant 0 : i32
    %c0_i32_0 = arith.constant 0 : i32
    %c0_i32_1 = arith.constant 0 : i32
    return %c0_i32, %c0_i32_0 : i32, i32
  }
  func.func @transform_6(%arg0: i32, %arg1: i32) -> (i32, i32) {
    %c0_i32 = arith.constant 0 : i32
    %c0_i32_0 = arith.constant 0 : i32
    %c0_i32_1 = arith.constant 0 : i32
    return %c0_i32, %c0_i32_0 : i32, i32
  }
  func.func @transform_7(%arg0: i32, %arg1: i32) -> (i32, i32) {
    %c0_i32 = arith.constant 0 : i32
    %c0_i32_0 = arith.constant 0 : i32
    %c0_i32_1 = arith.constant 0 : i32
    return %c0_i32, %c0_i32_0 : i32, i32
  }
  func.func @transform_8(%arg0: i32, %arg1: i32) -> (i32, i32) {
    %c0_i32 = arith.constant 0 : i32
    %c0_i32_0 = arith.constant 0 : i32
    %c0_i32_1 = arith.constant 0 : i32
    return %c0_i32, %c0_i32_0 : i32, i32
  }
  func.func @transform_9(%arg0: i32, %arg1: i32) -> (i32, i32) {
    %c0_i32 = arith.constant 0 : i32
    %c0_i32_0 = arith.constant 0 : i32
    %c0_i32_1 = arith.constant 0 : i32
    return %c0_i32, %c0_i32_0 : i32, i32
  }
  func.func @transform_10(%arg0: i32, %arg1: i32) -> (i32, i32) {
    %c0_i32 = arith.constant 0 : i32
    %c0_i32_0 = arith.constant 0 : i32
    %c0_i32_1 = arith.constant 0 : i32
    return %c0_i32, %c0_i32_0 : i32, i32
  }
  func.func @transform_11(%arg0: i32, %arg1: i32) -> (i32, i32) {
    %c0_i32 = arith.constant 0 : i32
    %c0_i32_0 = arith.constant 0 : i32
    %c0_i32_1 = arith.constant 0 : i32
    return %c0_i32, %c0_i32_0 : i32, i32
  }
  func.func @transform_12(%arg0: i32, %arg1: i32) -> (i32, i32, i32) {
    %c0_i32 = arith.constant 0 : i32
    %c0_i32_0 = arith.constant 0 : i32
    return %arg1, %arg0, %c0_i32 : i32, i32, i32
  }
}

</mosaic_0001>

<llo_original>
// kernel: nat_block_2d.2
$region0: #{nat_block_2d.2}
  #allocation0 [shape = 'u32[]', space=smem, size = 0x4, offset = 0x4, fixed_abs, tag = 'smem constant byte address 0x4 - core index']
  #allocation1 [shape = 'u32[144,128]{1,0:T(1,128)}', space=vmem, size = 0x12000, scoped, tag = 'internal scratch']
  %s0 = inlined_call_operand.vmem [shape: f32[128,32], index: 0, kind: input, shape index: {}]
  %s1 = inlined_call_operand.vmem [shape: f32[1,32], index: 1, kind: input, shape index: {}]
  %s2 = inlined_call_operand.vmem [shape: f32[1,32], index: 2, kind: input, shape index: {}]
  %s3 = inlined_call_operand.vmem [shape: bf16[32,32], index: 3, kind: input, shape index: {}]
  %s4 = inlined_call_operand.vmem [shape: f32[1,32], index: 4, kind: input, shape index: {}]
  %s5 = inlined_call_operand.vmem [shape: bf16[32,64], index: 5, kind: input, shape index: {}]
  %s6 = inlined_call_operand.vmem [shape: f32[1,64], index: 6, kind: input, shape index: {}]
  %s7 = inlined_call_operand.vmem [shape: bf16[128,32], index: 7, kind: output, shape index: {0}]
  %s8 = inlined_call_operand.vmem [shape: bf16[128,64], index: 8, kind: output, shape index: {1}]
  %9 = xla_tuple %s7, %s8
  %s10 = sld [smem:[#allocation0]]
  $region46: #{nat_block_2d.2} parent=0
    _
  %s12 = ssub.s32 1, %s10
  %s13 = scalar_select 0, %s12, %s10
  // Predicated region
  $region2: #{nat_block_2d.2} parent=0 // pred_check
    _
  $region3: #{nat_block_2d.2} parent=0 // pred_check_branch
    %15 = sbr.rel (0) target = $region5
  $region4: #{nat_block_2d.2} parent=0 // pred_region
    _
  $region5: #{nat_block_2d.2} parent=0 // pred_fallthru
    _
  // Predicated region
  $region6: #{nat_block_2d.2} parent=0 // pred_check
    _
  $region7: #{nat_block_2d.2} parent=0 // pred_check_branch
    %17 = sbr.rel (0) target = $region9
  $region8: #{nat_block_2d.2} parent=0 // pred_region
    _
  $region9: #{nat_block_2d.2} parent=0 // pred_fallthru
    _
  // Predicated region
  $region10: #{nat_block_2d.2} parent=0 // pred_check
    _
  $region11: #{nat_block_2d.2} parent=0 // pred_check_branch
    %19 = sbr.rel (0) target = $region13
  $region12: #{nat_block_2d.2} parent=0 // pred_region
    _
  $region13: #{nat_block_2d.2} parent=0 // pred_fallthru
    _
  // Predicated region
  $region14: #{nat_block_2d.2} parent=0 // pred_check
    _
  $region15: #{nat_block_2d.2} parent=0 // pred_check_branch
    %21 = sbr.rel (0) target = $region17
  $region16: #{nat_block_2d.2} parent=0 // pred_region
    _
  $region17: #{nat_block_2d.2} parent=0 // pred_fallthru
    _
  // Predicated region
  $region18: #{nat_block_2d.2} parent=0 // pred_check
    _
  $region19: #{nat_block_2d.2} parent=0 // pred_check_branch
    %23 = sbr.rel (0) target = $region21
  $region20: #{nat_block_2d.2} parent=0 // pred_region
    _
  $region21: #{nat_block_2d.2} parent=0 // pred_fallthru
    _
  // Predicated region
  $region22: #{nat_block_2d.2} parent=0 // pred_check
    _
  $region23: #{nat_block_2d.2} parent=0 // pred_check_branch
    %25 = sbr.rel (0) target = $region25
  $region24: #{nat_block_2d.2} parent=0 // pred_region
    _
  $region25: #{nat_block_2d.2} parent=0 // pred_fallthru
    _
  // Predicated region
  $region26: #{nat_block_2d.2} parent=0 // pred_check
    _
  $region27: #{nat_block_2d.2} parent=0 // pred_check_branch
    %27 = sbr.rel (0) target = $region29
  $region28: #{nat_block_2d.2} parent=0 // pred_region
    _
  $region29: #{nat_block_2d.2} parent=0 // pred_fallthru
    _
  %v29 = vld [vmem:[%s0] sm:$0xff]
  %v30 = vld [vmem:[%s0 + $0x8] sm:$0xff]
  %v31 = vld [vmem:[%s0 + $0x10] sm:$0xff]
  %v32 = vld [vmem:[%s0 + $0x18] sm:$0xff]
  %v33 = vld [vmem:[%s0 + $0x20] sm:$0xff]
  %v34 = vld [vmem:[%s0 + $0x28] sm:$0xff]
  %v35 = vld [vmem:[%s0 + $0x30] sm:$0xff]
  %v36 = vld [vmem:[%s0 + $0x38] sm:$0xff]
  %v37 = vld [vmem:[%s0 + $0x40] sm:$0xff]
  %v38 = vld [vmem:[%s0 + $0x48] sm:$0xff]
  %v39 = vld [vmem:[%s0 + $0x50] sm:$0xff]
  %v40 = vld [vmem:[%s0 + $0x58] sm:$0xff]
  %v41 = vld [vmem:[%s0 + $0x60] sm:$0xff]
  %v42 = vld [vmem:[%s0 + $0x68] sm:$0xff]
  %v43 = vld [vmem:[%s0 + $0x70] sm:$0xff]
  %v44 = vld [vmem:[%s0 + $0x78] sm:$0xff]
  %vm45 = vcmask 261120
  %v46 = vsel %vm45, %v29, 0.0
  %47 = vadd.xlane.f32.xlu0 %v46
  %v48 = vpop.xlane.xlu0 %47
  %v49 = vsel %vm45, %v30, 0.0
  %50 = vadd.xlane.f32.xlu0 %v49
  %v51 = vpop.xlane.xlu0 %50
  %v52 = vsel %vm45, %v31, 0.0
  %53 = vadd.xlane.f32.xlu0 %v52
  %v54 = vpop.xlane.xlu0 %53
  %v55 = vsel %vm45, %v32, 0.0
  %56 = vadd.xlane.f32.xlu0 %v55
  %v57 = vpop.xlane.xlu0 %56
  %v58 = vsel %vm45, %v33, 0.0
  %59 = vadd.xlane.f32.xlu0 %v58
  %v60 = vpop.xlane.xlu0 %59
  %v61 = vsel %vm45, %v34, 0.0
  %62 = vadd.xlane.f32.xlu0 %v61
  %v63 = vpop.xlane.xlu0 %62
  %v64 = vsel %vm45, %v35, 0.0
  %65 = vadd.xlane.f32.xlu0 %v64
  %v66 = vpop.xlane.xlu0 %65
  %v67 = vsel %vm45, %v36, 0.0
  %68 = vadd.xlane.f32.xlu0 %v67
  %v69 = vpop.xlane.xlu0 %68
  %v70 = vsel %vm45, %v37, 0.0
  %71 = vadd.xlane.f32.xlu0 %v70
  %v72 = vpop.xlane.xlu0 %71
  %v73 = vsel %vm45, %v38, 0.0
  %74 = vadd.xlane.f32.xlu0 %v73
  %v75 = vpop.xlane.xlu0 %74
  %v76 = vsel %vm45, %v39, 0.0
  %77 = vadd.xlane.f32.xlu0 %v76
  %v78 = vpop.xlane.xlu0 %77
  %v79 = vsel %vm45, %v40, 0.0
  %80 = vadd.xlane.f32.xlu0 %v79
  %v81 = vpop.xlane.xlu0 %80
  %v82 = vsel %vm45, %v41, 0.0
  %83 = vadd.xlane.f32.xlu0 %v82
  %v84 = vpop.xlane.xlu0 %83
  %v85 = vsel %vm45, %v42, 0.0
  %86 = vadd.xlane.f32.xlu0 %v85
  %v87 = vpop.xlane.xlu0 %86
  %v88 = vsel %vm45, %v43, 0.0
  %89 = vadd.xlane.f32.xlu0 %v88
  %v90 = vpop.xlane.xlu0 %89
  %v91 = vsel %vm45, %v44, 0.0
  %92 = vadd.xlane.f32.xlu0 %v91
  %v93 = vpop.xlane.xlu0 %92
  %v94 = vrcp.pop 32.0
  %v95 = vmul.f32 %v48, %v94
  %v96 = vmul.f32 %v51, %v94
  %v97 = vmul.f32 %v54, %v94
  %v98 = vmul.f32 %v57, %v94
  %v99 = vmul.f32 %v60, %v94
  %v100 = vmul.f32 %v63, %v94
  %v101 = vmul.f32 %v66, %v94
  %v102 = vmul.f32 %v69, %v94
  %v103 = vmul.f32 %v72, %v94
  %v104 = vmul.f32 %v75, %v94
  %v105 = vmul.f32 %v78, %v94
  %v106 = vmul.f32 %v81, %v94
  %v107 = vmul.f32 %v84, %v94
  %v108 = vmul.f32 %v87, %v94
  %v109 = vmul.f32 %v90, %v94
  %v110 = vmul.f32 %v93, %v94
  %v111 = vsub.f32 %v29, %v95
  %v112 = vsub.f32 %v30, %v96
  %v113 = vsub.f32 %v31, %v97
  %v114 = vsub.f32 %v32, %v98
  %v115 = vsub.f32 %v33, %v99
  %v116 = vsub.f32 %v34, %v100
  %v117 = vsub.f32 %v35, %v101
  %v118 = vsub.f32 %v36, %v102
  %v119 = vsub.f32 %v37, %v103
  %v120 = vsub.f32 %v38, %v104
  %v121 = vsub.f32 %v39, %v105
  %v122 = vsub.f32 %v40, %v106
  %v123 = vsub.f32 %v41, %v107
  %v124 = vsub.f32 %v42, %v108
  %v125 = vsub.f32 %v43, %v109
  %v126 = vsub.f32 %v44, %v110
  %v127 = vmul.f32 %v111, %v111
  %v128 = vmul.f32 %v112, %v112
  %v129 = vmul.f32 %v113, %v113
  %v130 = vmul.f32 %v114, %v114
  %v131 = vmul.f32 %v115, %v115
  %v132 = vmul.f32 %v116, %v116
  %v133 = vmul.f32 %v117, %v117
  %v134 = vmul.f32 %v118, %v118
  %v135 = vmul.f32 %v119, %v119
  %v136 = vmul.f32 %v120, %v120
  %v137 = vmul.f32 %v121, %v121
  %v138 = vmul.f32 %v122, %v122
  %v139 = vmul.f32 %v123, %v123
  %v140 = vmul.f32 %v124, %v124
  %v141 = vmul.f32 %v125, %v125
  %v142 = vmul.f32 %v126, %v126
  %v143 = vsel %vm45, %v127, 0.0
  %144 = vadd.xlane.f32.xlu0 %v143
  %v145 = vpop.xlane.xlu0 %144
  %v146 = vsel %vm45, %v128, 0.0
  %147 = vadd.xlane.f32.xlu0 %v146
  %v148 = vpop.xlane.xlu0 %147
  %v149 = vsel %vm45, %v129, 0.0
  %150 = vadd.xlane.f32.xlu0 %v149
  %v151 = vpop.xlane.xlu0 %150
  %v152 = vsel %vm45, %v130, 0.0
  %153 = vadd.xlane.f32.xlu0 %v152
  %v154 = vpop.xlane.xlu0 %153
  %v155 = vsel %vm45, %v131, 0.0
  %156 = vadd.xlane.f32.xlu0 %v155
  %v157 = vpop.xlane.xlu0 %156
  %v158 = vsel %vm45, %v132, 0.0
  %159 = vadd.xlane.f32.xlu0 %v158
  %v160 = vpop.xlane.xlu0 %159
  %v161 = vsel %vm45, %v133, 0.0
  %162 = vadd.xlane.f32.xlu0 %v161
  %v163 = vpop.xlane.xlu0 %162
  %v164 = vsel %vm45, %v134, 0.0
  %165 = vadd.xlane.f32.xlu0 %v164
  %v166 = vpop.xlane.xlu0 %165
  %v167 = vsel %vm45, %v135, 0.0
  %168 = vadd.xlane.f32.xlu0 %v167
  %v169 = vpop.xlane.xlu0 %168
  %v170 = vsel %vm45, %v136, 0.0
  %171 = vadd.xlane.f32.xlu0 %v170
  %v172 = vpop.xlane.xlu0 %171
  %v173 = vsel %vm45, %v137, 0.0
  %174 = vadd.xlane.f32.xlu0 %v173
  %v175 = vpop.xlane.xlu0 %174
  %v176 = vsel %vm45, %v138, 0.0
  %177 = vadd.xlane.f32.xlu0 %v176
  %v178 = vpop.xlane.xlu0 %177
  %v179 = vsel %vm45, %v139, 0.0
  %180 = vadd.xlane.f32.xlu0 %v179
  %v181 = vpop.xlane.xlu0 %180
  %v182 = vsel %vm45, %v140, 0.0
  %183 = vadd.xlane.f32.xlu0 %v182
  %v184 = vpop.xlane.xlu0 %183
  %v185 = vsel %vm45, %v141, 0.0
  %186 = vadd.xlane.f32.xlu0 %v185
  %v187 = vpop.xlane.xlu0 %186
  %v188 = vsel %vm45, %v142, 0.0
  %189 = vadd.xlane.f32.xlu0 %v188
  %v190 = vpop.xlane.xlu0 %189
  %v191 = vmul.f32 %v145, %v94
  %v192 = vmul.f32 %v148, %v94
  %v193 = vmul.f32 %v151, %v94
  %v194 = vmul.f32 %v154, %v94
  %v195 = vmul.f32 %v157, %v94
  %v196 = vmul.f32 %v160, %v94
  %v197 = vmul.f32 %v163, %v94
  %v198 = vmul.f32 %v166, %v94
  %v199 = vmul.f32 %v169, %v94
  %v200 = vmul.f32 %v172, %v94
  %v201 = vmul.f32 %v175, %v94
  %v202 = vmul.f32 %v178, %v94
  %v203 = vmul.f32 %v181, %v94
  %v204 = vmul.f32 %v184, %v94
  %v205 = vmul.f32 %v187, %v94
  %v206 = vmul.f32 %v190, %v94
  %v207 = vadd.f32 %v191, 1e-05
  %v208 = vadd.f32 %v192, 1e-05
  %v209 = vadd.f32 %v193, 1e-05
  %v210 = vadd.f32 %v194, 1e-05
  %v211 = vadd.f32 %v195, 1e-05
  %v212 = vadd.f32 %v196, 1e-05
  %v213 = vadd.f32 %v197, 1e-05
  %v214 = vadd.f32 %v198, 1e-05
  %v215 = vadd.f32 %v199, 1e-05
  %v216 = vadd.f32 %v200, 1e-05
  %v217 = vadd.f32 %v201, 1e-05
  %v218 = vadd.f32 %v202, 1e-05
  %v219 = vadd.f32 %v203, 1e-05
  %v220 = vadd.f32 %v204, 1e-05
  %v221 = vadd.f32 %v205, 1e-05
  %v222 = vadd.f32 %v206, 1e-05
  %v223 = vrsqrt.pop %v207
  %v224 = vrsqrt.pop %v208
  %v225 = vrsqrt.pop %v209
  %v226 = vrsqrt.pop %v210
  %v227 = vrsqrt.pop %v211
  %v228 = vrsqrt.pop %v212
  %v229 = vrsqrt.pop %v213
  %v230 = vrsqrt.pop %v214
  %v231 = vrsqrt.pop %v215
  %v232 = vrsqrt.pop %v216
  %v233 = vrsqrt.pop %v217
  %v234 = vrsqrt.pop %v218
  %v235 = vrsqrt.pop %v219
  %v236 = vrsqrt.pop %v220
  %v237 = vrsqrt.pop %v221
  %v238 = vrsqrt.pop %v222
  %v239 = vmul.f32 %v111, %v223
  %v240 = vmul.f32 %v112, %v224
  %v241 = vmul.f32 %v113, %v225
  %v242 = vmul.f32 %v114, %v226
  %v243 = vmul.f32 %v115, %v227
  %v244 = vmul.f32 %v116, %v228
  %v245 = vmul.f32 %v117, %v229
  %v246 = vmul.f32 %v118, %v230
  %v247 = vmul.f32 %v119, %v231
  %v248 = vmul.f32 %v120, %v232
  %v249 = vmul.f32 %v121, %v233
  %v250 = vmul.f32 %v122, %v234
  %v251 = vmul.f32 %v123, %v235
  %v252 = vmul.f32 %v124, %v236
  %v253 = vmul.f32 %v125, %v237
  %v254 = vmul.f32 %v126, %v238
  %v255 = vld [vmem:[%s1] sm:$0x1]
  %v257 = vlaneseq
  %v258 = vshrl.u32 %v257, 7
  %v259 = vsub.s32 0, %v258
  %v260 = vrot.slane %v255, %v259
  %v262 = vmul.f32 %v239, %v260
  %v263 = vmul.f32 %v240, %v260
  %v264 = vmul.f32 %v241, %v260
  %v265 = vmul.f32 %v242, %v260
  %v266 = vmul.f32 %v243, %v260
  %v267 = vmul.f32 %v244, %v260
  %v268 = vmul.f32 %v245, %v260
  %v269 = vmul.f32 %v246, %v260
  %v270 = vmul.f32 %v247, %v260
  %v271 = vmul.f32 %v248, %v260
  %v272 = vmul.f32 %v249, %v260
  %v273 = vmul.f32 %v250, %v260
  %v274 = vmul.f32 %v251, %v260
  %v275 = vmul.f32 %v252, %v260
  %v276 = vmul.f32 %v253, %v260
  %v277 = vmul.f32 %v254, %v260
  %v278 = vld [vmem:[%s2] sm:$0x1]
  %v280 = vlaneseq
  %v281 = vshrl.u32 %v280, 7
  %v282 = vsub.s32 0, %v281
  %v283 = vrot.slane %v278, %v282
  %v285 = vadd.f32 %v262, %v283
  %v286 = vadd.f32 %v263, %v283
  %v287 = vadd.f32 %v264, %v283
  %v288 = vadd.f32 %v265, %v283
  %v289 = vadd.f32 %v266, %v283
  %v290 = vadd.f32 %v267, %v283
  %v291 = vadd.f32 %v268, %v283
  %v292 = vadd.f32 %v269, %v283
  %v293 = vadd.f32 %v270, %v283
  %v294 = vadd.f32 %v271, %v283
  %v295 = vadd.f32 %v272, %v283
  %v296 = vadd.f32 %v273, %v283
  %v297 = vadd.f32 %v274, %v283
  %v298 = vadd.f32 %v275, %v283
  %v299 = vadd.f32 %v276, %v283
  %v300 = vadd.f32 %v277, %v283
  %v301 = vpack.c.bf16 %v286, %v285
  %v302 = vpack.c.bf16 %v288, %v287
  %v303 = vpack.c.bf16 %v290, %v289
  %v304 = vpack.c.bf16 %v292, %v291
  %v305 = vpack.c.bf16 %v294, %v293
  %v306 = vpack.c.bf16 %v296, %v295
  %v307 = vpack.c.bf16 %v298, %v297
  %v308 = vpack.c.bf16 %v300, %v299
  %v309 = vld [vmem:[%s3] sm:$0xf]
  %v310 = vld [vmem:[%s3 + $0x4] sm:$0xf]
  %v311 = vld [vmem:[%s3 + $0x8] sm:$0xf]
  %v312 = vld [vmem:[%s3 + $0xc] sm:$0xf]
  %v313 = vld [vmem:[%s4] sm:$0x1]
  %v315 = vlaneseq
  %v316 = vshrl.u32 %v315, 7
  %v317 = vsub.s32 0, %v316
  %v318 = vrot.slane %v313, %v317
  %v324 = vunpack.c.l.b16 %v309
  %v325 = vunpack.c.l.b16 %v310
  %v326 = vunpack.c.l.b16 %v311
  %v327 = vunpack.c.l.b16 %v312
  %v328 = vpack.c.b16 %v325, %v324
  %v329 = vpack.c.b16 %v327, %v326
  %v333 = vsel %vm45, %v301, 0
  %v336 = vsel %vm45, %v302, 0
  %v339 = vsel %vm45, %v303, 0
  %v342 = vsel %vm45, %v304, 0
  %v345 = vsel %vm45, %v305, 0
  %v348 = vsel %vm45, %v306, 0
  %v351 = vsel %vm45, %v307, 0
  %v354 = vsel %vm45, %v308, 0
  %356 = vmatprep.subr.bf16.mxu0 0
  %357 = vmatpush1.bf16.msra.mxu0 0
  %358 = vmatprep.subr.bf16.mxu0 0
  %359 = vmatpush1.bf16.msra.mxu0 0
  %360 = vmatprep.subr.bf16.mxu0 0
  %361 = vmatpush1.bf16.msra.mxu0 0
  %362 = vmatprep.subr.bf16.mxu0 0
  %363 = vmatpush1.bf16.msra.mxu0 0
  %364 = vmatprep.subr.bf16.mxu0 0
  %365 = vmatpush1.bf16.msra.mxu0 0
  %366 = vmatprep.subr.bf16.mxu0 0
  %367 = vmatpush1.bf16.msra.mxu0 0
  %368 = vmatprep.subr.bf16.mxu0 0
  %369 = vmatpush1.bf16.msra.mxu0 %v329
  %370 = vmatprep.subr.bf16.mxu0 0
  %371 = vmatpush1.bf16.msra.mxu0 %v328
  %372 = vmatprep.subr.bf16.mxu0 0
  %373 = vmatpush2.bf16.msra.mxu0 0
  %374 = vmatprep.subr.bf16.mxu0 0
  %375 = vmatpush2.bf16.msra.mxu0 0
  %376 = vmatprep.subr.bf16.mxu0 0
  %377 = vmatpush2.bf16.msra.mxu0 0
  %378 = vmatprep.subr.bf16.mxu0 0
  %379 = vmatpush2.bf16.msra.mxu0 0
  %380 = vmatprep.subr.bf16.mxu0 0
  %381 = vmatpush2.bf16.msra.mxu0 0
  %382 = vmatprep.subr.bf16.mxu0 0
  %383 = vmatpush2.bf16.msra.mxu0 0
  %384 = vmatprep.subr.bf16.mxu0 0
  %385 = vmatpush2.bf16.msra.mxu0 0
  %386 = vmatprep.subr.bf16.mxu0 0
  %387 = vmatpush2.bf16.msra.mxu0 0
  %388 = vmatprep.mubr.bf16.mxu0 0
  %389 = vmatmul.mubr.bf16.gmra.mxu0 %v333
  %v390 = vpop.f32.mrf.mxu0
  %v391 = vadd.f32 %v318, %v390
  %v392 = vpop.f32.mrf.mxu0
  %v393 = vpop.f32.mrf.mxu0
  %v394 = vadd.f32 %v318, %v393
  %v395 = vpop.f32.mrf.mxu0
  %396 = vmatprep.mubr.bf16.mxu0 0
  %397 = vmatmul.mubr.bf16.gmra.mxu0 %v336
  %v398 = vpop.f32.mrf.mxu0
  %v399 = vadd.f32 %v318, %v398
  %v400 = vpop.f32.mrf.mxu0
  %v401 = vpop.f32.mrf.mxu0
  %v402 = vadd.f32 %v318, %v401
  %v403 = vpop.f32.mrf.mxu0
  %404 = vmatprep.mubr.bf16.mxu0 0
  %405 = vmatmul.mubr.bf16.gmra.mxu0 %v339
  %v406 = vpop.f32.mrf.mxu0
  %v407 = vadd.f32 %v318, %v406
  %v408 = vpop.f32.mrf.mxu0
  %v409 = vpop.f32.mrf.mxu0
  %v410 = vadd.f32 %v318, %v409
  %v411 = vpop.f32.mrf.mxu0
  %412 = vmatprep.mubr.bf16.mxu0 0
  %413 = vmatmul.mubr.bf16.gmra.mxu0 %v342
  %v414 = vpop.f32.mrf.mxu0
  %v415 = vadd.f32 %v318, %v414
  %v416 = vpop.f32.mrf.mxu0
  %v417 = vpop.f32.mrf.mxu0
  %v418 = vadd.f32 %v318, %v417
  %v419 = vpop.f32.mrf.mxu0
  %420 = vmatprep.mubr.bf16.mxu0 0
  %421 = vmatmul.mubr.bf16.gmra.mxu0 %v345
  %v422 = vpop.f32.mrf.mxu0
  %v423 = vadd.f32 %v318, %v422
  %v424 = vpop.f32.mrf.mxu0
  %v425 = vpop.f32.mrf.mxu0
  %v426 = vadd.f32 %v318, %v425
  %v427 = vpop.f32.mrf.mxu0
  %428 = vmatprep.mubr.bf16.mxu0 0
  %429 = vmatmul.mubr.bf16.gmra.mxu0 %v348
  %v430 = vpop.f32.mrf.mxu0
  %v431 = vadd.f32 %v318, %v430
  %v432 = vpop.f32.mrf.mxu0
  %v433 = vpop.f32.mrf.mxu0
  %v434 = vadd.f32 %v318, %v433
  %v435 = vpop.f32.mrf.mxu0
  %436 = vmatprep.mubr.bf16.mxu0 0
  %437 = vmatmul.mubr.bf16.gmra.mxu0 %v351
  %v438 = vpop.f32.mrf.mxu0
  %v439 = vadd.f32 %v318, %v438
  %v440 = vpop.f32.mrf.mxu0
  %v441 = vpop.f32.mrf.mxu0
  %v442 = vadd.f32 %v318, %v441
  %v443 = vpop.f32.mrf.mxu0
  %444 = vmatprep.mubr.bf16.mxu0 0
  %445 = vmatmul.mubr.bf16.gmra.mxu0 %v354
  %v446 = vpop.f32.mrf.mxu0
  %v447 = vadd.f32 %v318, %v446
  %v448 = vpop.f32.mrf.mxu0
  %v449 = vpop.f32.mrf.mxu0
  %v450 = vadd.f32 %v318, %v449
  %v451 = vpop.f32.mrf.mxu0
  %452 = vdwg.mxu0
  %v453 = vld [vmem:[%s5] sm:$0xf]
  %v454 = vld [vmem:[%s5 + $0x4] sm:$0xf]
  %v455 = vld [vmem:[%s5 + $0x8] sm:$0xf]
  %v456 = vld [vmem:[%s5 + $0xc] sm:$0xf]
  %v457 = vld [vmem:[%s6] sm:$0x1]
  %v459 = vlaneseq
  %v460 = vshrl.u32 %v459, 7
  %v461 = vsub.s32 0, %v460
  %v462 = vrot.slane %v457, %v461
  %v468 = vunpack.c.l.b16 %v453
  %v469 = vunpack.c.l.b16 %v454
  %v470 = vunpack.c.l.b16 %v455
  %v471 = vunpack.c.l.b16 %v456
  %v472 = vpack.c.b16 %v469, %v468
  %v473 = vpack.c.b16 %v471, %v470
  %476 = vmatprep.subr.bf16.mxu0 0
  %477 = vmatpush1.bf16.msra.mxu0 0
  %478 = vmatprep.subr.bf16.mxu0 0
  %479 = vmatpush1.bf16.msra.mxu0 0
  %480 = vmatprep.subr.bf16.mxu0 0
  %481 = vmatpush1.bf16.msra.mxu0 0
  %482 = vmatprep.subr.bf16.mxu0 0
  %483 = vmatpush1.bf16.msra.mxu0 0
  %484 = vmatprep.subr.bf16.mxu0 0
  %485 = vmatpush1.bf16.msra.mxu0 0
  %486 = vmatprep.subr.bf16.mxu0 0
  %487 = vmatpush1.bf16.msra.mxu0 0
  %488 = vmatprep.subr.bf16.mxu0 0
  %489 = vmatpush1.bf16.msra.mxu0 %v473
  %490 = vmatprep.subr.bf16.mxu0 0
  %491 = vmatpush1.bf16.msra.mxu0 %v472
  %492 = vmatprep.subr.bf16.mxu0 0
  %493 = vmatpush2.bf16.msra.mxu0 0
  %494 = vmatprep.subr.bf16.mxu0 0
  %495 = vmatpush2.bf16.msra.mxu0 0
  %496 = vmatprep.subr.bf16.mxu0 0
  %497 = vmatpush2.bf16.msra.mxu0 0
  %498 = vmatprep.subr.bf16.mxu0 0
  %499 = vmatpush2.bf16.msra.mxu0 0
  %500 = vmatprep.subr.bf16.mxu0 0
  %501 = vmatpush2.bf16.msra.mxu0 0
  %502 = vmatprep.subr.bf16.mxu0 0
  %503 = vmatpush2.bf16.msra.mxu0 0
  %504 = vmatprep.subr.bf16.mxu0 0
  %505 = vmatpush2.bf16.msra.mxu0 0
  %506 = vmatprep.subr.bf16.mxu0 0
  %507 = vmatpush2.bf16.msra.mxu0 0
  %508 = vmatprep.mubr.bf16.mxu0 0
  %509 = vmatmul.mubr.bf16.gmra.mxu0 %v333
  %v510 = vpop.f32.mrf.mxu0
  %v511 = vadd.f32 %v462, %v510
  %v512 = vpop.f32.mrf.mxu0
  %v513 = vpop.f32.mrf.mxu0
  %v514 = vadd.f32 %v462, %v513
  %v515 = vpop.f32.mrf.mxu0
  %516 = vmatprep.mubr.bf16.mxu0 0
  %517 = vmatmul.mubr.bf16.gmra.mxu0 %v336
  %v518 = vpop.f32.mrf.mxu0
  %v519 = vadd.f32 %v462, %v518
  %v520 = vpop.f32.mrf.mxu0
  %v521 = vpop.f32.mrf.mxu0
  %v522 = vadd.f32 %v462, %v521
  %v523 = vpop.f32.mrf.mxu0
  %524 = vmatprep.mubr.bf16.mxu0 0
  %525 = vmatmul.mubr.bf16.gmra.mxu0 %v339
  %v526 = vpop.f32.mrf.mxu0
  %v527 = vadd.f32 %v462, %v526
  %v528 = vpop.f32.mrf.mxu0
  %v529 = vpop.f32.mrf.mxu0
  %v530 = vadd.f32 %v462, %v529
  %v531 = vpop.f32.mrf.mxu0
  %532 = vmatprep.mubr.bf16.mxu0 0
  %533 = vmatmul.mubr.bf16.gmra.mxu0 %v342
  %v534 = vpop.f32.mrf.mxu0
  %v535 = vadd.f32 %v462, %v534
  %v536 = vpop.f32.mrf.mxu0
  %v537 = vpop.f32.mrf.mxu0
  %v538 = vadd.f32 %v462, %v537
  %v539 = vpop.f32.mrf.mxu0
  %540 = vmatprep.mubr.bf16.mxu0 0
  %541 = vmatmul.mubr.bf16.gmra.mxu0 %v345
  %v542 = vpop.f32.mrf.mxu0
  %v543 = vadd.f32 %v462, %v542
  %v544 = vpop.f32.mrf.mxu0
  %v545 = vpop.f32.mrf.mxu0
  %v546 = vadd.f32 %v462, %v545
  %v547 = vpop.f32.mrf.mxu0
  %548 = vmatprep.mubr.bf16.mxu0 0
  %549 = vmatmul.mubr.bf16.gmra.mxu0 %v348
  %v550 = vpop.f32.mrf.mxu0
  %v551 = vadd.f32 %v462, %v550
  %v552 = vpop.f32.mrf.mxu0
  %v553 = vpop.f32.mrf.mxu0
  %v554 = vadd.f32 %v462, %v553
  %v555 = vpop.f32.mrf.mxu0
  %556 = vmatprep.mubr.bf16.mxu0 0
  %557 = vmatmul.mubr.bf16.gmra.mxu0 %v351
  %v558 = vpop.f32.mrf.mxu0
  %v559 = vadd.f32 %v462, %v558
  %v560 = vpop.f32.mrf.mxu0
  %v561 = vpop.f32.mrf.mxu0
  %v562 = vadd.f32 %v462, %v561
  %v563 = vpop.f32.mrf.mxu0
  %564 = vmatprep.mubr.bf16.mxu0 0
  %565 = vmatmul.mubr.bf16.gmra.mxu0 %v354
  %v566 = vpop.f32.mrf.mxu0
  %v567 = vadd.f32 %v462, %v566
  %v568 = vpop.f32.mrf.mxu0
  %v569 = vpop.f32.mrf.mxu0
  %v570 = vadd.f32 %v462, %v569
  %v571 = vpop.f32.mrf.mxu0
  %572 = vdwg.mxu0
  %v573 = vpack.c.bf16 %v394, %v391
  %v574 = vpack.c.bf16 %v402, %v399
  %v575 = vpack.c.bf16 %v410, %v407
  %v576 = vpack.c.bf16 %v418, %v415
  %v577 = vpack.c.bf16 %v426, %v423
  %v578 = vpack.c.bf16 %v434, %v431
  %v579 = vpack.c.bf16 %v442, %v439
  %v580 = vpack.c.bf16 %v450, %v447
  %v589 = vunpack.c.l.b16 %v573
  %v590 = vunpack.c.h.b16 %v573
  %v591 = vunpack.c.l.b16 %v574
  %v592 = vunpack.c.h.b16 %v574
  %v593 = vunpack.c.l.b16 %v575
  %v594 = vunpack.c.h.b16 %v575
  %v595 = vunpack.c.l.b16 %v576
  %v596 = vunpack.c.h.b16 %v576
  %v597 = vunpack.c.l.b16 %v577
  %v598 = vunpack.c.h.b16 %v577
  %v599 = vunpack.c.l.b16 %v578
  %v600 = vunpack.c.h.b16 %v578
  %v601 = vunpack.c.l.b16 %v579
  %v602 = vunpack.c.h.b16 %v579
  %v603 = vunpack.c.l.b16 %v580
  %v604 = vunpack.c.h.b16 %v580
  %v605 = vpack.c.b16 %v589, %v589
  %v606 = vpack.c.b16 %v590, %v590
  %v607 = vpack.c.b16 %v591, %v591
  %v608 = vpack.c.b16 %v592, %v592
  %v609 = vpack.c.b16 %v593, %v593
  %v610 = vpack.c.b16 %v594, %v594
  %v611 = vpack.c.b16 %v595, %v595
  %v612 = vpack.c.b16 %v596, %v596
  %v613 = vpack.c.b16 %v597, %v597
  %v614 = vpack.c.b16 %v598, %v598
  %v615 = vpack.c.b16 %v599, %v599
  %v616 = vpack.c.b16 %v600, %v600
  %v617 = vpack.c.b16 %v601, %v601
  %v618 = vpack.c.b16 %v602, %v602
  %v619 = vpack.c.b16 %v603, %v603
  %v620 = vpack.c.b16 %v604, %v604
  %vm637 = vcmask 257024
  %638 = vst.msk [vmem:[%s7] sm:$0xf] %vm637, %v605
  %639 = vst.msk [vmem:[%s7 + $0x4] sm:$0xf] %vm637, %v606
  %640 = vst.msk [vmem:[%s7 + $0x8] sm:$0xf] %vm637, %v607
  %641 = vst.msk [vmem:[%s7 + $0xc] sm:$0xf] %vm637, %v608
  %642 = vst.msk [vmem:[%s7 + $0x10] sm:$0xf] %vm637, %v609
  %643 = vst.msk [vmem:[%s7 + $0x14] sm:$0xf] %vm637, %v610
  %644 = vst.msk [vmem:[%s7 + $0x18] sm:$0xf] %vm637, %v611
  %645 = vst.msk [vmem:[%s7 + $0x1c] sm:$0xf] %vm637, %v612
  %646 = vst.msk [vmem:[%s7 + $0x20] sm:$0xf] %vm637, %v613
  %647 = vst.msk [vmem:[%s7 + $0x24] sm:$0xf] %vm637, %v614
  %648 = vst.msk [vmem:[%s7 + $0x28] sm:$0xf] %vm637, %v615
  %649 = vst.msk [vmem:[%s7 + $0x2c] sm:$0xf] %vm637, %v616
  %650 = vst.msk [vmem:[%s7 + $0x30] sm:$0xf] %vm637, %v617
  %651 = vst.msk [vmem:[%s7 + $0x34] sm:$0xf] %vm637, %v618
  %652 = vst.msk [vmem:[%s7 + $0x38] sm:$0xf] %vm637, %v619
  %653 = vst.msk [vmem:[%s7 + $0x3c] sm:$0xf] %vm637, %v620
  %v654 = vpack.c.bf16 %v514, %v511
  %v655 = vpack.c.bf16 %v522, %v519
  %v656 = vpack.c.bf16 %v530, %v527
  %v657 = vpack.c.bf16 %v538, %v535
  %v658 = vpack.c.bf16 %v546, %v543
  %v659 = vpack.c.bf16 %v554, %v551
  %v660 = vpack.c.bf16 %v562, %v559
  %v661 = vpack.c.bf16 %v570, %v567
  %v670 = vunpack.c.l.b16 %v654
  %v671 = vunpack.c.h.b16 %v654
  %v672 = vunpack.c.l.b16 %v655
  %v673 = vunpack.c.h.b16 %v655
  %v674 = vunpack.c.l.b16 %v656
  %v675 = vunpack.c.h.b16 %v656
  %v676 = vunpack.c.l.b16 %v657
  %v677 = vunpack.c.h.b16 %v657
  %v678 = vunpack.c.l.b16 %v658
  %v679 = vunpack.c.h.b16 %v658
  %v680 = vunpack.c.l.b16 %v659
  %v681 = vunpack.c.h.b16 %v659
  %v682 = vunpack.c.l.b16 %v660
  %v683 = vunpack.c.h.b16 %v660
  %v684 = vunpack.c.l.b16 %v661
  %v685 = vunpack.c.h.b16 %v661
  %v686 = vpack.c.b16 %v670, %v670
  %v687 = vpack.c.b16 %v671, %v671
  %v688 = vpack.c.b16 %v672, %v672
  %v689 = vpack.c.b16 %v673, %v673
  %v690 = vpack.c.b16 %v674, %v674
  %v691 = vpack.c.b16 %v675, %v675
  %v692 = vpack.c.b16 %v676, %v676
  %v693 = vpack.c.b16 %v677, %v677
  %v694 = vpack.c.b16 %v678, %v678
  %v695 = vpack.c.b16 %v679, %v679
  %v696 = vpack.c.b16 %v680, %v680
  %v697 = vpack.c.b16 %v681, %v681
  %v698 = vpack.c.b16 %v682, %v682
  %v699 = vpack.c.b16 %v683, %v683
  %v700 = vpack.c.b16 %v684, %v684
  %v701 = vpack.c.b16 %v685, %v685
  %vm718 = vcmask 519168
  %719 = vst.msk [vmem:[%s8] sm:$0xf] %vm718, %v686
  %720 = vst.msk [vmem:[%s8 + $0x4] sm:$0xf] %vm718, %v687
  %721 = vst.msk [vmem:[%s8 + $0x8] sm:$0xf] %vm718, %v688
  %722 = vst.msk [vmem:[%s8 + $0xc] sm:$0xf] %vm718, %v689
  %723 = vst.msk [vmem:[%s8 + $0x10] sm:$0xf] %vm718, %v690
  %724 = vst.msk [vmem:[%s8 + $0x14] sm:$0xf] %vm718, %v691
  %725 = vst.msk [vmem:[%s8 + $0x18] sm:$0xf] %vm718, %v692
  %726 = vst.msk [vmem:[%s8 + $0x1c] sm:$0xf] %vm718, %v693
  %727 = vst.msk [vmem:[%s8 + $0x20] sm:$0xf] %vm718, %v694
  %728 = vst.msk [vmem:[%s8 + $0x24] sm:$0xf] %vm718, %v695
  %729 = vst.msk [vmem:[%s8 + $0x28] sm:$0xf] %vm718, %v696
  %730 = vst.msk [vmem:[%s8 + $0x2c] sm:$0xf] %vm718, %v697
  %731 = vst.msk [vmem:[%s8 + $0x30] sm:$0xf] %vm718, %v698
  %732 = vst.msk [vmem:[%s8 + $0x34] sm:$0xf] %vm718, %v699
  %733 = vst.msk [vmem:[%s8 + $0x38] sm:$0xf] %vm718, %v700
  %734 = vst.msk [vmem:[%s8 + $0x3c] sm:$0xf] %vm718, %v701
  // Predicated region
  $region30: #{nat_block_2d.2} parent=0 // pred_check
    _
  $region31: #{nat_block_2d.2} parent=0 // pred_check_branch
    %736 = sbr.rel (0) target = $region33
  $region32: #{nat_block_2d.2} parent=0 // pred_region
    _
  $region33: #{nat_block_2d.2} parent=0 // pred_fallthru
    _
  // Predicated region
  $region34: #{nat_block_2d.2} parent=0 // pred_check
    _
  $region35: #{nat_block_2d.2} parent=0 // pred_check_branch
    %738 = sbr.rel (0) target = $region37
  $region36: #{nat_block_2d.2} parent=0 // pred_region
    _
  $region37: #{nat_block_2d.2} parent=0 // pred_fallthru
    _
  // Predicated region
  $region38: #{nat_block_2d.2} parent=0 // pred_check
    _
  $region39: #{nat_block_2d.2} parent=0 // pred_check_branch
    %740 = sbr.rel (0) target = $region41
  $region40: #{nat_block_2d.2} parent=0 // pred_region
    _
  $region41: #{nat_block_2d.2} parent=0 // pred_fallthru
    _
  // Predicated region
  $region42: #{nat_block_2d.2} parent=0 // pred_check
    _
  $region43: #{nat_block_2d.2} parent=0 // pred_check_branch
    %742 = sbr.rel (0) target = $region45
  $region44: #{nat_block_2d.2} parent=0 // pred_region
    _
  $region45: #{nat_block_2d.2} parent=0 // pred_fallthru
    _

// kernel: nat_block_2d.3
$region0: #{nat_block_2d.3}
  #allocation0 [shape = 'u32[]', space=smem, size = 0x4, offset = 0x4, fixed_abs, tag = 'smem constant byte address 0x4 - core index']
  #allocation1 [shape = 'u32[144,128]{1,0:T(1,128)}', space=vmem, size = 0x12000, scoped, tag = 'internal scratch']
  %s0 = inlined_call_operand.vmem [shape: bf16[4,64,64], index: 0, kind: input, shape index: {}]
  %s1 = inlined_call_operand.vmem [shape: bf16[2,64,32], index: 1, kind: input, shape index: {}]
  %s2 = inlined_call_operand.vmem [shape: bf16[2,64,64], index: 2, kind: input, shape index: {}]
  %s3 = inlined_call_operand.vmem [shape: f32[2,64,32], index: 3, kind: input, shape index: {}]
  %s4 = inlined_call_operand.vmem [shape: bf16[32,32], index: 4, kind: input, shape index: {}]
  %s5 = inlined_call_operand.vmem [shape: f32[1,32], index: 5, kind: input, shape index: {}]
  %s6 = inlined_call_operand.vmem [shape: f32[1,32], index: 6, kind: input, shape index: {}]
  %s7 = inlined_call_operand.vmem [shape: f32[1,32], index: 7, kind: input, shape index: {}]
  %s8 = inlined_call_operand.vmem [shape: bf16[32,128], index: 8, kind: input, shape index: {}]
  %s9 = inlined_call_operand.vmem [shape: f32[1,128], index: 9, kind: input, shape index: {}]
  %s10 = inlined_call_operand.vmem [shape: bf16[128,32], index: 10, kind: input, shape index: {}]
  %s11 = inlined_call_operand.vmem [shape: f32[1,32], index: 11, kind: input, shape index: {}]
  %s12 = inlined_call_operand.hbm [shape: f32[2,64,32], index: 12, kind: output, shape index: {}]
  %s13 = sld [smem:[#allocation0]]
  $region81: #{nat_block_2d.3} parent=0
    _
  %s15 = ssub.s32 1, %s13
  %s16 = scalar_select 0, %s15, %s13
  $region1: #{nat_block_2d.3} parent=0
    #allocation2 [shape = 'u8[65536]{0}', space=vmem, size = 0x10000, scoped, tag = 'output window, operand 0']
    #allocation3 [shape = 's32[2]{0}', space=sflag, size = 0x8, scoped, tag = 'scoped memory for nat_block_2d.3']
    %17 = vsyncpa [#allocation3], 0
    %s18 = scalar_lea.sflag [#allocation3], 1
    %19 = vsyncpa %s18, 0
    loop: start=0, step=1, limit=4
    $region2: #{nat_block_2d.3} parent=1 // loop_pre_header
      _
    $region3: #{nat_block_2d.3} parent=1 // loop_header
      %s21 = sphi 0, %s25
      %p22 = scmp.ge.s32.totalorder %s21, 4
      %s28 = sphi 0, %s40
      %s29 = sphi 0, %s36
      %s30 = sphi 0, %s28
      %s31 = sphi 0, %s29
      %s32 = sphi 0, %s30
      %s33 = sphi 0, %s31
      %s43 = sphi 0, %s45
      %s46 = sphi 0, %s43
      %s47 = sphi 0, %s46
      %s63 = sphi 0, %s47
      %s71 = sphi 0, %s73
      %s74 = sphi 0, %s71
      %s75 = sphi 0, %s74
      %s91 = sphi 0, %s75
      %s97 = sphi 0, %s99
      %s100 = sphi 0, %s97
      %s101 = sphi 0, %s100
      %s117 = sphi 0, %s101
      %s125 = sphi 0, %s127
      %s128 = sphi 0, %s125
      %s129 = sphi 0, %s128
      %s145 = sphi 0, %s129
      %s149 = sphi 0, %s149
      %s151 = sphi 0, %s149
      %s152 = sphi 0, %s151
      %s166 = sphi 0, %s152
      %s170 = sphi 0, %s170
      %s172 = sphi 0, %s170
      %s173 = sphi 0, %s172
      %s187 = sphi 0, %s173
      %s191 = sphi 0, %s191
      %s193 = sphi 0, %s191
      %s194 = sphi 0, %s193
      %s208 = sphi 0, %s194
      %s212 = sphi 0, %s212
      %s214 = sphi 0, %s212
      %s215 = sphi 0, %s214
      %s229 = sphi 0, %s215
      %s233 = sphi 0, %s233
      %s235 = sphi 0, %s233
      %s236 = sphi 0, %s235
      %s250 = sphi 0, %s236
      %s254 = sphi 0, %s254
      %s256 = sphi 0, %s254
      %s257 = sphi 0, %s256
      %s271 = sphi 0, %s257
      %s275 = sphi 0, %s275
      %s277 = sphi 0, %s275
      %s278 = sphi 0, %s277
      %s292 = sphi 0, %s278
      %s296 = sphi 0, %s296
      %s298 = sphi 0, %s296
      %s299 = sphi 0, %s298
      %s313 = sphi 0, %s299
      %s321 = sphi 0, %s323
      %s324 = sphi 0, %s321
      %s325 = sphi 0, %s324
      %s341 = sphi 0, %s325
    $region4: #{nat_block_2d.3} parent=1 // loop_header_branch
      %24 = sbr.rel (%p22) target = $region8
    $region5: #{nat_block_2d.3} parent=1 // loop_body
      %s26 = ssub.s32 %s21, 1
      %s27 = ssub.s32 %s21, 2
      %s34 = sadd.s32 1, %s29
      %p35 = scmp.ge.s32.totalorder %s34, 2
      %s36 = scalar_select %p35, 0, %s34
      %s37 = sadd.s32 1, %s28
      %s38 = scalar_select %p35, %s37, %s28
      %p39 = scmp.ge.s32.totalorder %s38, 1
      %s40 = scalar_select %p39, 0, %s38
      %s41 = ssub.s32 %s28, %s40
      %p42 = scmp.eq.s32.totalorder %s41, 0
      %s44 = sadd.s32 %s43, 1
      %s45 = scalar_select %p42, %s43, %s44
      %p48 = pneg %p42
      %p49 = scmp.eq.s32.totalorder %s21, 1
      %p50 = por %p48, %p49
      %p51 = scmp.ne.s32.totalorder %s43, %s46
      %p52 = scmp.eq.s32.totalorder %s21, 0
      %p53 = por %p51, %p52
      %p54 = scmp.ne.s32.totalorder %s43, %s46
      %p55 = scmp.eq.s32.totalorder %s26, 1
      %p56 = por %p54, %p55
      %p57 = scmp.ne.s32.totalorder %s46, %s47
      %p58 = scmp.eq.s32.totalorder %s26, 0
      %p59 = por %p57, %p58
      %p60 = scmp.ne.s32.totalorder %s46, %s47
      %p61 = scmp.eq.s32.totalorder %s27, 1
      %p62 = por %p60, %p61
      %p64 = scmp.ne.s32.totalorder %s47, %s63
      %p65 = scmp.eq.s32.totalorder %s27, 0
      %p66 = por %p64, %p65
      %s67 = ssub.s32 %s29, %s36
      %s68 = ssub.s32 %s28, %s40
      %s69 = sor.u32 %s67, %s68
      %p70 = scmp.eq.s32.totalorder %s69, 0
      %s72 = sadd.s32 %s71, 1
      %s73 = scalar_select %p70, %s71, %s72
      %p76 = pneg %p70
      %p77 = scmp.eq.s32.totalorder %s21, 1
      %p78 = por %p76, %p77
      %p79 = scmp.ne.s32.totalorder %s71, %s74
      %p80 = scmp.eq.s32.totalorder %s21, 0
      %p81 = por %p79, %p80
      %p82 = scmp.ne.s32.totalorder %s71, %s74
      %p83 = scmp.eq.s32.totalorder %s26, 1
      %p84 = por %p82, %p83
      %p85 = scmp.ne.s32.totalorder %s74, %s75
      %p86 = scmp.eq.s32.totalorder %s26, 0
      %p87 = por %p85, %p86
      %p88 = scmp.ne.s32.totalorder %s74, %s75
      %p89 = scmp.eq.s32.totalorder %s27, 1
      %p90 = por %p88, %p89
      %p92 = scmp.ne.s32.totalorder %s75, %s91
      %p93 = scmp.eq.s32.totalorder %s27, 0
      %p94 = por %p92, %p93
      %s95 = ssub.s32 %s29, %s36
      %p96 = scmp.eq.s32.totalorder %s95, 0
      %s98 = sadd.s32 %s97, 1
      %s99 = scalar_select %p96, %s97, %s98
      %p102 = pneg %p96
      %p103 = scmp.eq.s32.totalorder %s21, 1
      %p104 = por %p102, %p103
      %p105 = scmp.ne.s32.totalorder %s97, %s100
      %p106 = scmp.eq.s32.totalorder %s21, 0
      %p107 = por %p105, %p106
      %p108 = scmp.ne.s32.totalorder %s97, %s100
      %p109 = scmp.eq.s32.totalorder %s26, 1
      %p110 = por %p108, %p109
      %p111 = scmp.ne.s32.totalorder %s100, %s101
      %p112 = scmp.eq.s32.totalorder %s26, 0
      %p113 = por %p111, %p112
      %p114 = scmp.ne.s32.totalorder %s100, %s101
      %p115 = scmp.eq.s32.totalorder %s27, 1
      %p116 = por %p114, %p115
      %p118 = scmp.ne.s32.totalorder %s101, %s117
      %p119 = scmp.eq.s32.totalorder %s27, 0
      %p120 = por %p118, %p119
      %s121 = ssub.s32 %s29, %s36
      %s122 = ssub.s32 %s28, %s40
      %s123 = sor.u32 %s121, %s122
      %p124 = scmp.eq.s32.totalorder %s123, 0
      %s126 = sadd.s32 %s125, 1
      %s127 = scalar_select %p124, %s125, %s126
      %p130 = pneg %p124
      %p131 = scmp.eq.s32.totalorder %s21, 1
      %p132 = por %p130, %p131
      %p133 = scmp.ne.s32.totalorder %s125, %s128
      %p134 = scmp.eq.s32.totalorder %s21, 0
      %p135 = por %p133, %p134
      %p136 = scmp.ne.s32.totalorder %s125, %s128
      %p137 = scmp.eq.s32.totalorder %s26, 1
      %p138 = por %p136, %p137
      %p139 = scmp.ne.s32.totalorder %s128, %s129
      %p140 = scmp.eq.s32.totalorder %s26, 0
      %p141 = por %p139, %p140
      %p142 = scmp.ne.s32.totalorder %s128, %s129
      %p143 = scmp.eq.s32.totalorder %s27, 1
      %p144 = por %p142, %p143
      %p146 = scmp.ne.s32.totalorder %s129, %s145
      %p147 = scmp.eq.s32.totalorder %s27, 0
      %p148 = por %p146, %p147
      %s150 = sadd.s32 %s149, 1
      %p153 = scmp.eq.s32.totalorder %s21, 1
      %p154 = scmp.ne.s32.totalorder %s149, %s151
      %p155 = scmp.eq.s32.totalorder %s21, 0
      %p156 = por %p154, %p155
      %p157 = scmp.ne.s32.totalorder %s149, %s151
      %p158 = scmp.eq.s32.totalorder %s26, 1
      %p159 = por %p157, %p158
      %p160 = scmp.ne.s32.totalorder %s151, %s152
      %p161 = scmp.eq.s32.totalorder %s26, 0
      %p162 = por %p160, %p161
      %p163 = scmp.ne.s32.totalorder %s151, %s152
      %p164 = scmp.eq.s32.totalorder %s27, 1
      %p165 = por %p163, %p164
      %p167 = scmp.ne.s32.totalorder %s152, %s166
      %p168 = scmp.eq.s32.totalorder %s27, 0
      %p169 = por %p167, %p168
      %s171 = sadd.s32 %s170, 1
      %p174 = scmp.eq.s32.totalorder %s21, 1
      %p175 = scmp.ne.s32.totalorder %s170, %s172
      %p176 = scmp.eq.s32.totalorder %s21, 0
      %p177 = por %p175, %p176
      %p178 = scmp.ne.s32.totalorder %s170, %s172
      %p179 = scmp.eq.s32.totalorder %s26, 1
      %p180 = por %p178, %p179
      %p181 = scmp.ne.s32.totalorder %s172, %s173
      %p182 = scmp.eq.s32.totalorder %s26, 0
      %p183 = por %p181, %p182
      %p184 = scmp.ne.s32.totalorder %s172, %s173
      %p185 = scmp.eq.s32.totalorder %s27, 1
      %p186 = por %p184, %p185
      %p188 = scmp.ne.s32.totalorder %s173, %s187
      %p189 = scmp.eq.s32.totalorder %s27, 0
      %p190 = por %p188, %p189
      %s192 = sadd.s32 %s191, 1
      %p195 = scmp.eq.s32.totalorder %s21, 1
      %p196 = scmp.ne.s32.totalorder %s191, %s193
      %p197 = scmp.eq.s32.totalorder %s21, 0
      %p198 = por %p196, %p197
      %p199 = scmp.ne.s32.totalorder %s191, %s193
      %p200 = scmp.eq.s32.totalorder %s26, 1
      %p201 = por %p199, %p200
      %p202 = scmp.ne.s32.totalorder %s193, %s194
      %p203 = scmp.eq.s32.totalorder %s26, 0
      %p204 = por %p202, %p203
      %p205 = scmp.ne.s32.totalorder %s193, %s194
      %p206 = scmp.eq.s32.totalorder %s27, 1
      %p207 = por %p205, %p206
      %p209 = scmp.ne.s32.totalorder %s194, %s208
      %p210 = scmp.eq.s32.totalorder %s27, 0
      %p211 = por %p209, %p210
      %s213 = sadd.s32 %s212, 1
      %p216 = scmp.eq.s32.totalorder %s21, 1
      %p217 = scmp.ne.s32.totalorder %s212, %s214
      %p218 = scmp.eq.s32.totalorder %s21, 0
      %p219 = por %p217, %p218
      %p220 = scmp.ne.s32.totalorder %s212, %s214
      %p221 = scmp.eq.s32.totalorder %s26, 1
      %p222 = por %p220, %p221
      %p223 = scmp.ne.s32.totalorder %s214, %s215
      %p224 = scmp.eq.s32.totalorder %s26, 0
      %p225 = por %p223, %p224
      %p226 = scmp.ne.s32.totalorder %s214, %s215
      %p227 = scmp.eq.s32.totalorder %s27, 1
      %p228 = por %p226, %p227
      %p230 = scmp.ne.s32.totalorder %s215, %s229
      %p231 = scmp.eq.s32.totalorder %s27, 0
      %p232 = por %p230, %p231
      %s234 = sadd.s32 %s233, 1
      %p237 = scmp.eq.s32.totalorder %s21, 1
      %p238 = scmp.ne.s32.totalorder %s233, %s235
      %p239 = scmp.eq.s32.totalorder %s21, 0
      %p240 = por %p238, %p239
      %p241 = scmp.ne.s32.totalorder %s233, %s235
      %p242 = scmp.eq.s32.totalorder %s26, 1
      %p243 = por %p241, %p242
      %p244 = scmp.ne.s32.totalorder %s235, %s236
      %p245 = scmp.eq.s32.totalorder %s26, 0
      %p246 = por %p244, %p245
      %p247 = scmp.ne.s32.totalorder %s235, %s236
      %p248 = scmp.eq.s32.totalorder %s27, 1
      %p249 = por %p247, %p248
      %p251 = scmp.ne.s32.totalorder %s236, %s250
      %p252 = scmp.eq.s32.totalorder %s27, 0
      %p253 = por %p251, %p252
      %s255 = sadd.s32 %s254, 1
      %p258 = scmp.eq.s32.totalorder %s21, 1
      %p259 = scmp.ne.s32.totalorder %s254, %s256
      %p260 = scmp.eq.s32.totalorder %s21, 0
      %p261 = por %p259, %p260
      %p262 = scmp.ne.s32.totalorder %s254, %s256
      %p263 = scmp.eq.s32.totalorder %s26, 1
      %p264 = por %p262, %p263
      %p265 = scmp.ne.s32.totalorder %s256, %s257
      %p266 = scmp.eq.s32.totalorder %s26, 0
      %p267 = por %p265, %p266
      %p268 = scmp.ne.s32.totalorder %s256, %s257
      %p269 = scmp.eq.s32.totalorder %s27, 1
      %p270 = por %p268, %p269
      %p272 = scmp.ne.s32.totalorder %s257, %s271
      %p273 = scmp.eq.s32.totalorder %s27, 0
      %p274 = por %p272, %p273
      %s276 = sadd.s32 %s275, 1
      %p279 = scmp.eq.s32.totalorder %s21, 1
      %p280 = scmp.ne.s32.totalorder %s275, %s277
      %p281 = scmp.eq.s32.totalorder %s21, 0
      %p282 = por %p280, %p281
      %p283 = scmp.ne.s32.totalorder %s275, %s277
      %p284 = scmp.eq.s32.totalorder %s26, 1
      %p285 = por %p283, %p284
      %p286 = scmp.ne.s32.totalorder %s277, %s278
      %p287 = scmp.eq.s32.totalorder %s26, 0
      %p288 = por %p286, %p287
      %p289 = scmp.ne.s32.totalorder %s277, %s278
      %p290 = scmp.eq.s32.totalorder %s27, 1
      %p291 = por %p289, %p290
      %p293 = scmp.ne.s32.totalorder %s278, %s292
      %p294 = scmp.eq.s32.totalorder %s27, 0
      %p295 = por %p293, %p294
      %s297 = sadd.s32 %s296, 1
      %p300 = scmp.eq.s32.totalorder %s21, 1
      %p301 = scmp.ne.s32.totalorder %s296, %s298
      %p302 = scmp.eq.s32.totalorder %s21, 0
      %p303 = por %p301, %p302
      %p304 = scmp.ne.s32.totalorder %s296, %s298
      %p305 = scmp.eq.s32.totalorder %s26, 1
      %p306 = por %p304, %p305
      %p307 = scmp.ne.s32.totalorder %s298, %s299
      %p308 = scmp.eq.s32.totalorder %s26, 0
      %p309 = por %p307, %p308
      %p310 = scmp.ne.s32.totalorder %s298, %s299
      %p311 = scmp.eq.s32.totalorder %s27, 1
      %p312 = por %p310, %p311
      %p314 = scmp.ne.s32.totalorder %s299, %s313
      %p315 = scmp.eq.s32.totalorder %s27, 0
      %p316 = por %p314, %p315
      %s317 = ssub.s32 %s29, %s36
      %s318 = ssub.s32 %s28, %s40
      %s319 = sor.u32 %s317, %s318
      %p320 = scmp.eq.s32.totalorder %s319, 0
      %s322 = sadd.s32 %s321, 1
      %s323 = scalar_select %p320, %s321, %s322
      %p326 = pneg %p320
      %p327 = scmp.eq.s32.totalorder %s21, 1
      %p328 = por %p326, %p327
      %p329 = scmp.ne.s32.totalorder %s321, %s324
      %p330 = scmp.eq.s32.totalorder %s21, 0
      %p331 = por %p329, %p330
      %p332 = scmp.ne.s32.totalorder %s321, %s324
      %p333 = scmp.eq.s32.totalorder %s26, 1
      %p334 = por %p332, %p333
      %p335 = scmp.ne.s32.totalorder %s324, %s325
      %p336 = scmp.eq.s32.totalorder %s26, 0
      %p337 = por %p335, %p336
      %p338 = scmp.ne.s32.totalorder %s324, %s325
      %p339 = scmp.eq.s32.totalorder %s27, 1
      %p340 = por %p338, %p339
      %p342 = scmp.ne.s32.totalorder %s325, %s341
      %p343 = scmp.eq.s32.totalorder %s27, 0
      %p344 = por %p342, %p343
      %p345 = scmp.le.s32.totalorder 1, %s21
      %p346 = scmp.lt.s32.totalorder %s21, 3
      %p347 = pnand %p345, %p346
      %p348 = pneg %p347
      // Predicated region
      $region9: #{nat_block_2d.3} parent=5 // pred_check
        _
      $region10: #{nat_block_2d.3} parent=5 // pred_check_branch
        %350 = sbr.rel (%p347) target = $region12
      $region11: #{nat_block_2d.3} parent=5 // pred_region
        %s351 = ssub.s32 %s21, 1
        // Predicated region
        $region13: #{nat_block_2d.3} parent=11 // pred_check
          %p352 = pneg %p59
        $region14: #{nat_block_2d.3} parent=11 // pred_check_branch
          %354 = sbr.rel (%p352) target = $region16
        $region15: #{nat_block_2d.3} parent=11 // pred_region
          %s355 = smul.u32 8, %s30
          %p356 = scmp.lt.s32.totalorder %s355, 7
          %s357 = scalar_select %p356, %s355, 7
          %s358 = smul.addr %s357, 4
          %s359 = scalar_lea.vmem %s0, %s358
          %s360 = smul.u32 8, %s30
        $region16: #{nat_block_2d.3} parent=11 // pred_fallthru
          _
        // Predicated region
        $region17: #{nat_block_2d.3} parent=11 // pred_check
          %p361 = pneg %p162
        $region18: #{nat_block_2d.3} parent=11 // pred_check_branch
          %363 = sbr.rel (%p361) target = $region20
        $region19: #{nat_block_2d.3} parent=11 // pred_region
          _
        $region20: #{nat_block_2d.3} parent=11 // pred_fallthru
          _
        // Predicated region
        $region21: #{nat_block_2d.3} parent=11 // pred_check
          %p364 = pneg %p183
        $region22: #{nat_block_2d.3} parent=11 // pred_check_branch
          %366 = sbr.rel (%p364) target = $region24
        $region23: #{nat_block_2d.3} parent=11 // pred_region
          _
        $region24: #{nat_block_2d.3} parent=11 // pred_fallthru
          _
        // Predicated region
        $region25: #{nat_block_2d.3} parent=11 // pred_check
          %p367 = pneg %p204
        $region26: #{nat_block_2d.3} parent=11 // pred_check_branch
          %369 = sbr.rel (%p367) target = $region28
        $region27: #{nat_block_2d.3} parent=11 // pred_region
          _
        $region28: #{nat_block_2d.3} parent=11 // pred_fallthru
          _
        // Predicated region
        $region29: #{nat_block_2d.3} parent=11 // pred_check
          %p370 = pneg %p225
        $region30: #{nat_block_2d.3} parent=11 // pred_check_branch
          %372 = sbr.rel (%p370) target = $region32
        $region31: #{nat_block_2d.3} parent=11 // pred_region
          _
        $region32: #{nat_block_2d.3} parent=11 // pred_fallthru
          _
        // Predicated region
        $region33: #{nat_block_2d.3} parent=11 // pred_check
          %p373 = pneg %p246
        $region34: #{nat_block_2d.3} parent=11 // pred_check_branch
          %375 = sbr.rel (%p373) target = $region36
        $region35: #{nat_block_2d.3} parent=11 // pred_region
          _
        $region36: #{nat_block_2d.3} parent=11 // pred_fallthru
          _
        // Predicated region
        $region37: #{nat_block_2d.3} parent=11 // pred_check
          %p376 = pneg %p267
        $region38: #{nat_block_2d.3} parent=11 // pred_check_branch
          %378 = sbr.rel (%p376) target = $region40
        $region39: #{nat_block_2d.3} parent=11 // pred_region
          _
        $region40: #{nat_block_2d.3} parent=11 // pred_fallthru
          _
        // Predicated region
        $region41: #{nat_block_2d.3} parent=11 // pred_check
          %p379 = pneg %p288
        $region42: #{nat_block_2d.3} parent=11 // pred_check_branch
          %381 = sbr.rel (%p379) target = $region44
        $region43: #{nat_block_2d.3} parent=11 // pred_region
          _
        $region44: #{nat_block_2d.3} parent=11 // pred_fallthru
          _
        // Predicated region
        $region45: #{nat_block_2d.3} parent=11 // pred_check
          %p382 = pneg %p309
        $region46: #{nat_block_2d.3} parent=11 // pred_check_branch
          %384 = sbr.rel (%p382) target = $region48
        $region47: #{nat_block_2d.3} parent=11 // pred_region
          _
        $region48: #{nat_block_2d.3} parent=11 // pred_fallthru
          _
      $region12: #{nat_block_2d.3} parent=5 // pred_fallthru
        _
      %p385 = scmp.lt.s32.totalorder %s21, 2
      // Predicated region
      $region49: #{nat_block_2d.3} parent=5 // pred_check
        %p386 = pneg %p385
      $region50: #{nat_block_2d.3} parent=5 // pred_check_branch
        %388 = sbr.rel (%p386) target = $region52
      $region51: #{nat_block_2d.3} parent=5 // pred_region
        // Predicated region
        $region53: #{nat_block_2d.3} parent=51 // pred_check
          %p389 = pneg %p81
        $region54: #{nat_block_2d.3} parent=51 // pred_check_branch
          %391 = sbr.rel (%p389) target = $region56
        $region55: #{nat_block_2d.3} parent=51 // pred_region
          %s392 = smul.u32 8, %s28
          %p393 = scmp.lt.s32.totalorder %s29, 1
          %s394 = scalar_select %p393, %s29, 1
          %p395 = scmp.lt.s32.totalorder %s392, 7
          %s396 = scalar_select %p395, %s392, 7
          %s397 = smul.addr %s394, 8
          %s398 = sadd.s32 %s396, %s397
          %s399 = smul.addr %s398, 4
          %s400 = scalar_lea.vmem %s1, %s399
          %s401 = smul.u32 8, %s28
        $region56: #{nat_block_2d.3} parent=51 // pred_fallthru
          _
        // Predicated region
        $region57: #{nat_block_2d.3} parent=51 // pred_check
          %p402 = pneg %p107
        $region58: #{nat_block_2d.3} parent=51 // pred_check_branch
          %404 = sbr.rel (%p402) target = $region60
        $region59: #{nat_block_2d.3} parent=51 // pred_region
          %p405 = scmp.lt.s32.totalorder %s29, 1
          %s406 = scalar_select %p405, %s29, 1
          %s407 = smul.addr %s406, 8
          %s408 = smul.addr %s407, 4
          %s409 = scalar_lea.vmem %s2, %s408
        $region60: #{nat_block_2d.3} parent=51 // pred_fallthru
          _
        // Predicated region
        $region61: #{nat_block_2d.3} parent=51 // pred_check
          %p410 = pneg %p135
        $region62: #{nat_block_2d.3} parent=51 // pred_check_branch
          %412 = sbr.rel (%p410) target = $region64
        $region63: #{nat_block_2d.3} parent=51 // pred_region
          %s413 = smul.u32 8, %s28
          %p414 = scmp.lt.s32.totalorder %s29, 1
          %s415 = scalar_select %p414, %s29, 1
          %p416 = scmp.lt.s32.totalorder %s413, 7
          %s417 = scalar_select %p416, %s413, 7
          %s418 = smul.addr %s415, 8
          %s419 = sadd.s32 %s417, %s418
          %s420 = smul.addr %s419, 8
          %s421 = scalar_lea.vmem %s3, %s420
          %s422 = smul.u32 8, %s28
        $region64: #{nat_block_2d.3} parent=51 // pred_fallthru
          _
      $region52: #{nat_block_2d.3} parent=5 // pred_fallthru
        _
      %p423 = scmp.le.s32.totalorder 1, %s21
      %p424 = scmp.lt.s32.totalorder %s21, 3
      %p425 = pnand %p423, %p424
      %p426 = pneg %p425
      // Predicated region
      $region65: #{nat_block_2d.3} parent=5 // pred_check
        _
      $region66: #{nat_block_2d.3} parent=5 // pred_check_branch
        %428 = sbr.rel (%p425) target = $region68
      $region67: #{nat_block_2d.3} parent=5 // pred_region
        %s429 = ssub.s32 %s21, 1
        %s430 = smul.u32 8, %s30
        %p431 = scmp.lt.s32.totalorder %s430, 7
        %s432 = scalar_select %p431, %s430, 7
        %s433 = smul.addr %s432, 4
        %s434 = scalar_lea.vmem %s0, %s433
        %p435 = pneg %p59
        %p436 = pneg %p56
        %s437 = smul.u32 8, %s30
        %p438 = scmp.lt.s32.totalorder %s31, 1
        %s439 = scalar_select %p438, %s31, 1
        %p440 = scmp.lt.s32.totalorder %s437, 7
        %s441 = scalar_select %p440, %s437, 7
        %s442 = smul.addr %s439, 8
        %s443 = sadd.s32 %s441, %s442
        %s444 = smul.addr %s443, 4
        %s445 = scalar_lea.vmem %s1, %s444
        %p446 = pneg %p87
        %p447 = pneg %p84
        %p448 = scmp.lt.s32.totalorder %s31, 1
        %s449 = scalar_select %p448, %s31, 1
        %s450 = smul.addr %s449, 8
        %s451 = smul.addr %s450, 4
        %s452 = scalar_lea.vmem %s2, %s451
        %p453 = pneg %p113
        %p454 = pneg %p110
        %s455 = smul.u32 8, %s30
        %p456 = scmp.lt.s32.totalorder %s31, 1
        %s457 = scalar_select %p456, %s31, 1
        %p458 = scmp.lt.s32.totalorder %s455, 7
        %s459 = scalar_select %p458, %s455, 7
        %s460 = smul.addr %s457, 8
        %s461 = sadd.s32 %s459, %s460
        %s462 = smul.addr %s461, 8
        %s463 = scalar_lea.vmem %s3, %s462
        %p464 = pneg %p141
        %p465 = pneg %p138
        %p466 = pneg %p162
        %p467 = pneg %p159
        %p468 = pneg %p183
        %p469 = pneg %p180
        %p470 = pneg %p204
        %p471 = pneg %p201
        %p472 = pneg %p225
        %p473 = pneg %p222
        %p474 = pneg %p246
        %p475 = pneg %p243
        %p476 = pneg %p267
        %p477 = pneg %p264
        %p478 = pneg %p288
        %p479 = pneg %p285
        %p480 = pneg %p309
        %p481 = pneg %p306
        %p482 = pneg %p337
        %p483 = pneg %p334
        %s484 = sand.u32 %s324, 1
        %s485 = scalar_lea.sflag [#allocation3], %s484
        %s486 = sand.u32 %s324, 1
        %s487 = smul.addr %s486, 64
        %s488 = scalar_lea.vmem [#allocation2], %s487
        %s489 = smul.u32 8, %s30
        %p490 = scmp.lt.s32.totalorder %s489, 7
        %s491 = scalar_select %p490, %s489, 7
        %s492 = smul.addr %s491, 4
        %s493 = scalar_lea.vmem %s0, %s492
        %s494 = smul.u32 8, %s30
        %s495 = smul.u32 8, %s30
        %p496 = scmp.lt.s32.totalorder %s31, 1
        %s497 = scalar_select %p496, %s31, 1
        %p498 = scmp.lt.s32.totalorder %s495, 7
        %s499 = scalar_select %p498, %s495, 7
        %s500 = smul.addr %s497, 8
        %s501 = sadd.s32 %s499, %s500
        %s502 = smul.addr %s501, 4
        %s503 = scalar_lea.vmem %s1, %s502
        %s504 = smul.u32 8, %s30
        %p505 = scmp.lt.s32.totalorder %s31, 1
        %s506 = scalar_select %p505, %s31, 1
        %s507 = smul.addr %s506, 8
        %s508 = smul.addr %s507, 4
        %s509 = scalar_lea.vmem %s2, %s508
        %s510 = smul.u32 8, %s30
        %p511 = scmp.lt.s32.totalorder %s31, 1
        %s512 = scalar_select %p511, %s31, 1
        %p513 = scmp.lt.s32.totalorder %s510, 7
        %s514 = scalar_select %p513, %s510, 7
        %s515 = smul.addr %s512, 8
        %s516 = sadd.s32 %s514, %s515
        %s517 = smul.addr %s516, 8
        %s518 = scalar_lea.vmem %s3, %s517
        %s519 = smul.u32 8, %s30
        %s520 = smul.u32 8, %s30
        %v522 = vld [vmem:[%s503] sm:$0xf]
        %v523 = vld [vmem:[%s503 + $0x4] sm:$0xf]
        %v524 = vld [vmem:[%s503 + $0x8] sm:$0xf]
        %v525 = vld [vmem:[%s503 + $0xc] sm:$0xf]
        %v526 = vld [vmem:[%s503 + $0x10] sm:$0xf]
        %v527 = vld [vmem:[%s503 + $0x14] sm:$0xf]
        %v528 = vld [vmem:[%s503 + $0x18] sm:$0xf]
        %v529 = vld [vmem:[%s503 + $0x1c] sm:$0xf]
        %v530 = vld [vmem:[%s509] sm:$0xf]
        %v531 = vld [vmem:[%s509 + $0x4] sm:$0xf]
        %v532 = vld [vmem:[%s509 + $0x8] sm:$0xf]
        %v533 = vld [vmem:[%s509 + $0xc] sm:$0xf]
        %v534 = vld [vmem:[%s509 + $0x10] sm:$0xf]
        %v535 = vld [vmem:[%s509 + $0x14] sm:$0xf]
        %v536 = vld [vmem:[%s509 + $0x18] sm:$0xf]
        %v537 = vld [vmem:[%s509 + $0x1c] sm:$0xf]
        %v538 = vld [vmem:[%s4] sm:$0xf]
        %v539 = vld [vmem:[%s4 + $0x4] sm:$0xf]
        %v540 = vld [vmem:[%s4 + $0x8] sm:$0xf]
        %v541 = vld [vmem:[%s4 + $0xc] sm:$0xf]
        %v550 = vunpack.c.l.b16 %v522
        %v551 = vunpack.c.l.b16 %v523
        %v552 = vunpack.c.l.b16 %v524
        %v553 = vunpack.c.l.b16 %v525
        %v554 = vunpack.c.l.b16 %v526
        %v555 = vunpack.c.l.b16 %v527
        %v556 = vunpack.c.l.b16 %v528
        %v557 = vunpack.c.l.b16 %v529
        %v558 = vpack.c.b16 %v551, %v550
        %v559 = vpack.c.b16 %v553, %v552
        %v560 = vpack.c.b16 %v555, %v554
        %v561 = vpack.c.b16 %v557, %v556
        %v570 = vunpack.c.l.b16 %v530
        %v571 = vunpack.c.l.b16 %v531
        %v572 = vunpack.c.l.b16 %v532
        %v573 = vunpack.c.l.b16 %v533
        %v574 = vunpack.c.l.b16 %v534
        %v575 = vunpack.c.l.b16 %v535
        %v576 = vunpack.c.l.b16 %v536
        %v577 = vunpack.c.l.b16 %v537
        %v578 = vpack.c.b16 %v571, %v570
        %v579 = vpack.c.b16 %v573, %v572
        %v580 = vpack.c.b16 %v575, %v574
        %v581 = vpack.c.b16 %v577, %v576
        %vm582 = vcmask 64512
        %v584 = vsel %vm582, %v558, 0
        %v587 = vsel %vm582, %v559, 0
        %v590 = vsel %vm582, %v560, 0
        %v593 = vsel %vm582, %v561, 0
        %v596 = vsel %vm582, %v578, 0
        %v599 = vsel %vm582, %v579, 0
        %v602 = vsel %vm582, %v580, 0
        %v605 = vsel %vm582, %v581, 0
        %607 = vmatprep.subr.bf16.mxu0 0
        %608 = vmatpush1.bf16.xpose.msra.mxu0 0
        %609 = vmatprep.subr.bf16.mxu0 0
        %610 = vmatpush1.bf16.xpose.msra.mxu0 0
        %611 = vmatprep.subr.bf16.mxu0 0
        %612 = vmatpush1.bf16.xpose.msra.mxu0 0
        %613 = vmatprep.subr.bf16.mxu0 0
        %614 = vmatpush1.bf16.xpose.msra.mxu0 0
        %615 = vmatprep.subr.bf16.mxu0 0
        %616 = vmatpush1.bf16.xpose.msra.mxu0 %v605
        %617 = vmatprep.subr.bf16.mxu0 0
        %618 = vmatpush1.bf16.xpose.msra.mxu0 %v602
        %619 = vmatprep.subr.bf16.mxu0 0
        %620 = vmatpush1.bf16.xpose.msra.mxu0 %v599
        %621 = vmatprep.subr.bf16.mxu0 0
        %622 = vmatpush1.bf16.xpose.msra.mxu0 %v596
        %623 = vmatprep.subr.bf16.mxu0 0
        %624 = vmatpush2.bf16.xpose.msra.mxu0 0
        %625 = vmatprep.subr.bf16.mxu0 0
        %626 = vmatpush2.bf16.xpose.msra.mxu0 0
        %627 = vmatprep.subr.bf16.mxu0 0
        %628 = vmatpush2.bf16.xpose.msra.mxu0 0
        %629 = vmatprep.subr.bf16.mxu0 0
        %630 = vmatpush2.bf16.xpose.msra.mxu0 0
        %631 = vmatprep.subr.bf16.mxu0 0
        %632 = vmatpush2.bf16.xpose.msra.mxu0 0
        %633 = vmatprep.subr.bf16.mxu0 0
        %634 = vmatpush2.bf16.xpose.msra.mxu0 0
        %635 = vmatprep.subr.bf16.mxu0 0
        %636 = vmatpush2.bf16.xpose.msra.mxu0 0
        %637 = vmatprep.subr.bf16.mxu0 0
        %638 = vmatpush2.bf16.xpose.msra.mxu0 0
        %639 = vmatprep.mubr.bf16.mxu0 0
        %640 = vmatmul.mubr.bf16.gmra.mxu0 %v584
        %v641 = vpop.f32.mrf.mxu0
        %v642 = vadd.f32 0.0, %v641
        %v643 = vpop.f32.mrf.mxu0
        %v644 = vpop.f32.mrf.mxu0
        %v645 = vadd.f32 0.0, %v644
        %v646 = vpop.f32.mrf.mxu0
        %647 = vmatprep.mubr.bf16.mxu0 0
        %648 = vmatmul.mubr.bf16.gmra.mxu0 %v587
        %v649 = vpop.f32.mrf.mxu0
        %v650 = vadd.f32 0.0, %v649
        %v651 = vpop.f32.mrf.mxu0
        %v652 = vpop.f32.mrf.mxu0
        %v653 = vadd.f32 0.0, %v652
        %v654 = vpop.f32.mrf.mxu0
        %655 = vmatprep.mubr.bf16.mxu0 0
        %656 = vmatmul.mubr.bf16.gmra.mxu0 %v590
        %v657 = vpop.f32.mrf.mxu0
        %v658 = vadd.f32 0.0, %v657
        %v659 = vpop.f32.mrf.mxu0
        %v660 = vpop.f32.mrf.mxu0
        %v661 = vadd.f32 0.0, %v660
        %v662 = vpop.f32.mrf.mxu0
        %663 = vmatprep.mubr.bf16.mxu0 0
        %664 = vmatmul.mubr.bf16.gmra.mxu0 %v593
        %v665 = vpop.f32.mrf.mxu0
        %v666 = vadd.f32 0.0, %v665
        %v667 = vpop.f32.mrf.mxu0
        %v668 = vpop.f32.mrf.mxu0
        %v669 = vadd.f32 0.0, %v668
        %v670 = vpop.f32.mrf.mxu0
        %671 = vdwg.mxu0
        %v672 = vmul.f32 %v642, 0.35355338
        %v673 = vmul.f32 %v645, 0.35355338
        %v674 = vmul.f32 %v650, 0.35355338
        %v675 = vmul.f32 %v653, 0.35355338
        %v676 = vmul.f32 %v658, 0.35355338
        %v677 = vmul.f32 %v661, 0.35355338
        %v678 = vmul.f32 %v666, 0.35355338
        %v679 = vmul.f32 %v669, 0.35355338
        %v680 = vld [vmem:[%s493] sm:$0xf]
        %v681 = vld [vmem:[%s493 + $0x4] sm:$0xf]
        %v682 = vld [vmem:[%s493 + $0x8] sm:$0xf]
        %v683 = vld [vmem:[%s493 + $0xc] sm:$0xf]
        %v684 = vld [vmem:[%s493 + $0x10] sm:$0xf]
        %v685 = vld [vmem:[%s493 + $0x14] sm:$0xf]
        %v686 = vld [vmem:[%s493 + $0x18] sm:$0xf]
        %v687 = vld [vmem:[%s493 + $0x1c] sm:$0xf]
        %v688 = vunpack.c.l.bf16 %v680
        %v689 = vunpack.c.l.bf16 %v681
        %v690 = vunpack.c.l.bf16 %v682
        %v691 = vunpack.c.l.bf16 %v683
        %v692 = vunpack.c.l.bf16 %v684
        %v693 = vunpack.c.l.bf16 %v685
        %v694 = vunpack.c.l.bf16 %v686
        %v695 = vunpack.c.l.bf16 %v687
        %v696 = vadd.f32 %v672, %v688
        %v697 = vadd.f32 %v673, %v689
        %v698 = vadd.f32 %v674, %v690
        %v699 = vadd.f32 %v675, %v691
        %v700 = vadd.f32 %v676, %v692
        %v701 = vadd.f32 %v677, %v693
        %v702 = vadd.f32 %v678, %v694
        %v703 = vadd.f32 %v679, %v695
        %vm704 = vcmask 523264
        %v705 = vsel %vm704, %v696, -inf
        %706 = vmax.xlane.f32.xlu0 %v705
        %v707 = vpop.xlane.xlu0 %706
        %v708 = vsel %vm704, %v697, -inf
        %709 = vmax.xlane.f32.xlu0 %v708
        %v710 = vpop.xlane.xlu0 %709
        %v711 = vsel %vm704, %v698, -inf
        %712 = vmax.xlane.f32.xlu0 %v711
        %v713 = vpop.xlane.xlu0 %712
        %v714 = vsel %vm704, %v699, -inf
        %715 = vmax.xlane.f32.xlu0 %v714
        %v716 = vpop.xlane.xlu0 %715
        %v717 = vsel %vm704, %v700, -inf
        %718 = vmax.xlane.f32.xlu0 %v717
        %v719 = vpop.xlane.xlu0 %718
        %v720 = vsel %vm704, %v701, -inf
        %721 = vmax.xlane.f32.xlu0 %v720
        %v722 = vpop.xlane.xlu0 %721
        %v723 = vsel %vm704, %v702, -inf
        %724 = vmax.xlane.f32.xlu0 %v723
        %v725 = vpop.xlane.xlu0 %724
        %v726 = vsel %vm704, %v703, -inf
        %727 = vmax.xlane.f32.xlu0 %v726
        %v728 = vpop.xlane.xlu0 %727
        %v729 = vsub.f32 %v696, %v707
        %v730 = vsub.f32 %v697, %v710
        %v731 = vsub.f32 %v698, %v713
        %v732 = vsub.f32 %v699, %v716
        %v733 = vsub.f32 %v700, %v719
        %v734 = vsub.f32 %v701, %v722
        %v735 = vsub.f32 %v702, %v725
        %v736 = vsub.f32 %v703, %v728
        %v737 = vmul.f32 %v729, 1.442695
        %v738 = vpow.pop %v737
        %v739 = vmul.f32 %v730, 1.442695
        %v740 = vpow.pop %v739
        %v741 = vmul.f32 %v731, 1.442695
        %v742 = vpow.pop %v741
        %v743 = vmul.f32 %v732, 1.442695
        %v744 = vpow.pop %v743
        %v745 = vmul.f32 %v733, 1.442695
        %v746 = vpow.pop %v745
        %v747 = vmul.f32 %v734, 1.442695
        %v748 = vpow.pop %v747
        %v749 = vmul.f32 %v735, 1.442695
        %v750 = vpow.pop %v749
        %v751 = vmul.f32 %v736, 1.442695
        %v752 = vpow.pop %v751
        %v753 = vsel %vm704, %v738, 0.0
        %754 = vadd.xlane.f32.xlu0 %v753
        %v755 = vpop.xlane.xlu0 %754
        %v756 = vsel %vm704, %v740, 0.0
        %757 = vadd.xlane.f32.xlu0 %v756
        %v758 = vpop.xlane.xlu0 %757
        %v759 = vsel %vm704, %v742, 0.0
        %760 = vadd.xlane.f32.xlu0 %v759
        %v761 = vpop.xlane.xlu0 %760
        %v762 = vsel %vm704, %v744, 0.0
        %763 = vadd.xlane.f32.xlu0 %v762
        %v764 = vpop.xlane.xlu0 %763
        %v765 = vsel %vm704, %v746, 0.0
        %766 = vadd.xlane.f32.xlu0 %v765
        %v767 = vpop.xlane.xlu0 %766
        %v768 = vsel %vm704, %v748, 0.0
        %769 = vadd.xlane.f32.xlu0 %v768
        %v770 = vpop.xlane.xlu0 %769
        %v771 = vsel %vm704, %v750, 0.0
        %772 = vadd.xlane.f32.xlu0 %v771
        %v773 = vpop.xlane.xlu0 %772
        %v774 = vsel %vm704, %v752, 0.0
        %775 = vadd.xlane.f32.xlu0 %v774
        %v776 = vpop.xlane.xlu0 %775
        %v777 = vrcp.pop %v755
        %v778 = vrcp.pop %v758
        %v779 = vrcp.pop %v761
        %v780 = vrcp.pop %v764
        %v781 = vrcp.pop %v767
        %v782 = vrcp.pop %v770
        %v783 = vrcp.pop %v773
        %v784 = vrcp.pop %v776
        %v785 = vmul.f32 %v738, %v777
        %v786 = vmul.f32 %v740, %v778
        %v787 = vmul.f32 %v742, %v779
        %v788 = vmul.f32 %v744, %v780
        %v789 = vmul.f32 %v746, %v781
        %v790 = vmul.f32 %v748, %v782
        %v791 = vmul.f32 %v750, %v783
        %v792 = vmul.f32 %v752, %v784
        %v793 = vpack.c.bf16 %v786, %v785
        %v794 = vpack.c.bf16 %v788, %v787
        %v795 = vpack.c.bf16 %v790, %v789
        %v796 = vpack.c.bf16 %v792, %v791
        %797 = vrot.lane.b32.xlu0 %v578, 96
        %v798 = vpop.permute.xlu0 %797
        %799 = vrot.lane.b32.xlu0 %v579, 96
        %v800 = vpop.permute.xlu0 %799
        %801 = vrot.lane.b32.xlu0 %v580, 96
        %v802 = vpop.permute.xlu0 %801
        %803 = vrot.lane.b32.xlu0 %v581, 96
        %v804 = vpop.permute.xlu0 %803
        %v810 = vsel %vm704, %v793, 0
        %v813 = vsel %vm704, %v794, 0
        %v816 = vsel %vm704, %v795, 0
        %v819 = vsel %vm704, %v796, 0
        %821 = vmatprep.subr.bf16.mxu0 0
        %822 = vmatpush1.bf16.msra.mxu0 0
        %823 = vmatprep.subr.bf16.mxu0 0
        %824 = vmatpush1.bf16.msra.mxu0 0
        %825 = vmatprep.subr.bf16.mxu0 0
        %826 = vmatpush1.bf16.msra.mxu0 0
        %827 = vmatprep.subr.bf16.mxu0 0
        %828 = vmatpush1.bf16.msra.mxu0 0
        %829 = vmatprep.subr.bf16.mxu0 0
        %830 = vmatpush1.bf16.msra.mxu0 %v804
        %831 = vmatprep.subr.bf16.mxu0 0
        %832 = vmatpush1.bf16.msra.mxu0 %v802
        %833 = vmatprep.subr.bf16.mxu0 0
        %834 = vmatpush1.bf16.msra.mxu0 %v800
        %835 = vmatprep.subr.bf16.mxu0 0
        %836 = vmatpush1.bf16.msra.mxu0 %v798
        %837 = vmatprep.subr.bf16.mxu0 0
        %838 = vmatpush2.bf16.msra.mxu0 0
        %839 = vmatprep.subr.bf16.mxu0 0
        %840 = vmatpush2.bf16.msra.mxu0 0
        %841 = vmatprep.subr.bf16.mxu0 0
        %842 = vmatpush2.bf16.msra.mxu0 0
        %843 = vmatprep.subr.bf16.mxu0 0
        %844 = vmatpush2.bf16.msra.mxu0 0
        %845 = vmatprep.subr.bf16.mxu0 0
        %846 = vmatpush2.bf16.msra.mxu0 0
        %847 = vmatprep.subr.bf16.mxu0 0
        %848 = vmatpush2.bf16.msra.mxu0 0
        %849 = vmatprep.subr.bf16.mxu0 0
        %850 = vmatpush2.bf16.msra.mxu0 0
        %851 = vmatprep.subr.bf16.mxu0 0
        %852 = vmatpush2.bf16.msra.mxu0 0
        %853 = vmatprep.mubr.bf16.mxu0 0
        %854 = vmatmul.mubr.bf16.gmra.mxu0 %v810
        %v855 = vpop.f32.mrf.mxu0
        %v856 = vadd.f32 0.0, %v855
        %v857 = vpop.f32.mrf.mxu0
        %v858 = vpop.f32.mrf.mxu0
        %v859 = vadd.f32 0.0, %v858
        %v860 = vpop.f32.mrf.mxu0
        %861 = vmatprep.mubr.bf16.mxu0 0
        %862 = vmatmul.mubr.bf16.gmra.mxu0 %v813
        %v863 = vpop.f32.mrf.mxu0
        %v864 = vadd.f32 0.0, %v863
        %v865 = vpop.f32.mrf.mxu0
        %v866 = vpop.f32.mrf.mxu0
        %v867 = vadd.f32 0.0, %v866
        %v868 = vpop.f32.mrf.mxu0
        %869 = vmatprep.mubr.bf16.mxu0 0
        %870 = vmatmul.mubr.bf16.gmra.mxu0 %v816
        %v871 = vpop.f32.mrf.mxu0
        %v872 = vadd.f32 0.0, %v871
        %v873 = vpop.f32.mrf.mxu0
        %v874 = vpop.f32.mrf.mxu0
        %v875 = vadd.f32 0.0, %v874
        %v876 = vpop.f32.mrf.mxu0
        %877 = vmatprep.mubr.bf16.mxu0 0
        %878 = vmatmul.mubr.bf16.gmra.mxu0 %v819
        %v879 = vpop.f32.mrf.mxu0
        %v880 = vadd.f32 0.0, %v879
        %v881 = vpop.f32.mrf.mxu0
        %v882 = vpop.f32.mrf.mxu0
        %v883 = vadd.f32 0.0, %v882
        %v884 = vpop.f32.mrf.mxu0
        %885 = vdwg.mxu0
        %v886 = vpack.c.bf16 %v859, %v856
        %v887 = vpack.c.bf16 %v867, %v864
        %v888 = vpack.c.bf16 %v875, %v872
        %v889 = vpack.c.bf16 %v883, %v880
        %890 = vrot.lane.b32.xlu0 %v558, 120
        %v891 = vpop.permute.xlu0 %890
        %892 = vrot.lane.b32.xlu0 %v559, 120
        %v893 = vpop.permute.xlu0 %892
        %894 = vrot.lane.b32.xlu0 %v560, 120
        %v895 = vpop.permute.xlu0 %894
        %896 = vrot.lane.b32.xlu0 %v561, 120
        %v897 = vpop.permute.xlu0 %896
        %898 = vrot.lane.b32.xlu0 %v578, 120
        %v899 = vpop.permute.xlu0 %898
        %900 = vrot.lane.b32.xlu0 %v579, 120
        %v901 = vpop.permute.xlu0 %900
        %902 = vrot.lane.b32.xlu0 %v580, 120
        %v903 = vpop.permute.xlu0 %902
        %904 = vrot.lane.b32.xlu0 %v581, 120
        %v905 = vpop.permute.xlu0 %904
        %v907 = vsel %vm582, %v891, 0
        %v910 = vsel %vm582, %v893, 0
        %v913 = vsel %vm582, %v895, 0
        %v916 = vsel %vm582, %v897, 0
        %v919 = vsel %vm582, %v899, 0
        %v922 = vsel %vm582, %v901, 0
        %v925 = vsel %vm582, %v903, 0
        %v928 = vsel %vm582, %v905, 0
        %930 = vmatprep.subr.bf16.mxu0 0
        %931 = vmatpush1.bf16.xpose.msra.mxu0 0
        %932 = vmatprep.subr.bf16.mxu0 0
        %933 = vmatpush1.bf16.xpose.msra.mxu0 0
        %934 = vmatprep.subr.bf16.mxu0 0
        %935 = vmatpush1.bf16.xpose.msra.mxu0 0
        %936 = vmatprep.subr.bf16.mxu0 0
        %937 = vmatpush1.bf16.xpose.msra.mxu0 0
        %938 = vmatprep.subr.bf16.mxu0 0
        %939 = vmatpush1.bf16.xpose.msra.mxu0 %v928
        %940 = vmatprep.subr.bf16.mxu0 0
        %941 = vmatpush1.bf16.xpose.msra.mxu0 %v925
        %942 = vmatprep.subr.bf16.mxu0 0
        %943 = vmatpush1.bf16.xpose.msra.mxu0 %v922
        %944 = vmatprep.subr.bf16.mxu0 0
        %945 = vmatpush1.bf16.xpose.msra.mxu0 %v919
        %946 = vmatprep.subr.bf16.mxu0 0
        %947 = vmatpush2.bf16.xpose.msra.mxu0 0
        %948 = vmatprep.subr.bf16.mxu0 0
        %949 = vmatpush2.bf16.xpose.msra.mxu0 0
        %950 = vmatprep.subr.bf16.mxu0 0
        %951 = vmatpush2.bf16.xpose.msra.mxu0 0
        %952 = vmatprep.subr.bf16.mxu0 0
        %953 = vmatpush2.bf16.xpose.msra.mxu0 0
        %954 = vmatprep.subr.bf16.mxu0 0
        %955 = vmatpush2.bf16.xpose.msra.mxu0 0
        %956 = vmatprep.subr.bf16.mxu0 0
        %957 = vmatpush2.bf16.xpose.msra.mxu0 0
        %958 = vmatprep.subr.bf16.mxu0 0
        %959 = vmatpush2.bf16.xpose.msra.mxu0 0
        %960 = vmatprep.subr.bf16.mxu0 0
        %961 = vmatpush2.bf16.xpose.msra.mxu0 0
        %962 = vmatprep.mubr.bf16.mxu0 0
        %963 = vmatmul.mubr.bf16.gmra.mxu0 %v907
        %v964 = vpop.f32.mrf.mxu0
        %v965 = vadd.f32 0.0, %v964
        %v966 = vpop.f32.mrf.mxu0
        %v967 = vpop.f32.mrf.mxu0
        %v968 = vadd.f32 0.0, %v967
        %v969 = vpop.f32.mrf.mxu0
        %970 = vmatprep.mubr.bf16.mxu0 0
        %971 = vmatmul.mubr.bf16.gmra.mxu0 %v910
        %v972 = vpop.f32.mrf.mxu0
        %v973 = vadd.f32 0.0, %v972
        %v974 = vpop.f32.mrf.mxu0
        %v975 = vpop.f32.mrf.mxu0
        %v976 = vadd.f32 0.0, %v975
        %v977 = vpop.f32.mrf.mxu0
        %978 = vmatprep.mubr.bf16.mxu0 0
        %979 = vmatmul.mubr.bf16.gmra.mxu0 %v913
        %v980 = vpop.f32.mrf.mxu0
        %v981 = vadd.f32 0.0, %v980
        %v982 = vpop.f32.mrf.mxu0
        %v983 = vpop.f32.mrf.mxu0
        %v984 = vadd.f32 0.0, %v983
        %v985 = vpop.f32.mrf.mxu0
        %986 = vmatprep.mubr.bf16.mxu0 0
        %987 = vmatmul.mubr.bf16.gmra.mxu0 %v916
        %v988 = vpop.f32.mrf.mxu0
        %v989 = vadd.f32 0.0, %v988
        %v990 = vpop.f32.mrf.mxu0
        %v991 = vpop.f32.mrf.mxu0
        %v992 = vadd.f32 0.0, %v991
        %v993 = vpop.f32.mrf.mxu0
        %994 = vdwg.mxu0
        %v995 = vmul.f32 %v965, 0.35355338
        %v996 = vmul.f32 %v968, 0.35355338
        %v997 = vmul.f32 %v973, 0.35355338
        %v998 = vmul.f32 %v976, 0.35355338
        %v999 = vmul.f32 %v981, 0.35355338
        %v1000 = vmul.f32 %v984, 0.35355338
        %v1001 = vmul.f32 %v989, 0.35355338
        %v1002 = vmul.f32 %v992, 0.35355338
        %s1003 = scalar_lea.vmem %s493, 32
        %v1004 = vld [vmem:[%s1003] sm:$0xf]
        %v1005 = vld [vmem:[%s1003 + $0x4] sm:$0xf]
        %v1006 = vld [vmem:[%s1003 + $0x8] sm:$0xf]
        %v1007 = vld [vmem:[%s1003 + $0xc] sm:$0xf]
        %v1008 = vld [vmem:[%s1003 + $0x10] sm:$0xf]
        %v1009 = vld [vmem:[%s1003 + $0x14] sm:$0xf]
        %v1010 = vld [vmem:[%s1003 + $0x18] sm:$0xf]
        %v1011 = vld [vmem:[%s1003 + $0x1c] sm:$0xf]
        %v1012 = vunpack.c.l.bf16 %v1004
        %v1013 = vunpack.c.l.bf16 %v1005
        %v1014 = vunpack.c.l.bf16 %v1006
        %v1015 = vunpack.c.l.bf16 %v1007
        %v1016 = vunpack.c.l.bf16 %v1008
        %v1017 = vunpack.c.l.bf16 %v1009
        %v1018 = vunpack.c.l.bf16 %v1010
        %v1019 = vunpack.c.l.bf16 %v1011
        %v1020 = vadd.f32 %v995, %v1012
        %v1021 = vadd.f32 %v996, %v1013
        %v1022 = vadd.f32 %v997, %v1014
        %v1023 = vadd.f32 %v998, %v1015
        %v1024 = vadd.f32 %v999, %v1016
        %v1025 = vadd.f32 %v1000, %v1017
        %v1026 = vadd.f32 %v1001, %v1018
        %v1027 = vadd.f32 %v1002, %v1019
        %v1028 = vsel %vm704, %v1020, -inf
        %1029 = vmax.xlane.f32.xlu0 %v1028
        %v1030 = vpop.xlane.xlu0 %1029
        %v1031 = vsel %vm704, %v1021, -inf
        %1032 = vmax.xlane.f32.xlu0 %v1031
        %v1033 = vpop.xlane.xlu0 %1032
        %v1034 = vsel %vm704, %v1022, -inf
        %1035 = vmax.xlane.f32.xlu0 %v1034
        %v1036 = vpop.xlane.xlu0 %1035
        %v1037 = vsel %vm704, %v1023, -inf
        %1038 = vmax.xlane.f32.xlu0 %v1037
        %v1039 = vpop.xlane.xlu0 %1038
        %v1040 = vsel %vm704, %v1024, -inf
        %1041 = vmax.xlane.f32.xlu0 %v1040
        %v1042 = vpop.xlane.xlu0 %1041
        %v1043 = vsel %vm704, %v1025, -inf
        %1044 = vmax.xlane.f32.xlu0 %v1043
        %v1045 = vpop.xlane.xlu0 %1044
        %v1046 = vsel %vm704, %v1026, -inf
        %1047 = vmax.xlane.f32.xlu0 %v1046
        %v1048 = vpop.xlane.xlu0 %1047
        %v1049 = vsel %vm704, %v1027, -inf
        %1050 = vmax.xlane.f32.xlu0 %v1049
        %v1051 = vpop.xlane.xlu0 %1050
        %v1052 = vsub.f32 %v1020, %v1030
        %v1053 = vsub.f32 %v1021, %v1033
        %v1054 = vsub.f32 %v1022, %v1036
        %v1055 = vsub.f32 %v1023, %v1039
        %v1056 = vsub.f32 %v1024, %v1042
        %v1057 = vsub.f32 %v1025, %v1045
        %v1058 = vsub.f32 %v1026, %v1048
        %v1059 = vsub.f32 %v1027, %v1051
        %v1060 = vmul.f32 %v1052, 1.442695
        %v1061 = vpow.pop %v1060
        %v1062 = vmul.f32 %v1053, 1.442695
        %v1063 = vpow.pop %v1062
        %v1064 = vmul.f32 %v1054, 1.442695
        %v1065 = vpow.pop %v1064
        %v1066 = vmul.f32 %v1055, 1.442695
        %v1067 = vpow.pop %v1066
        %v1068 = vmul.f32 %v1056, 1.442695
        %v1069 = vpow.pop %v1068
        %v1070 = vmul.f32 %v1057, 1.442695
        %v1071 = vpow.pop %v1070
        %v1072 = vmul.f32 %v1058, 1.442695
        %v1073 = vpow.pop %v1072
        %v1074 = vmul.f32 %v1059, 1.442695
        %v1075 = vpow.pop %v1074
        %v1076 = vsel %vm704, %v1061, 0.0
        %1077 = vadd.xlane.f32.xlu0 %v1076
        %v1078 = vpop.xlane.xlu0 %1077
        %v1079 = vsel %vm704, %v1063, 0.0
        %1080 = vadd.xlane.f32.xlu0 %v1079
        %v1081 = vpop.xlane.xlu0 %1080
        %v1082 = vsel %vm704, %v1065, 0.0
        %1083 = vadd.xlane.f32.xlu0 %v1082
        %v1084 = vpop.xlane.xlu0 %1083
        %v1085 = vsel %vm704, %v1067, 0.0
        %1086 = vadd.xlane.f32.xlu0 %v1085
        %v1087 = vpop.xlane.xlu0 %1086
        %v1088 = vsel %vm704, %v1069, 0.0
        %1089 = vadd.xlane.f32.xlu0 %v1088
        %v1090 = vpop.xlane.xlu0 %1089
        %v1091 = vsel %vm704, %v1071, 0.0
        %1092 = vadd.xlane.f32.xlu0 %v1091
        %v1093 = vpop.xlane.xlu0 %1092
        %v1094 = vsel %vm704, %v1073, 0.0
        %1095 = vadd.xlane.f32.xlu0 %v1094
        %v1096 = vpop.xlane.xlu0 %1095
        %v1097 = vsel %vm704, %v1075, 0.0
        %1098 = vadd.xlane.f32.xlu0 %v1097
        %v1099 = vpop.xlane.xlu0 %1098
        %v1100 = vrcp.pop %v1078
        %v1101 = vrcp.pop %v1081
        %v1102 = vrcp.pop %v1084
        %v1103 = vrcp.pop %v1087
        %v1104 = vrcp.pop %v1090
        %v1105 = vrcp.pop %v1093
        %v1106 = vrcp.pop %v1096
        %v1107 = vrcp.pop %v1099
        %v1108 = vmul.f32 %v1061, %v1100
        %v1109 = vmul.f32 %v1063, %v1101
        %v1110 = vmul.f32 %v1065, %v1102
        %v1111 = vmul.f32 %v1067, %v1103
        %v1112 = vmul.f32 %v1069, %v1104
        %v1113 = vmul.f32 %v1071, %v1105
        %v1114 = vmul.f32 %v1073, %v1106
        %v1115 = vmul.f32 %v1075, %v1107
        %v1116 = vpack.c.bf16 %v1109, %v1108
        %v1117 = vpack.c.bf16 %v1111, %v1110
        %v1118 = vpack.c.bf16 %v1113, %v1112
        %v1119 = vpack.c.bf16 %v1115, %v1114
        %1120 = vrot.lane.b32.xlu0 %v578, 88
        %v1121 = vpop.permute.xlu0 %1120
        %1122 = vrot.lane.b32.xlu0 %v579, 88
        %v1123 = vpop.permute.xlu0 %1122
        %1124 = vrot.lane.b32.xlu0 %v580, 88
        %v1125 = vpop.permute.xlu0 %1124
        %1126 = vrot.lane.b32.xlu0 %v581, 88
        %v1127 = vpop.permute.xlu0 %1126
        %v1133 = vsel %vm704, %v1116, 0
        %v1136 = vsel %vm704, %v1117, 0
        %v1139 = vsel %vm704, %v1118, 0
        %v1142 = vsel %vm704, %v1119, 0
        %1144 = vmatprep.subr.bf16.mxu0 0
        %1145 = vmatpush1.bf16.msra.mxu0 0
        %1146 = vmatprep.subr.bf16.mxu0 0
        %1147 = vmatpush1.bf16.msra.mxu0 0
        %1148 = vmatprep.subr.bf16.mxu0 0
        %1149 = vmatpush1.bf16.msra.mxu0 0
        %1150 = vmatprep.subr.bf16.mxu0 0
        %1151 = vmatpush1.bf16.msra.mxu0 0
        %1152 = vmatprep.subr.bf16.mxu0 0
        %1153 = vmatpush1.bf16.msra.mxu0 %v1127
        %1154 = vmatprep.subr.bf16.mxu0 0
        %1155 = vmatpush1.bf16.msra.mxu0 %v1125
        %1156 = vmatprep.subr.bf16.mxu0 0
        %1157 = vmatpush1.bf16.msra.mxu0 %v1123
        %1158 = vmatprep.subr.bf16.mxu0 0
        %1159 = vmatpush1.bf16.msra.mxu0 %v1121
        %1160 = vmatprep.subr.bf16.mxu0 0
        %1161 = vmatpush2.bf16.msra.mxu0 0
        %1162 = vmatprep.subr.bf16.mxu0 0
        %1163 = vmatpush2.bf16.msra.mxu0 0
        %1164 = vmatprep.subr.bf16.mxu0 0
        %1165 = vmatpush2.bf16.msra.mxu0 0
        %1166 = vmatprep.subr.bf16.mxu0 0
        %1167 = vmatpush2.bf16.msra.mxu0 0
        %1168 = vmatprep.subr.bf16.mxu0 0
        %1169 = vmatpush2.bf16.msra.mxu0 0
        %1170 = vmatprep.subr.bf16.mxu0 0
        %1171 = vmatpush2.bf16.msra.mxu0 0
        %1172 = vmatprep.subr.bf16.mxu0 0
        %1173 = vmatpush2.bf16.msra.mxu0 0
        %1174 = vmatprep.subr.bf16.mxu0 0
        %1175 = vmatpush2.bf16.msra.mxu0 0
        %1176 = vmatprep.mubr.bf16.mxu0 0
        %1177 = vmatmul.mubr.bf16.gmra.mxu0 %v1133
        %v1178 = vpop.f32.mrf.mxu0
        %v1179 = vadd.f32 0.0, %v1178
        %v1180 = vpop.f32.mrf.mxu0
        %v1181 = vpop.f32.mrf.mxu0
        %v1182 = vadd.f32 0.0, %v1181
        %v1183 = vpop.f32.mrf.mxu0
        %1184 = vmatprep.mubr.bf16.mxu0 0
        %1185 = vmatmul.mubr.bf16.gmra.mxu0 %v1136
        %v1186 = vpop.f32.mrf.mxu0
        %v1187 = vadd.f32 0.0, %v1186
        %v1188 = vpop.f32.mrf.mxu0
        %v1189 = vpop.f32.mrf.mxu0
        %v1190 = vadd.f32 0.0, %v1189
        %v1191 = vpop.f32.mrf.mxu0
        %1192 = vmatprep.mubr.bf16.mxu0 0
        %1193 = vmatmul.mubr.bf16.gmra.mxu0 %v1139
        %v1194 = vpop.f32.mrf.mxu0
        %v1195 = vadd.f32 0.0, %v1194
        %v1196 = vpop.f32.mrf.mxu0
        %v1197 = vpop.f32.mrf.mxu0
        %v1198 = vadd.f32 0.0, %v1197
        %v1199 = vpop.f32.mrf.mxu0
        %1200 = vmatprep.mubr.bf16.mxu0 0
        %1201 = vmatmul.mubr.bf16.gmra.mxu0 %v1142
        %v1202 = vpop.f32.mrf.mxu0
        %v1203 = vadd.f32 0.0, %v1202
        %v1204 = vpop.f32.mrf.mxu0
        %v1205 = vpop.f32.mrf.mxu0
        %v1206 = vadd.f32 0.0, %v1205
        %v1207 = vpop.f32.mrf.mxu0
        %1208 = vdwg.mxu0
        %v1209 = vpack.c.bf16 %v1182, %v1179
        %v1210 = vpack.c.bf16 %v1190, %v1187
        %v1211 = vpack.c.bf16 %v1198, %v1195
        %v1212 = vpack.c.bf16 %v1206, %v1203
        %v1214 = vsel %vm582, %v1209, 0
        %v1217 = vsel %vm582, %v1210, 0
        %v1220 = vsel %vm582, %v1211, 0
        %v1223 = vsel %vm582, %v1212, 0
        %vm1225 = vcmask 1043456
        %v1227 = vsel %vm1225, %v539, 0
        %1229 = vmatprep.subr.bf16.mxu0 0
        %1230 = vmatpush1.bf16.msra.mxu0 0
        %1231 = vmatprep.subr.bf16.mxu0 0
        %1232 = vmatpush1.bf16.msra.mxu0 0
        %1233 = vmatprep.subr.bf16.mxu0 0
        %1234 = vmatpush1.bf16.msra.mxu0 0
        %1235 = vmatprep.subr.bf16.mxu0 0
        %1236 = vmatpush1.bf16.msra.mxu0 0
        %1237 = vmatprep.subr.bf16.mxu0 0
        %1238 = vmatpush1.bf16.msra.mxu0 0
        %1239 = vmatprep.subr.bf16.mxu0 0
        %1240 = vmatpush1.bf16.msra.mxu0 0
        %1241 = vmatprep.subr.bf16.mxu0 0
        %1242 = vmatpush1.bf16.msra.mxu0 0
        %1243 = vmatprep.subr.bf16.mxu0 0
        %1244 = vmatpush1.bf16.msra.mxu0 %v1227
        %1245 = vmatprep.subr.bf16.mxu0 0
        %1246 = vmatpush2.bf16.msra.mxu0 0
        %1247 = vmatprep.subr.bf16.mxu0 0
        %1248 = vmatpush2.bf16.msra.mxu0 0
        %1249 = vmatprep.subr.bf16.mxu0 0
        %1250 = vmatpush2.bf16.msra.mxu0 0
        %1251 = vmatprep.subr.bf16.mxu0 0
        %1252 = vmatpush2.bf16.msra.mxu0 0
        %1253 = vmatprep.subr.bf16.mxu0 0
        %1254 = vmatpush2.bf16.msra.mxu0 0
        %1255 = vmatprep.subr.bf16.mxu0 0
        %1256 = vmatpush2.bf16.msra.mxu0 0
        %1257 = vmatprep.subr.bf16.mxu0 0
        %1258 = vmatpush2.bf16.msra.mxu0 0
        %1259 = vmatprep.subr.bf16.mxu0 0
        %1260 = vmatpush2.bf16.msra.mxu0 0
        %1261 = vmatprep.mubr.bf16.mxu0 0
        %1262 = vmatmul.mubr.bf16.gmra.mxu0 %v1214
        %v1263 = vpop.f32.mrf.mxu0
        %v1264 = vadd.f32 0.0, %v1263
        %v1265 = vpop.f32.mrf.mxu0
        %v1266 = vpop.f32.mrf.mxu0
        %v1267 = vadd.f32 0.0, %v1266
        %v1268 = vpop.f32.mrf.mxu0
        %1269 = vmatprep.mubr.bf16.mxu0 0
        %1270 = vmatmul.mubr.bf16.gmra.mxu0 %v1217
        %v1271 = vpop.f32.mrf.mxu0
        %v1272 = vadd.f32 0.0, %v1271
        %v1273 = vpop.f32.mrf.mxu0
        %v1274 = vpop.f32.mrf.mxu0
        %v1275 = vadd.f32 0.0, %v1274
        %v1276 = vpop.f32.mrf.mxu0
        %1277 = vmatprep.mubr.bf16.mxu0 0
        %1278 = vmatmul.mubr.bf16.gmra.mxu0 %v1220
        %v1279 = vpop.f32.mrf.mxu0
        %v1280 = vadd.f32 0.0, %v1279
        %v1281 = vpop.f32.mrf.mxu0
        %v1282 = vpop.f32.mrf.mxu0
        %v1283 = vadd.f32 0.0, %v1282
        %v1284 = vpop.f32.mrf.mxu0
        %1285 = vmatprep.mubr.bf16.mxu0 0
        %1286 = vmatmul.mubr.bf16.gmra.mxu0 %v1223
        %v1287 = vpop.f32.mrf.mxu0
        %v1288 = vadd.f32 0.0, %v1287
        %v1289 = vpop.f32.mrf.mxu0
        %v1290 = vpop.f32.mrf.mxu0
        %v1291 = vadd.f32 0.0, %v1290
        %v1292 = vpop.f32.mrf.mxu0
        %1293 = vdwg.mxu0
        %v1295 = vsel %vm582, %v886, 0
        %v1298 = vsel %vm582, %v887, 0
        %v1301 = vsel %vm582, %v888, 0
        %v1304 = vsel %vm582, %v889, 0
        %v1307 = vsel %vm1225, %v538, 0
        %1309 = vmatprep.subr.bf16.mxu0 0
        %1310 = vmatpush1.bf16.msra.mxu0 0
        %1311 = vmatprep.subr.bf16.mxu0 0
        %1312 = vmatpush1.bf16.msra.mxu0 0
        %1313 = vmatprep.subr.bf16.mxu0 0
        %1314 = vmatpush1.bf16.msra.mxu0 0
        %1315 = vmatprep.subr.bf16.mxu0 0
        %1316 = vmatpush1.bf16.msra.mxu0 0
        %1317 = vmatprep.subr.bf16.mxu0 0
        %1318 = vmatpush1.bf16.msra.mxu0 0
        %1319 = vmatprep.subr.bf16.mxu0 0
        %1320 = vmatpush1.bf16.msra.mxu0 0
        %1321 = vmatprep.subr.bf16.mxu0 0
        %1322 = vmatpush1.bf16.msra.mxu0 0
        %1323 = vmatprep.subr.bf16.mxu0 0
        %1324 = vmatpush1.bf16.msra.mxu0 %v1307
        %1325 = vmatprep.subr.bf16.mxu0 0
        %1326 = vmatpush2.bf16.msra.mxu0 0
        %1327 = vmatprep.subr.bf16.mxu0 0
        %1328 = vmatpush2.bf16.msra.mxu0 0
        %1329 = vmatprep.subr.bf16.mxu0 0
        %1330 = vmatpush2.bf16.msra.mxu0 0
        %1331 = vmatprep.subr.bf16.mxu0 0
        %1332 = vmatpush2.bf16.msra.mxu0 0
        %1333 = vmatprep.subr.bf16.mxu0 0
        %1334 = vmatpush2.bf16.msra.mxu0 0
        %1335 = vmatprep.subr.bf16.mxu0 0
        %1336 = vmatpush2.bf16.msra.mxu0 0
        %1337 = vmatprep.subr.bf16.mxu0 0
        %1338 = vmatpush2.bf16.msra.mxu0 0
        %1339 = vmatprep.subr.bf16.mxu0 0
        %1340 = vmatpush2.bf16.msra.mxu0 0
        %1341 = vmatprep.mubr.bf16.mxu0 0
        %1342 = vmatmul.mubr.bf16.gmra.mxu0 %v1295
        %v1343 = vpop.f32.mrf.mxu0
        %v1344 = vadd.f32 %v1264, %v1343
        %v1345 = vpop.f32.mrf.mxu0
        %v1346 = vpop.f32.mrf.mxu0
        %v1347 = vadd.f32 %v1267, %v1346
        %v1348 = vpop.f32.mrf.mxu0
        %1349 = vmatprep.mubr.bf16.mxu0 0
        %1350 = vmatmul.mubr.bf16.gmra.mxu0 %v1298
        %v1351 = vpop.f32.mrf.mxu0
        %v1352 = vadd.f32 %v1272, %v1351
        %v1353 = vpop.f32.mrf.mxu0
        %v1354 = vpop.f32.mrf.mxu0
        %v1355 = vadd.f32 %v1275, %v1354
        %v1356 = vpop.f32.mrf.mxu0
        %1357 = vmatprep.mubr.bf16.mxu0 0
        %1358 = vmatmul.mubr.bf16.gmra.mxu0 %v1301
        %v1359 = vpop.f32.mrf.mxu0
        %v1360 = vadd.f32 %v1280, %v1359
        %v1361 = vpop.f32.mrf.mxu0
        %v1362 = vpop.f32.mrf.mxu0
        %v1363 = vadd.f32 %v1283, %v1362
        %v1364 = vpop.f32.mrf.mxu0
        %1365 = vmatprep.mubr.bf16.mxu0 0
        %1366 = vmatmul.mubr.bf16.gmra.mxu0 %v1304
        %v1367 = vpop.f32.mrf.mxu0
        %v1368 = vadd.f32 %v1288, %v1367
        %v1369 = vpop.f32.mrf.mxu0
        %v1370 = vpop.f32.mrf.mxu0
        %v1371 = vadd.f32 %v1291, %v1370
        %v1372 = vpop.f32.mrf.mxu0
        %1373 = vdwg.mxu0
        %1374 = vrot.lane.b32.xlu0 %v558, 112
        %v1375 = vpop.permute.xlu0 %1374
        %1376 = vrot.lane.b32.xlu0 %v559, 112
        %v1377 = vpop.permute.xlu0 %1376
        %1378 = vrot.lane.b32.xlu0 %v560, 112
        %v1379 = vpop.permute.xlu0 %1378
        %1380 = vrot.lane.b32.xlu0 %v561, 112
        %v1381 = vpop.permute.xlu0 %1380
        %1382 = vrot.lane.b32.xlu0 %v578, 112
        %v1383 = vpop.permute.xlu0 %1382
        %1384 = vrot.lane.b32.xlu0 %v579, 112
        %v1385 = vpop.permute.xlu0 %1384
        %1386 = vrot.lane.b32.xlu0 %v580, 112
        %v1387 = vpop.permute.xlu0 %1386
        %1388 = vrot.lane.b32.xlu0 %v581, 112
        %v1389 = vpop.permute.xlu0 %1388
        %v1391 = vsel %vm582, %v1375, 0
        %v1394 = vsel %vm582, %v1377, 0
        %v1397 = vsel %vm582, %v1379, 0
        %v1400 = vsel %vm582, %v1381, 0
        %v1403 = vsel %vm582, %v1383, 0
        %v1406 = vsel %vm582, %v1385, 0
        %v1409 = vsel %vm582, %v1387, 0
        %v1412 = vsel %vm582, %v1389, 0
        %1414 = vmatprep.subr.bf16.mxu0 0
        %1415 = vmatpush1.bf16.xpose.msra.mxu0 0
        %1416 = vmatprep.subr.bf16.mxu0 0
        %1417 = vmatpush1.bf16.xpose.msra.mxu0 0
        %1418 = vmatprep.subr.bf16.mxu0 0
        %1419 = vmatpush1.bf16.xpose.msra.mxu0 0
        %1420 = vmatprep.subr.bf16.mxu0 0
        %1421 = vmatpush1.bf16.xpose.msra.mxu0 0
        %1422 = vmatprep.subr.bf16.mxu0 0
        %1423 = vmatpush1.bf16.xpose.msra.mxu0 %v1412
        %1424 = vmatprep.subr.bf16.mxu0 0
        %1425 = vmatpush1.bf16.xpose.msra.mxu0 %v1409
        %1426 = vmatprep.subr.bf16.mxu0 0
        %1427 = vmatpush1.bf16.xpose.msra.mxu0 %v1406
        %1428 = vmatprep.subr.bf16.mxu0 0
        %1429 = vmatpush1.bf16.xpose.msra.mxu0 %v1403
        %1430 = vmatprep.subr.bf16.mxu0 0
        %1431 = vmatpush2.bf16.xpose.msra.mxu0 0
        %1432 = vmatprep.subr.bf16.mxu0 0
        %1433 = vmatpush2.bf16.xpose.msra.mxu0 0
        %1434 = vmatprep.subr.bf16.mxu0 0
        %1435 = vmatpush2.bf16.xpose.msra.mxu0 0
        %1436 = vmatprep.subr.bf16.mxu0 0
        %1437 = vmatpush2.bf16.xpose.msra.mxu0 0
        %1438 = vmatprep.subr.bf16.mxu0 0
        %1439 = vmatpush2.bf16.xpose.msra.mxu0 0
        %1440 = vmatprep.subr.bf16.mxu0 0
        %1441 = vmatpush2.bf16.xpose.msra.mxu0 0
        %1442 = vmatprep.subr.bf16.mxu0 0
        %1443 = vmatpush2.bf16.xpose.msra.mxu0 0
        %1444 = vmatprep.subr.bf16.mxu0 0
        %1445 = vmatpush2.bf16.xpose.msra.mxu0 0
        %1446 = vmatprep.mubr.bf16.mxu0 0
        %1447 = vmatmul.mubr.bf16.gmra.mxu0 %v1391
        %v1448 = vpop.f32.mrf.mxu0
        %v1449 = vadd.f32 0.0, %v1448
        %v1450 = vpop.f32.mrf.mxu0
        %v1451 = vpop.f32.mrf.mxu0
        %v1452 = vadd.f32 0.0, %v1451
        %v1453 = vpop.f32.mrf.mxu0
        %1454 = vmatprep.mubr.bf16.mxu0 0
        %1455 = vmatmul.mubr.bf16.gmra.mxu0 %v1394
        %v1456 = vpop.f32.mrf.mxu0
        %v1457 = vadd.f32 0.0, %v1456
        %v1458 = vpop.f32.mrf.mxu0
        %v1459 = vpop.f32.mrf.mxu0
        %v1460 = vadd.f32 0.0, %v1459
        %v1461 = vpop.f32.mrf.mxu0
        %1462 = vmatprep.mubr.bf16.mxu0 0
        %1463 = vmatmul.mubr.bf16.gmra.mxu0 %v1397
        %v1464 = vpop.f32.mrf.mxu0
        %v1465 = vadd.f32 0.0, %v1464
        %v1466 = vpop.f32.mrf.mxu0
        %v1467 = vpop.f32.mrf.mxu0
        %v1468 = vadd.f32 0.0, %v1467
        %v1469 = vpop.f32.mrf.mxu0
        %1470 = vmatprep.mubr.bf16.mxu0 0
        %1471 = vmatmul.mubr.bf16.gmra.mxu0 %v1400
        %v1472 = vpop.f32.mrf.mxu0
        %v1473 = vadd.f32 0.0, %v1472
        %v1474 = vpop.f32.mrf.mxu0
        %v1475 = vpop.f32.mrf.mxu0
        %v1476 = vadd.f32 0.0, %v1475
        %v1477 = vpop.f32.mrf.mxu0
        %1478 = vdwg.mxu0
        %v1479 = vmul.f32 %v1449, 0.35355338
        %v1480 = vmul.f32 %v1452, 0.35355338
        %v1481 = vmul.f32 %v1457, 0.35355338
        %v1482 = vmul.f32 %v1460, 0.35355338
        %v1483 = vmul.f32 %v1465, 0.35355338
        %v1484 = vmul.f32 %v1468, 0.35355338
        %v1485 = vmul.f32 %v1473, 0.35355338
        %v1486 = vmul.f32 %v1476, 0.35355338
        %s1487 = scalar_lea.vmem %s493, 64
        %v1488 = vld [vmem:[%s1487] sm:$0xf]
        %v1489 = vld [vmem:[%s1487 + $0x4] sm:$0xf]
        %v1490 = vld [vmem:[%s1487 + $0x8] sm:$0xf]
        %v1491 = vld [vmem:[%s1487 + $0xc] sm:$0xf]
        %v1492 = vld [vmem:[%s1487 + $0x10] sm:$0xf]
        %v1493 = vld [vmem:[%s1487 + $0x14] sm:$0xf]
        %v1494 = vld [vmem:[%s1487 + $0x18] sm:$0xf]
        %v1495 = vld [vmem:[%s1487 + $0x1c] sm:$0xf]
        %v1496 = vunpack.c.l.bf16 %v1488
        %v1497 = vunpack.c.l.bf16 %v1489
        %v1498 = vunpack.c.l.bf16 %v1490
        %v1499 = vunpack.c.l.bf16 %v1491
        %v1500 = vunpack.c.l.bf16 %v1492
        %v1501 = vunpack.c.l.bf16 %v1493
        %v1502 = vunpack.c.l.bf16 %v1494
        %v1503 = vunpack.c.l.bf16 %v1495
        %v1504 = vadd.f32 %v1479, %v1496
        %v1505 = vadd.f32 %v1480, %v1497
        %v1506 = vadd.f32 %v1481, %v1498
        %v1507 = vadd.f32 %v1482, %v1499
        %v1508 = vadd.f32 %v1483, %v1500
        %v1509 = vadd.f32 %v1484, %v1501
        %v1510 = vadd.f32 %v1485, %v1502
        %v1511 = vadd.f32 %v1486, %v1503
        %v1512 = vsel %vm704, %v1504, -inf
        %1513 = vmax.xlane.f32.xlu0 %v1512
        %v1514 = vpop.xlane.xlu0 %1513
        %v1515 = vsel %vm704, %v1505, -inf
        %1516 = vmax.xlane.f32.xlu0 %v1515
        %v1517 = vpop.xlane.xlu0 %1516
        %v1518 = vsel %vm704, %v1506, -inf
        %1519 = vmax.xlane.f32.xlu0 %v1518
        %v1520 = vpop.xlane.xlu0 %1519
        %v1521 = vsel %vm704, %v1507, -inf
        %1522 = vmax.xlane.f32.xlu0 %v1521
        %v1523 = vpop.xlane.xlu0 %1522
        %v1524 = vsel %vm704, %v1508, -inf
        %1525 = vmax.xlane.f32.xlu0 %v1524
        %v1526 = vpop.xlane.xlu0 %1525
        %v1527 = vsel %vm704, %v1509, -inf
        %1528 = vmax.xlane.f32.xlu0 %v1527
        %v1529 = vpop.xlane.xlu0 %1528
        %v1530 = vsel %vm704, %v1510, -inf
        %1531 = vmax.xlane.f32.xlu0 %v1530
        %v1532 = vpop.xlane.xlu0 %1531
        %v1533 = vsel %vm704, %v1511, -inf
        %1534 = vmax.xlane.f32.xlu0 %v1533
        %v1535 = vpop.xlane.xlu0 %1534
        %v1536 = vsub.f32 %v1504, %v1514
        %v1537 = vsub.f32 %v1505, %v1517
        %v1538 = vsub.f32 %v1506, %v1520
        %v1539 = vsub.f32 %v1507, %v1523
        %v1540 = vsub.f32 %v1508, %v1526
        %v1541 = vsub.f32 %v1509, %v1529
        %v1542 = vsub.f32 %v1510, %v1532
        %v1543 = vsub.f32 %v1511, %v1535
        %v1544 = vmul.f32 %v1536, 1.442695
        %v1545 = vpow.pop %v1544
        %v1546 = vmul.f32 %v1537, 1.442695
        %v1547 = vpow.pop %v1546
        %v1548 = vmul.f32 %v1538, 1.442695
        %v1549 = vpow.pop %v1548
        %v1550 = vmul.f32 %v1539, 1.442695
        %v1551 = vpow.pop %v1550
        %v1552 = vmul.f32 %v1540, 1.442695
        %v1553 = vpow.pop %v1552
        %v1554 = vmul.f32 %v1541, 1.442695
        %v1555 = vpow.pop %v1554
        %v1556 = vmul.f32 %v1542, 1.442695
        %v1557 = vpow.pop %v1556
        %v1558 = vmul.f32 %v1543, 1.442695
        %v1559 = vpow.pop %v1558
        %v1560 = vsel %vm704, %v1545, 0.0
        %1561 = vadd.xlane.f32.xlu0 %v1560
        %v1562 = vpop.xlane.xlu0 %1561
        %v1563 = vsel %vm704, %v1547, 0.0
        %1564 = vadd.xlane.f32.xlu0 %v1563
        %v1565 = vpop.xlane.xlu0 %1564
        %v1566 = vsel %vm704, %v1549, 0.0
        %1567 = vadd.xlane.f32.xlu0 %v1566
        %v1568 = vpop.xlane.xlu0 %1567
        %v1569 = vsel %vm704, %v1551, 0.0
        %1570 = vadd.xlane.f32.xlu0 %v1569
        %v1571 = vpop.xlane.xlu0 %1570
        %v1572 = vsel %vm704, %v1553, 0.0
        %1573 = vadd.xlane.f32.xlu0 %v1572
        %v1574 = vpop.xlane.xlu0 %1573
        %v1575 = vsel %vm704, %v1555, 0.0
        %1576 = vadd.xlane.f32.xlu0 %v1575
        %v1577 = vpop.xlane.xlu0 %1576
        %v1578 = vsel %vm704, %v1557, 0.0
        %1579 = vadd.xlane.f32.xlu0 %v1578
        %v1580 = vpop.xlane.xlu0 %1579
        %v1581 = vsel %vm704, %v1559, 0.0
        %1582 = vadd.xlane.f32.xlu0 %v1581
        %v1583 = vpop.xlane.xlu0 %1582
        %v1584 = vrcp.pop %v1562
        %v1585 = vrcp.pop %v1565
        %v1586 = vrcp.pop %v1568
        %v1587 = vrcp.pop %v1571
        %v1588 = vrcp.pop %v1574
        %v1589 = vrcp.pop %v1577
        %v1590 = vrcp.pop %v1580
        %v1591 = vrcp.pop %v1583
        %v1592 = vmul.f32 %v1545, %v1584
        %v1593 = vmul.f32 %v1547, %v1585
        %v1594 = vmul.f32 %v1549, %v1586
        %v1595 = vmul.f32 %v1551, %v1587
        %v1596 = vmul.f32 %v1553, %v1588
        %v1597 = vmul.f32 %v1555, %v1589
        %v1598 = vmul.f32 %v1557, %v1590
        %v1599 = vmul.f32 %v1559, %v1591
        %v1600 = vpack.c.bf16 %v1593, %v1592
        %v1601 = vpack.c.bf16 %v1595, %v1594
        %v1602 = vpack.c.bf16 %v1597, %v1596
        %v1603 = vpack.c.bf16 %v1599, %v1598
        %1604 = vrot.lane.b32.xlu0 %v578, 80
        %v1605 = vpop.permute.xlu0 %1604
        %1606 = vrot.lane.b32.xlu0 %v579, 80
        %v1607 = vpop.permute.xlu0 %1606
        %1608 = vrot.lane.b32.xlu0 %v580, 80
        %v1609 = vpop.permute.xlu0 %1608
        %1610 = vrot.lane.b32.xlu0 %v581, 80
        %v1611 = vpop.permute.xlu0 %1610
        %v1617 = vsel %vm704, %v1600, 0
        %v1620 = vsel %vm704, %v1601, 0
        %v1623 = vsel %vm704, %v1602, 0
        %v1626 = vsel %vm704, %v1603, 0
        %1628 = vmatprep.subr.bf16.mxu0 0
        %1629 = vmatpush1.bf16.msra.mxu0 0
        %1630 = vmatprep.subr.bf16.mxu0 0
        %1631 = vmatpush1.bf16.msra.mxu0 0
        %1632 = vmatprep.subr.bf16.mxu0 0
        %1633 = vmatpush1.bf16.msra.mxu0 0
        %1634 = vmatprep.subr.bf16.mxu0 0
        %1635 = vmatpush1.bf16.msra.mxu0 0
        %1636 = vmatprep.subr.bf16.mxu0 0
        %1637 = vmatpush1.bf16.msra.mxu0 %v1611
        %1638 = vmatprep.subr.bf16.mxu0 0
        %1639 = vmatpush1.bf16.msra.mxu0 %v1609
        %1640 = vmatprep.subr.bf16.mxu0 0
        %1641 = vmatpush1.bf16.msra.mxu0 %v1607
        %1642 = vmatprep.subr.bf16.mxu0 0
        %1643 = vmatpush1.bf16.msra.mxu0 %v1605
        %1644 = vmatprep.subr.bf16.mxu0 0
        %1645 = vmatpush2.bf16.msra.mxu0 0
        %1646 = vmatprep.subr.bf16.mxu0 0
        %1647 = vmatpush2.bf16.msra.mxu0 0
        %1648 = vmatprep.subr.bf16.mxu0 0
        %1649 = vmatpush2.bf16.msra.mxu0 0
        %1650 = vmatprep.subr.bf16.mxu0 0
        %1651 = vmatpush2.bf16.msra.mxu0 0
        %1652 = vmatprep.subr.bf16.mxu0 0
        %1653 = vmatpush2.bf16.msra.mxu0 0
        %1654 = vmatprep.subr.bf16.mxu0 0
        %1655 = vmatpush2.bf16.msra.mxu0 0
        %1656 = vmatprep.subr.bf16.mxu0 0
        %1657 = vmatpush2.bf16.msra.mxu0 0
        %1658 = vmatprep.subr.bf16.mxu0 0
        %1659 = vmatpush2.bf16.msra.mxu0 0
        %1660 = vmatprep.mubr.bf16.mxu0 0
        %1661 = vmatmul.mubr.bf16.gmra.mxu0 %v1617
        %v1662 = vpop.f32.mrf.mxu0
        %v1663 = vadd.f32 0.0, %v1662
        %v1664 = vpop.f32.mrf.mxu0
        %v1665 = vpop.f32.mrf.mxu0
        %v1666 = vadd.f32 0.0, %v1665
        %v1667 = vpop.f32.mrf.mxu0
        %1668 = vmatprep.mubr.bf16.mxu0 0
        %1669 = vmatmul.mubr.bf16.gmra.mxu0 %v1620
        %v1670 = vpop.f32.mrf.mxu0
        %v1671 = vadd.f32 0.0, %v1670
        %v1672 = vpop.f32.mrf.mxu0
        %v1673 = vpop.f32.mrf.mxu0
        %v1674 = vadd.f32 0.0, %v1673
        %v1675 = vpop.f32.mrf.mxu0
        %1676 = vmatprep.mubr.bf16.mxu0 0
        %1677 = vmatmul.mubr.bf16.gmra.mxu0 %v1623
        %v1678 = vpop.f32.mrf.mxu0
        %v1679 = vadd.f32 0.0, %v1678
        %v1680 = vpop.f32.mrf.mxu0
        %v1681 = vpop.f32.mrf.mxu0
        %v1682 = vadd.f32 0.0, %v1681
        %v1683 = vpop.f32.mrf.mxu0
        %1684 = vmatprep.mubr.bf16.mxu0 0
        %1685 = vmatmul.mubr.bf16.gmra.mxu0 %v1626
        %v1686 = vpop.f32.mrf.mxu0
        %v1687 = vadd.f32 0.0, %v1686
        %v1688 = vpop.f32.mrf.mxu0
        %v1689 = vpop.f32.mrf.mxu0
        %v1690 = vadd.f32 0.0, %v1689
        %v1691 = vpop.f32.mrf.mxu0
        %1692 = vdwg.mxu0
        %v1693 = vpack.c.bf16 %v1666, %v1663
        %v1694 = vpack.c.bf16 %v1674, %v1671
        %v1695 = vpack.c.bf16 %v1682, %v1679
        %v1696 = vpack.c.bf16 %v1690, %v1687
        %v1698 = vsel %vm582, %v1693, 0
        %v1701 = vsel %vm582, %v1694, 0
        %v1704 = vsel %vm582, %v1695, 0
        %v1707 = vsel %vm582, %v1696, 0
        %v1710 = vsel %vm1225, %v540, 0
        %1712 = vmatprep.subr.bf16.mxu0 0
        %1713 = vmatpush1.bf16.msra.mxu0 0
        %1714 = vmatprep.subr.bf16.mxu0 0
        %1715 = vmatpush1.bf16.msra.mxu0 0
        %1716 = vmatprep.subr.bf16.mxu0 0
        %1717 = vmatpush1.bf16.msra.mxu0 0
        %1718 = vmatprep.subr.bf16.mxu0 0
        %1719 = vmatpush1.bf16.msra.mxu0 0
        %1720 = vmatprep.subr.bf16.mxu0 0
        %1721 = vmatpush1.bf16.msra.mxu0 0
        %1722 = vmatprep.subr.bf16.mxu0 0
        %1723 = vmatpush1.bf16.msra.mxu0 0
        %1724 = vmatprep.subr.bf16.mxu0 0
        %1725 = vmatpush1.bf16.msra.mxu0 0
        %1726 = vmatprep.subr.bf16.mxu0 0
        %1727 = vmatpush1.bf16.msra.mxu0 %v1710
        %1728 = vmatprep.subr.bf16.mxu0 0
        %1729 = vmatpush2.bf16.msra.mxu0 0
        %1730 = vmatprep.subr.bf16.mxu0 0
        %1731 = vmatpush2.bf16.msra.mxu0 0
        %1732 = vmatprep.subr.bf16.mxu0 0
        %1733 = vmatpush2.bf16.msra.mxu0 0
        %1734 = vmatprep.subr.bf16.mxu0 0
        %1735 = vmatpush2.bf16.msra.mxu0 0
        %1736 = vmatprep.subr.bf16.mxu0 0
        %1737 = vmatpush2.bf16.msra.mxu0 0
        %1738 = vmatprep.subr.bf16.mxu0 0
        %1739 = vmatpush2.bf16.msra.mxu0 0
        %1740 = vmatprep.subr.bf16.mxu0 0
        %1741 = vmatpush2.bf16.msra.mxu0 0
        %1742 = vmatprep.subr.bf16.mxu0 0
        %1743 = vmatpush2.bf16.msra.mxu0 0
        %1744 = vmatprep.mubr.bf16.mxu0 0
        %1745 = vmatmul.mubr.bf16.gmra.mxu0 %v1698
        %v1746 = vpop.f32.mrf.mxu0
        %v1747 = vadd.f32 0.0, %v1746
        %v1748 = vpop.f32.mrf.mxu0
        %v1749 = vpop.f32.mrf.mxu0
        %v1750 = vadd.f32 0.0, %v1749
        %v1751 = vpop.f32.mrf.mxu0
        %1752 = vmatprep.mubr.bf16.mxu0 0
        %1753 = vmatmul.mubr.bf16.gmra.mxu0 %v1701
        %v1754 = vpop.f32.mrf.mxu0
        %v1755 = vadd.f32 0.0, %v1754
        %v1756 = vpop.f32.mrf.mxu0
        %v1757 = vpop.f32.mrf.mxu0
        %v1758 = vadd.f32 0.0, %v1757
        %v1759 = vpop.f32.mrf.mxu0
        %1760 = vmatprep.mubr.bf16.mxu0 0
        %1761 = vmatmul.mubr.bf16.gmra.mxu0 %v1704
        %v1762 = vpop.f32.mrf.mxu0
        %v1763 = vadd.f32 0.0, %v1762
        %v1764 = vpop.f32.mrf.mxu0
        %v1765 = vpop.f32.mrf.mxu0
        %v1766 = vadd.f32 0.0, %v1765
        %v1767 = vpop.f32.mrf.mxu0
        %1768 = vmatprep.mubr.bf16.mxu0 0
        %1769 = vmatmul.mubr.bf16.gmra.mxu0 %v1707
        %v1770 = vpop.f32.mrf.mxu0
        %v1771 = vadd.f32 0.0, %v1770
        %v1772 = vpop.f32.mrf.mxu0
        %v1773 = vpop.f32.mrf.mxu0
        %v1774 = vadd.f32 0.0, %v1773
        %v1775 = vpop.f32.mrf.mxu0
        %1776 = vdwg.mxu0
        %v1777 = vadd.f32 %v1344, %v1747
        %v1778 = vadd.f32 %v1347, %v1750
        %v1779 = vadd.f32 %v1352, %v1755
        %v1780 = vadd.f32 %v1355, %v1758
        %v1781 = vadd.f32 %v1360, %v1763
        %v1782 = vadd.f32 %v1363, %v1766
        %v1783 = vadd.f32 %v1368, %v1771
        %v1784 = vadd.f32 %v1371, %v1774
        %1785 = vrot.lane.b32.xlu0 %v558, 104
        %v1786 = vpop.permute.xlu0 %1785
        %1787 = vrot.lane.b32.xlu0 %v559, 104
        %v1788 = vpop.permute.xlu0 %1787
        %1789 = vrot.lane.b32.xlu0 %v560, 104
        %v1790 = vpop.permute.xlu0 %1789
        %1791 = vrot.lane.b32.xlu0 %v561, 104
        %v1792 = vpop.permute.xlu0 %1791
        %1793 = vrot.lane.b32.xlu0 %v578, 104
        %v1794 = vpop.permute.xlu0 %1793
        %1795 = vrot.lane.b32.xlu0 %v579, 104
        %v1796 = vpop.permute.xlu0 %1795
        %1797 = vrot.lane.b32.xlu0 %v580, 104
        %v1798 = vpop.permute.xlu0 %1797
        %1799 = vrot.lane.b32.xlu0 %v581, 104
        %v1800 = vpop.permute.xlu0 %1799
        %v1802 = vsel %vm582, %v1786, 0
        %v1805 = vsel %vm582, %v1788, 0
        %v1808 = vsel %vm582, %v1790, 0
        %v1811 = vsel %vm582, %v1792, 0
        %v1814 = vsel %vm582, %v1794, 0
        %v1817 = vsel %vm582, %v1796, 0
        %v1820 = vsel %vm582, %v1798, 0
        %v1823 = vsel %vm582, %v1800, 0
        %1825 = vmatprep.subr.bf16.mxu0 0
        %1826 = vmatpush1.bf16.xpose.msra.mxu0 0
        %1827 = vmatprep.subr.bf16.mxu0 0
        %1828 = vmatpush1.bf16.xpose.msra.mxu0 0
        %1829 = vmatprep.subr.bf16.mxu0 0
        %1830 = vmatpush1.bf16.xpose.msra.mxu0 0
        %1831 = vmatprep.subr.bf16.mxu0 0
        %1832 = vmatpush1.bf16.xpose.msra.mxu0 0
        %1833 = vmatprep.subr.bf16.mxu0 0
        %1834 = vmatpush1.bf16.xpose.msra.mxu0 %v1823
        %1835 = vmatprep.subr.bf16.mxu0 0
        %1836 = vmatpush1.bf16.xpose.msra.mxu0 %v1820
        %1837 = vmatprep.subr.bf16.mxu0 0
        %1838 = vmatpush1.bf16.xpose.msra.mxu0 %v1817
        %1839 = vmatprep.subr.bf16.mxu0 0
        %1840 = vmatpush1.bf16.xpose.msra.mxu0 %v1814
        %1841 = vmatprep.subr.bf16.mxu0 0
        %1842 = vmatpush2.bf16.xpose.msra.mxu0 0
        %1843 = vmatprep.subr.bf16.mxu0 0
        %1844 = vmatpush2.bf16.xpose.msra.mxu0 0
        %1845 = vmatprep.subr.bf16.mxu0 0
        %1846 = vmatpush2.bf16.xpose.msra.mxu0 0
        %1847 = vmatprep.subr.bf16.mxu0 0
        %1848 = vmatpush2.bf16.xpose.msra.mxu0 0
        %1849 = vmatprep.subr.bf16.mxu0 0
        %1850 = vmatpush2.bf16.xpose.msra.mxu0 0
        %1851 = vmatprep.subr.bf16.mxu0 0
        %1852 = vmatpush2.bf16.xpose.msra.mxu0 0
        %1853 = vmatprep.subr.bf16.mxu0 0
        %1854 = vmatpush2.bf16.xpose.msra.mxu0 0
        %1855 = vmatprep.subr.bf16.mxu0 0
        %1856 = vmatpush2.bf16.xpose.msra.mxu0 0
        %1857 = vmatprep.mubr.bf16.mxu0 0
        %1858 = vmatmul.mubr.bf16.gmra.mxu0 %v1802
        %v1859 = vpop.f32.mrf.mxu0
        %v1860 = vadd.f32 0.0, %v1859
        %v1861 = vpop.f32.mrf.mxu0
        %v1862 = vpop.f32.mrf.mxu0
        %v1863 = vadd.f32 0.0, %v1862
        %v1864 = vpop.f32.mrf.mxu0
        %1865 = vmatprep.mubr.bf16.mxu0 0
        %1866 = vmatmul.mubr.bf16.gmra.mxu0 %v1805
        %v1867 = vpop.f32.mrf.mxu0
        %v1868 = vadd.f32 0.0, %v1867
        %v1869 = vpop.f32.mrf.mxu0
        %v1870 = vpop.f32.mrf.mxu0
        %v1871 = vadd.f32 0.0, %v1870
        %v1872 = vpop.f32.mrf.mxu0
        %1873 = vmatprep.mubr.bf16.mxu0 0
        %1874 = vmatmul.mubr.bf16.gmra.mxu0 %v1808
        %v1875 = vpop.f32.mrf.mxu0
        %v1876 = vadd.f32 0.0, %v1875
        %v1877 = vpop.f32.mrf.mxu0
        %v1878 = vpop.f32.mrf.mxu0
        %v1879 = vadd.f32 0.0, %v1878
        %v1880 = vpop.f32.mrf.mxu0
        %1881 = vmatprep.mubr.bf16.mxu0 0
        %1882 = vmatmul.mubr.bf16.gmra.mxu0 %v1811
        %v1883 = vpop.f32.mrf.mxu0
        %v1884 = vadd.f32 0.0, %v1883
        %v1885 = vpop.f32.mrf.mxu0
        %v1886 = vpop.f32.mrf.mxu0
        %v1887 = vadd.f32 0.0, %v1886
        %v1888 = vpop.f32.mrf.mxu0
        %1889 = vdwg.mxu0
        %v1890 = vmul.f32 %v1860, 0.35355338
        %v1891 = vmul.f32 %v1863, 0.35355338
        %v1892 = vmul.f32 %v1868, 0.35355338
        %v1893 = vmul.f32 %v1871, 0.35355338
        %v1894 = vmul.f32 %v1876, 0.35355338
        %v1895 = vmul.f32 %v1879, 0.35355338
        %v1896 = vmul.f32 %v1884, 0.35355338
        %v1897 = vmul.f32 %v1887, 0.35355338
        %s1898 = scalar_lea.vmem %s493, 96
        %v1899 = vld [vmem:[%s1898] sm:$0xf]
        %v1900 = vld [vmem:[%s1898 + $0x4] sm:$0xf]
        %v1901 = vld [vmem:[%s1898 + $0x8] sm:$0xf]
        %v1902 = vld [vmem:[%s1898 + $0xc] sm:$0xf]
        %v1903 = vld [vmem:[%s1898 + $0x10] sm:$0xf]
        %v1904 = vld [vmem:[%s1898 + $0x14] sm:$0xf]
        %v1905 = vld [vmem:[%s1898 + $0x18] sm:$0xf]
        %v1906 = vld [vmem:[%s1898 + $0x1c] sm:$0xf]
        %v1907 = vunpack.c.l.bf16 %v1899
        %v1908 = vunpack.c.l.bf16 %v1900
        %v1909 = vunpack.c.l.bf16 %v1901
        %v1910 = vunpack.c.l.bf16 %v1902
        %v1911 = vunpack.c.l.bf16 %v1903
        %v1912 = vunpack.c.l.bf16 %v1904
        %v1913 = vunpack.c.l.bf16 %v1905
        %v1914 = vunpack.c.l.bf16 %v1906
        %v1915 = vadd.f32 %v1890, %v1907
        %v1916 = vadd.f32 %v1891, %v1908
        %v1917 = vadd.f32 %v1892, %v1909
        %v1918 = vadd.f32 %v1893, %v1910
        %v1919 = vadd.f32 %v1894, %v1911
        %v1920 = vadd.f32 %v1895, %v1912
        %v1921 = vadd.f32 %v1896, %v1913
        %v1922 = vadd.f32 %v1897, %v1914
        %v1923 = vsel %vm704, %v1915, -inf
        %1924 = vmax.xlane.f32.xlu0 %v1923
        %v1925 = vpop.xlane.xlu0 %1924
        %v1926 = vsel %vm704, %v1916, -inf
        %1927 = vmax.xlane.f32.xlu0 %v1926
        %v1928 = vpop.xlane.xlu0 %1927
        %v1929 = vsel %vm704, %v1917, -inf
        %1930 = vmax.xlane.f32.xlu0 %v1929
        %v1931 = vpop.xlane.xlu0 %1930
        %v1932 = vsel %vm704, %v1918, -inf
        %1933 = vmax.xlane.f32.xlu0 %v1932
        %v1934 = vpop.xlane.xlu0 %1933
        %v1935 = vsel %vm704, %v1919, -inf
        %1936 = vmax.xlane.f32.xlu0 %v1935
        %v1937 = vpop.xlane.xlu0 %1936
        %v1938 = vsel %vm704, %v1920, -inf
        %1939 = vmax.xlane.f32.xlu0 %v1938
        %v1940 = vpop.xlane.xlu0 %1939
        %v1941 = vsel %vm704, %v1921, -inf
        %1942 = vmax.xlane.f32.xlu0 %v1941
        %v1943 = vpop.xlane.xlu0 %1942
        %v1944 = vsel %vm704, %v1922, -inf
        %1945 = vmax.xlane.f32.xlu0 %v1944
        %v1946 = vpop.xlane.xlu0 %1945
        %v1947 = vsub.f32 %v1915, %v1925
        %v1948 = vsub.f32 %v1916, %v1928
        %v1949 = vsub.f32 %v1917, %v1931
        %v1950 = vsub.f32 %v1918, %v1934
        %v1951 = vsub.f32 %v1919, %v1937
        %v1952 = vsub.f32 %v1920, %v1940
        %v1953 = vsub.f32 %v1921, %v1943
        %v1954 = vsub.f32 %v1922, %v1946
        %v1955 = vmul.f32 %v1947, 1.442695
        %v1956 = vpow.pop %v1955
        %v1957 = vmul.f32 %v1948, 1.442695
        %v1958 = vpow.pop %v1957
        %v1959 = vmul.f32 %v1949, 1.442695
        %v1960 = vpow.pop %v1959
        %v1961 = vmul.f32 %v1950, 1.442695
        %v1962 = vpow.pop %v1961
        %v1963 = vmul.f32 %v1951, 1.442695
        %v1964 = vpow.pop %v1963
        %v1965 = vmul.f32 %v1952, 1.442695
        %v1966 = vpow.pop %v1965
        %v1967 = vmul.f32 %v1953, 1.442695
        %v1968 = vpow.pop %v1967
        %v1969 = vmul.f32 %v1954, 1.442695
        %v1970 = vpow.pop %v1969
        %v1971 = vsel %vm704, %v1956, 0.0
        %1972 = vadd.xlane.f32.xlu0 %v1971
        %v1973 = vpop.xlane.xlu0 %1972
        %v1974 = vsel %vm704, %v1958, 0.0
        %1975 = vadd.xlane.f32.xlu0 %v1974
        %v1976 = vpop.xlane.xlu0 %1975
        %v1977 = vsel %vm704, %v1960, 0.0
        %1978 = vadd.xlane.f32.xlu0 %v1977
        %v1979 = vpop.xlane.xlu0 %1978
        %v1980 = vsel %vm704, %v1962, 0.0
        %1981 = vadd.xlane.f32.xlu0 %v1980
        %v1982 = vpop.xlane.xlu0 %1981
        %v1983 = vsel %vm704, %v1964, 0.0
        %1984 = vadd.xlane.f32.xlu0 %v1983
        %v1985 = vpop.xlane.xlu0 %1984
        %v1986 = vsel %vm704, %v1966, 0.0
        %1987 = vadd.xlane.f32.xlu0 %v1986
        %v1988 = vpop.xlane.xlu0 %1987
        %v1989 = vsel %vm704, %v1968, 0.0
        %1990 = vadd.xlane.f32.xlu0 %v1989
        %v1991 = vpop.xlane.xlu0 %1990
        %v1992 = vsel %vm704, %v1970, 0.0
        %1993 = vadd.xlane.f32.xlu0 %v1992
        %v1994 = vpop.xlane.xlu0 %1993
        %v1995 = vrcp.pop %v1973
        %v1996 = vrcp.pop %v1976
        %v1997 = vrcp.pop %v1979
        %v1998 = vrcp.pop %v1982
        %v1999 = vrcp.pop %v1985
        %v2000 = vrcp.pop %v1988
        %v2001 = vrcp.pop %v1991
        %v2002 = vrcp.pop %v1994
        %v2003 = vmul.f32 %v1956, %v1995
        %v2004 = vmul.f32 %v1958, %v1996
        %v2005 = vmul.f32 %v1960, %v1997
        %v2006 = vmul.f32 %v1962, %v1998
        %v2007 = vmul.f32 %v1964, %v1999
        %v2008 = vmul.f32 %v1966, %v2000
        %v2009 = vmul.f32 %v1968, %v2001
        %v2010 = vmul.f32 %v1970, %v2002
        %v2011 = vpack.c.bf16 %v2004, %v2003
        %v2012 = vpack.c.bf16 %v2006, %v2005
        %v2013 = vpack.c.bf16 %v2008, %v2007
        %v2014 = vpack.c.bf16 %v2010, %v2009
        %2015 = vrot.lane.b32.xlu0 %v578, 72
        %v2016 = vpop.permute.xlu0 %2015
        %2017 = vrot.lane.b32.xlu0 %v579, 72
        %v2018 = vpop.permute.xlu0 %2017
        %2019 = vrot.lane.b32.xlu0 %v580, 72
        %v2020 = vpop.permute.xlu0 %2019
        %2021 = vrot.lane.b32.xlu0 %v581, 72
        %v2022 = vpop.permute.xlu0 %2021
        %v2028 = vsel %vm704, %v2011, 0
        %v2031 = vsel %vm704, %v2012, 0
        %v2034 = vsel %vm704, %v2013, 0
        %v2037 = vsel %vm704, %v2014, 0
        %2039 = vmatprep.subr.bf16.mxu0 0
        %2040 = vmatpush1.bf16.msra.mxu0 0
        %2041 = vmatprep.subr.bf16.mxu0 0
        %2042 = vmatpush1.bf16.msra.mxu0 0
        %2043 = vmatprep.subr.bf16.mxu0 0
        %2044 = vmatpush1.bf16.msra.mxu0 0
        %2045 = vmatprep.subr.bf16.mxu0 0
        %2046 = vmatpush1.bf16.msra.mxu0 0
        %2047 = vmatprep.subr.bf16.mxu0 0
        %2048 = vmatpush1.bf16.msra.mxu0 %v2022
        %2049 = vmatprep.subr.bf16.mxu0 0
        %2050 = vmatpush1.bf16.msra.mxu0 %v2020
        %2051 = vmatprep.subr.bf16.mxu0 0
        %2052 = vmatpush1.bf16.msra.mxu0 %v2018
        %2053 = vmatprep.subr.bf16.mxu0 0
        %2054 = vmatpush1.bf16.msra.mxu0 %v2016
        %2055 = vmatprep.subr.bf16.mxu0 0
        %2056 = vmatpush2.bf16.msra.mxu0 0
        %2057 = vmatprep.subr.bf16.mxu0 0
        %2058 = vmatpush2.bf16.msra.mxu0 0
        %2059 = vmatprep.subr.bf16.mxu0 0
        %2060 = vmatpush2.bf16.msra.mxu0 0
        %2061 = vmatprep.subr.bf16.mxu0 0
        %2062 = vmatpush2.bf16.msra.mxu0 0
        %2063 = vmatprep.subr.bf16.mxu0 0
        %2064 = vmatpush2.bf16.msra.mxu0 0
        %2065 = vmatprep.subr.bf16.mxu0 0
        %2066 = vmatpush2.bf16.msra.mxu0 0
        %2067 = vmatprep.subr.bf16.mxu0 0
        %2068 = vmatpush2.bf16.msra.mxu0 0
        %2069 = vmatprep.subr.bf16.mxu0 0
        %2070 = vmatpush2.bf16.msra.mxu0 0
        %2071 = vmatprep.mubr.bf16.mxu0 0
        %2072 = vmatmul.mubr.bf16.gmra.mxu0 %v2028
        %v2073 = vpop.f32.mrf.mxu0
        %v2074 = vadd.f32 0.0, %v2073
        %v2075 = vpop.f32.mrf.mxu0
        %v2076 = vpop.f32.mrf.mxu0
        %v2077 = vadd.f32 0.0, %v2076
        %v2078 = vpop.f32.mrf.mxu0
        %2079 = vmatprep.mubr.bf16.mxu0 0
        %2080 = vmatmul.mubr.bf16.gmra.mxu0 %v2031
        %v2081 = vpop.f32.mrf.mxu0
        %v2082 = vadd.f32 0.0, %v2081
        %v2083 = vpop.f32.mrf.mxu0
        %v2084 = vpop.f32.mrf.mxu0
        %v2085 = vadd.f32 0.0, %v2084
        %v2086 = vpop.f32.mrf.mxu0
        %2087 = vmatprep.mubr.bf16.mxu0 0
        %2088 = vmatmul.mubr.bf16.gmra.mxu0 %v2034
        %v2089 = vpop.f32.mrf.mxu0
        %v2090 = vadd.f32 0.0, %v2089
        %v2091 = vpop.f32.mrf.mxu0
        %v2092 = vpop.f32.mrf.mxu0
        %v2093 = vadd.f32 0.0, %v2092
        %v2094 = vpop.f32.mrf.mxu0
        %2095 = vmatprep.mubr.bf16.mxu0 0
        %2096 = vmatmul.mubr.bf16.gmra.mxu0 %v2037
        %v2097 = vpop.f32.mrf.mxu0
        %v2098 = vadd.f32 0.0, %v2097
        %v2099 = vpop.f32.mrf.mxu0
        %v2100 = vpop.f32.mrf.mxu0
        %v2101 = vadd.f32 0.0, %v2100
        %v2102 = vpop.f32.mrf.mxu0
        %2103 = vdwg.mxu0
        %v2104 = vpack.c.bf16 %v2077, %v2074
        %v2105 = vpack.c.bf16 %v2085, %v2082
        %v2106 = vpack.c.bf16 %v2093, %v2090
        %v2107 = vpack.c.bf16 %v2101, %v2098
        %v2109 = vsel %vm582, %v2104, 0
        %v2112 = vsel %vm582, %v2105, 0
        %v2115 = vsel %vm582, %v2106, 0
        %v2118 = vsel %vm582, %v2107, 0
        %v2121 = vsel %vm1225, %v541, 0
        %2123 = vmatprep.subr.bf16.mxu0 0
        %2124 = vmatpush1.bf16.msra.mxu0 0
        %2125 = vmatprep.subr.bf16.mxu0 0
        %2126 = vmatpush1.bf16.msra.mxu0 0
        %2127 = vmatprep.subr.bf16.mxu0 0
        %2128 = vmatpush1.bf16.msra.mxu0 0
        %2129 = vmatprep.subr.bf16.mxu0 0
        %2130 = vmatpush1.bf16.msra.mxu0 0
        %2131 = vmatprep.subr.bf16.mxu0 0
        %2132 = vmatpush1.bf16.msra.mxu0 0
        %2133 = vmatprep.subr.bf16.mxu0 0
        %2134 = vmatpush1.bf16.msra.mxu0 0
        %2135 = vmatprep.subr.bf16.mxu0 0
        %2136 = vmatpush1.bf16.msra.mxu0 0
        %2137 = vmatprep.subr.bf16.mxu0 0
        %2138 = vmatpush1.bf16.msra.mxu0 %v2121
        %2139 = vmatprep.subr.bf16.mxu0 0
        %2140 = vmatpush2.bf16.msra.mxu0 0
        %2141 = vmatprep.subr.bf16.mxu0 0
        %2142 = vmatpush2.bf16.msra.mxu0 0
        %2143 = vmatprep.subr.bf16.mxu0 0
        %2144 = vmatpush2.bf16.msra.mxu0 0
        %2145 = vmatprep.subr.bf16.mxu0 0
        %2146 = vmatpush2.bf16.msra.mxu0 0
        %2147 = vmatprep.subr.bf16.mxu0 0
        %2148 = vmatpush2.bf16.msra.mxu0 0
        %2149 = vmatprep.subr.bf16.mxu0 0
        %2150 = vmatpush2.bf16.msra.mxu0 0
        %2151 = vmatprep.subr.bf16.mxu0 0
        %2152 = vmatpush2.bf16.msra.mxu0 0
        %2153 = vmatprep.subr.bf16.mxu0 0
        %2154 = vmatpush2.bf16.msra.mxu0 0
        %2155 = vmatprep.mubr.bf16.mxu0 0
        %2156 = vmatmul.mubr.bf16.gmra.mxu0 %v2109
        %v2157 = vpop.f32.mrf.mxu0
        %v2158 = vadd.f32 0.0, %v2157
        %v2159 = vpop.f32.mrf.mxu0
        %v2160 = vpop.f32.mrf.mxu0
        %v2161 = vadd.f32 0.0, %v2160
        %v2162 = vpop.f32.mrf.mxu0
        %2163 = vmatprep.mubr.bf16.mxu0 0
        %2164 = vmatmul.mubr.bf16.gmra.mxu0 %v2112
        %v2165 = vpop.f32.mrf.mxu0
        %v2166 = vadd.f32 0.0, %v2165
        %v2167 = vpop.f32.mrf.mxu0
        %v2168 = vpop.f32.mrf.mxu0
        %v2169 = vadd.f32 0.0, %v2168
        %v2170 = vpop.f32.mrf.mxu0
        %2171 = vmatprep.mubr.bf16.mxu0 0
        %2172 = vmatmul.mubr.bf16.gmra.mxu0 %v2115
        %v2173 = vpop.f32.mrf.mxu0
        %v2174 = vadd.f32 0.0, %v2173
        %v2175 = vpop.f32.mrf.mxu0
        %v2176 = vpop.f32.mrf.mxu0
        %v2177 = vadd.f32 0.0, %v2176
        %v2178 = vpop.f32.mrf.mxu0
        %2179 = vmatprep.mubr.bf16.mxu0 0
        %2180 = vmatmul.mubr.bf16.gmra.mxu0 %v2118
        %v2181 = vpop.f32.mrf.mxu0
        %v2182 = vadd.f32 0.0, %v2181
        %v2183 = vpop.f32.mrf.mxu0
        %v2184 = vpop.f32.mrf.mxu0
        %v2185 = vadd.f32 0.0, %v2184
        %v2186 = vpop.f32.mrf.mxu0
        %2187 = vdwg.mxu0
        %v2188 = vadd.f32 %v1777, %v2158
        %v2189 = vadd.f32 %v1778, %v2161
        %v2190 = vadd.f32 %v1779, %v2166
        %v2191 = vadd.f32 %v1780, %v2169
        %v2192 = vadd.f32 %v1781, %v2174
        %v2193 = vadd.f32 %v1782, %v2177
        %v2194 = vadd.f32 %v1783, %v2182
        %v2195 = vadd.f32 %v1784, %v2185
        %v2196 = vld [vmem:[%s5] sm:$0x1]
        %v2198 = vlaneseq
        %v2199 = vshrl.u32 %v2198, 7
        %v2200 = vsub.s32 0, %v2199
        %v2201 = vrot.slane %v2196, %v2200
        %v2203 = vadd.f32 %v2188, %v2201
        %v2204 = vadd.f32 %v2189, %v2201
        %v2205 = vadd.f32 %v2190, %v2201
        %v2206 = vadd.f32 %v2191, %v2201
        %v2207 = vadd.f32 %v2192, %v2201
        %v2208 = vadd.f32 %v2193, %v2201
        %v2209 = vadd.f32 %v2194, %v2201
        %v2210 = vadd.f32 %v2195, %v2201
        %v2211 = vld [vmem:[%s518] sm:$0xff]
        %v2212 = vld [vmem:[%s518 + $0x8] sm:$0xff]
        %v2213 = vld [vmem:[%s518 + $0x10] sm:$0xff]
        %v2214 = vld [vmem:[%s518 + $0x18] sm:$0xff]
        %v2215 = vld [vmem:[%s518 + $0x20] sm:$0xff]
        %v2216 = vld [vmem:[%s518 + $0x28] sm:$0xff]
        %v2217 = vld [vmem:[%s518 + $0x30] sm:$0xff]
        %v2218 = vld [vmem:[%s518 + $0x38] sm:$0xff]
        %v2219 = vadd.f32 %v2203, %v2211
        %v2220 = vadd.f32 %v2204, %v2212
        %v2221 = vadd.f32 %v2205, %v2213
        %v2222 = vadd.f32 %v2206, %v2214
        %v2223 = vadd.f32 %v2207, %v2215
        %v2224 = vadd.f32 %v2208, %v2216
        %v2225 = vadd.f32 %v2209, %v2217
        %v2226 = vadd.f32 %v2210, %v2218
        %vm2227 = vcmask 261120
        %v2228 = vsel %vm2227, %v2219, 0.0
        %2229 = vadd.xlane.f32.xlu0 %v2228
        %v2230 = vpop.xlane.xlu0 %2229
        %v2231 = vsel %vm2227, %v2220, 0.0
        %2232 = vadd.xlane.f32.xlu0 %v2231
        %v2233 = vpop.xlane.xlu0 %2232
        %v2234 = vsel %vm2227, %v2221, 0.0
        %2235 = vadd.xlane.f32.xlu0 %v2234
        %v2236 = vpop.xlane.xlu0 %2235
        %v2237 = vsel %vm2227, %v2222, 0.0
        %2238 = vadd.xlane.f32.xlu0 %v2237
        %v2239 = vpop.xlane.xlu0 %2238
        %v2240 = vsel %vm2227, %v2223, 0.0
        %2241 = vadd.xlane.f32.xlu0 %v2240
        %v2242 = vpop.xlane.xlu0 %2241
        %v2243 = vsel %vm2227, %v2224, 0.0
        %2244 = vadd.xlane.f32.xlu0 %v2243
        %v2245 = vpop.xlane.xlu0 %2244
        %v2246 = vsel %vm2227, %v2225, 0.0
        %2247 = vadd.xlane.f32.xlu0 %v2246
        %v2248 = vpop.xlane.xlu0 %2247
        %v2249 = vsel %vm2227, %v2226, 0.0
        %2250 = vadd.xlane.f32.xlu0 %v2249
        %v2251 = vpop.xlane.xlu0 %2250
        %v2252 = vrcp.pop 32.0
        %v2253 = vmul.f32 %v2230, %v2252
        %v2254 = vmul.f32 %v2233, %v2252
        %v2255 = vmul.f32 %v2236, %v2252
        %v2256 = vmul.f32 %v2239, %v2252
        %v2257 = vmul.f32 %v2242, %v2252
        %v2258 = vmul.f32 %v2245, %v2252
        %v2259 = vmul.f32 %v2248, %v2252
        %v2260 = vmul.f32 %v2251, %v2252
        %v2261 = vsub.f32 %v2219, %v2253
        %v2262 = vsub.f32 %v2220, %v2254
        %v2263 = vsub.f32 %v2221, %v2255
        %v2264 = vsub.f32 %v2222, %v2256
        %v2265 = vsub.f32 %v2223, %v2257
        %v2266 = vsub.f32 %v2224, %v2258
        %v2267 = vsub.f32 %v2225, %v2259
        %v2268 = vsub.f32 %v2226, %v2260
        %v2269 = vmul.f32 %v2261, %v2261
        %v2270 = vmul.f32 %v2262, %v2262
        %v2271 = vmul.f32 %v2263, %v2263
        %v2272 = vmul.f32 %v2264, %v2264
        %v2273 = vmul.f32 %v2265, %v2265
        %v2274 = vmul.f32 %v2266, %v2266
        %v2275 = vmul.f32 %v2267, %v2267
        %v2276 = vmul.f32 %v2268, %v2268
        %v2277 = vsel %vm2227, %v2269, 0.0
        %2278 = vadd.xlane.f32.xlu0 %v2277
        %v2279 = vpop.xlane.xlu0 %2278
        %v2280 = vsel %vm2227, %v2270, 0.0
        %2281 = vadd.xlane.f32.xlu0 %v2280
        %v2282 = vpop.xlane.xlu0 %2281
        %v2283 = vsel %vm2227, %v2271, 0.0
        %2284 = vadd.xlane.f32.xlu0 %v2283
        %v2285 = vpop.xlane.xlu0 %2284
        %v2286 = vsel %vm2227, %v2272, 0.0
        %2287 = vadd.xlane.f32.xlu0 %v2286
        %v2288 = vpop.xlane.xlu0 %2287
        %v2289 = vsel %vm2227, %v2273, 0.0
        %2290 = vadd.xlane.f32.xlu0 %v2289
        %v2291 = vpop.xlane.xlu0 %2290
        %v2292 = vsel %vm2227, %v2274, 0.0
        %2293 = vadd.xlane.f32.xlu0 %v2292
        %v2294 = vpop.xlane.xlu0 %2293
        %v2295 = vsel %vm2227, %v2275, 0.0
        %2296 = vadd.xlane.f32.xlu0 %v2295
        %v2297 = vpop.xlane.xlu0 %2296
        %v2298 = vsel %vm2227, %v2276, 0.0
        %2299 = vadd.xlane.f32.xlu0 %v2298
        %v2300 = vpop.xlane.xlu0 %2299
        %v2301 = vmul.f32 %v2279, %v2252
        %v2302 = vmul.f32 %v2282, %v2252
        %v2303 = vmul.f32 %v2285, %v2252
        %v2304 = vmul.f32 %v2288, %v2252
        %v2305 = vmul.f32 %v2291, %v2252
        %v2306 = vmul.f32 %v2294, %v2252
        %v2307 = vmul.f32 %v2297, %v2252
        %v2308 = vmul.f32 %v2300, %v2252
        %v2309 = vadd.f32 %v2301, 1e-05
        %v2310 = vadd.f32 %v2302, 1e-05
        %v2311 = vadd.f32 %v2303, 1e-05
        %v2312 = vadd.f32 %v2304, 1e-05
        %v2313 = vadd.f32 %v2305, 1e-05
        %v2314 = vadd.f32 %v2306, 1e-05
        %v2315 = vadd.f32 %v2307, 1e-05
        %v2316 = vadd.f32 %v2308, 1e-05
        %v2317 = vrsqrt.pop %v2309
        %v2318 = vrsqrt.pop %v2310
        %v2319 = vrsqrt.pop %v2311
        %v2320 = vrsqrt.pop %v2312
        %v2321 = vrsqrt.pop %v2313
        %v2322 = vrsqrt.pop %v2314
        %v2323 = vrsqrt.pop %v2315
        %v2324 = vrsqrt.pop %v2316
        %v2325 = vmul.f32 %v2261, %v2317
        %v2326 = vmul.f32 %v2262, %v2318
        %v2327 = vmul.f32 %v2263, %v2319
        %v2328 = vmul.f32 %v2264, %v2320
        %v2329 = vmul.f32 %v2265, %v2321
        %v2330 = vmul.f32 %v2266, %v2322
        %v2331 = vmul.f32 %v2267, %v2323
        %v2332 = vmul.f32 %v2268, %v2324
        %v2333 = vld [vmem:[%s6] sm:$0x1]
        %v2335 = vlaneseq
        %v2336 = vshrl.u32 %v2335, 7
        %v2337 = vsub.s32 0, %v2336
        %v2338 = vrot.slane %v2333, %v2337
        %v2340 = vmul.f32 %v2325, %v2338
        %v2341 = vmul.f32 %v2326, %v2338
        %v2342 = vmul.f32 %v2327, %v2338
        %v2343 = vmul.f32 %v2328, %v2338
        %v2344 = vmul.f32 %v2329, %v2338
        %v2345 = vmul.f32 %v2330, %v2338
        %v2346 = vmul.f32 %v2331, %v2338
        %v2347 = vmul.f32 %v2332, %v2338
        %v2348 = vld [vmem:[%s7] sm:$0x1]
        %v2350 = vlaneseq
        %v2351 = vshrl.u32 %v2350, 7
        %v2352 = vsub.s32 0, %v2351
        %v2353 = vrot.slane %v2348, %v2352
        %v2355 = vadd.f32 %v2340, %v2353
        %v2356 = vadd.f32 %v2341, %v2353
        %v2357 = vadd.f32 %v2342, %v2353
        %v2358 = vadd.f32 %v2343, %v2353
        %v2359 = vadd.f32 %v2344, %v2353
        %v2360 = vadd.f32 %v2345, %v2353
        %v2361 = vadd.f32 %v2346, %v2353
        %v2362 = vadd.f32 %v2347, %v2353
        %v2363 = vpack.c.bf16 %v2356, %v2355
        %v2364 = vpack.c.bf16 %v2358, %v2357
        %v2365 = vpack.c.bf16 %v2360, %v2359
        %v2366 = vpack.c.bf16 %v2362, %v2361
        %v2367 = vld [vmem:[%s8] sm:$0xf]
        %v2368 = vld [vmem:[%s8 + $0x4] sm:$0xf]
        %v2369 = vld [vmem:[%s8 + $0x8] sm:$0xf]
        %v2370 = vld [vmem:[%s8 + $0xc] sm:$0xf]
        %v2371 = vld [vmem:[%s9] sm:$0x1]
        %v2373 = vlaneseq
        %v2374 = vshrl.u32 %v2373, 7
        %v2375 = vsub.s32 0, %v2374
        %v2376 = vrot.slane %v2371, %v2375
        %v2382 = vunpack.c.l.b16 %v2367
        %v2383 = vunpack.c.l.b16 %v2368
        %v2384 = vunpack.c.l.b16 %v2369
        %v2385 = vunpack.c.l.b16 %v2370
        %v2386 = vpack.c.b16 %v2383, %v2382
        %v2387 = vpack.c.b16 %v2385, %v2384
        %v2391 = vsel %vm2227, %v2363, 0
        %v2394 = vsel %vm2227, %v2364, 0
        %v2397 = vsel %vm2227, %v2365, 0
        %v2400 = vsel %vm2227, %v2366, 0
        %2402 = vmatprep.subr.bf16.mxu0 0
        %2403 = vmatpush1.bf16.msra.mxu0 0
        %2404 = vmatprep.subr.bf16.mxu0 0
        %2405 = vmatpush1.bf16.msra.mxu0 0
        %2406 = vmatprep.subr.bf16.mxu0 0
        %2407 = vmatpush1.bf16.msra.mxu0 0
        %2408 = vmatprep.subr.bf16.mxu0 0
        %2409 = vmatpush1.bf16.msra.mxu0 0
        %2410 = vmatprep.subr.bf16.mxu0 0
        %2411 = vmatpush1.bf16.msra.mxu0 0
        %2412 = vmatprep.subr.bf16.mxu0 0
        %2413 = vmatpush1.bf16.msra.mxu0 0
        %2414 = vmatprep.subr.bf16.mxu0 0
        %2415 = vmatpush1.bf16.msra.mxu0 %v2387
        %2416 = vmatprep.subr.bf16.mxu0 0
        %2417 = vmatpush1.bf16.msra.mxu0 %v2386
        %2418 = vmatprep.subr.bf16.mxu0 0
        %2419 = vmatpush2.bf16.msra.mxu0 0
        %2420 = vmatprep.subr.bf16.mxu0 0
        %2421 = vmatpush2.bf16.msra.mxu0 0
        %2422 = vmatprep.subr.bf16.mxu0 0
        %2423 = vmatpush2.bf16.msra.mxu0 0
        %2424 = vmatprep.subr.bf16.mxu0 0
        %2425 = vmatpush2.bf16.msra.mxu0 0
        %2426 = vmatprep.subr.bf16.mxu0 0
        %2427 = vmatpush2.bf16.msra.mxu0 0
        %2428 = vmatprep.subr.bf16.mxu0 0
        %2429 = vmatpush2.bf16.msra.mxu0 0
        %2430 = vmatprep.subr.bf16.mxu0 0
        %2431 = vmatpush2.bf16.msra.mxu0 0
        %2432 = vmatprep.subr.bf16.mxu0 0
        %2433 = vmatpush2.bf16.msra.mxu0 0
        %2434 = vmatprep.mubr.bf16.mxu0 0
        %2435 = vmatmul.mubr.bf16.gmra.mxu0 %v2391
        %v2436 = vpop.f32.mrf.mxu0
        %v2437 = vadd.f32 %v2376, %v2436
        %v2438 = vpop.f32.mrf.mxu0
        %v2439 = vpop.f32.mrf.mxu0
        %v2440 = vadd.f32 %v2376, %v2439
        %v2441 = vpop.f32.mrf.mxu0
        %2442 = vmatprep.mubr.bf16.mxu0 0
        %2443 = vmatmul.mubr.bf16.gmra.mxu0 %v2394
        %v2444 = vpop.f32.mrf.mxu0
        %v2445 = vadd.f32 %v2376, %v2444
        %v2446 = vpop.f32.mrf.mxu0
        %v2447 = vpop.f32.mrf.mxu0
        %v2448 = vadd.f32 %v2376, %v2447
        %v2449 = vpop.f32.mrf.mxu0
        %2450 = vmatprep.mubr.bf16.mxu0 0
        %2451 = vmatmul.mubr.bf16.gmra.mxu0 %v2397
        %v2452 = vpop.f32.mrf.mxu0
        %v2453 = vadd.f32 %v2376, %v2452
        %v2454 = vpop.f32.mrf.mxu0
        %v2455 = vpop.f32.mrf.mxu0
        %v2456 = vadd.f32 %v2376, %v2455
        %v2457 = vpop.f32.mrf.mxu0
        %2458 = vmatprep.mubr.bf16.mxu0 0
        %2459 = vmatmul.mubr.bf16.gmra.mxu0 %v2400
        %v2460 = vpop.f32.mrf.mxu0
        %v2461 = vadd.f32 %v2376, %v2460
        %v2462 = vpop.f32.mrf.mxu0
        %v2463 = vpop.f32.mrf.mxu0
        %v2464 = vadd.f32 %v2376, %v2463
        %v2465 = vpop.f32.mrf.mxu0
        %2466 = vdwg.mxu0
        %v2467 = vmul.f32 %v2437, 0.5
        %v2468 = vmul.f32 %v2440, 0.5
        %v2469 = vmul.f32 %v2445, 0.5
        %v2470 = vmul.f32 %v2448, 0.5
        %v2471 = vmul.f32 %v2453, 0.5
        %v2472 = vmul.f32 %v2456, 0.5
        %v2473 = vmul.f32 %v2461, 0.5
        %v2474 = vmul.f32 %v2464, 0.5
        %v2475 = vmul.f32 %v2437, 0.70710677
        %v2476 = vmul.f32 %v2440, 0.70710677
        %v2477 = vmul.f32 %v2445, 0.70710677
        %v2478 = vmul.f32 %v2448, 0.70710677
        %v2479 = vmul.f32 %v2453, 0.70710677
        %v2480 = vmul.f32 %v2456, 0.70710677
        %v2481 = vmul.f32 %v2461, 0.70710677
        %v2482 = vmul.f32 %v2464, 0.70710677
        %v2483 = verf.f32.pop %v2475
        %v2484 = verf.f32.pop %v2476
        %v2485 = verf.f32.pop %v2477
        %v2486 = verf.f32.pop %v2478
        %v2487 = verf.f32.pop %v2479
        %v2488 = verf.f32.pop %v2480
        %v2489 = verf.f32.pop %v2481
        %v2490 = verf.f32.pop %v2482
        %v2491 = vadd.f32 %v2483, 1.0
        %v2492 = vadd.f32 %v2484, 1.0
        %v2493 = vadd.f32 %v2485, 1.0
        %v2494 = vadd.f32 %v2486, 1.0
        %v2495 = vadd.f32 %v2487, 1.0
        %v2496 = vadd.f32 %v2488, 1.0
        %v2497 = vadd.f32 %v2489, 1.0
        %v2498 = vadd.f32 %v2490, 1.0
        %v2499 = vmul.f32 %v2467, %v2491
        %v2500 = vmul.f32 %v2468, %v2492
        %v2501 = vmul.f32 %v2469, %v2493
        %v2502 = vmul.f32 %v2470, %v2494
        %v2503 = vmul.f32 %v2471, %v2495
        %v2504 = vmul.f32 %v2472, %v2496
        %v2505 = vmul.f32 %v2473, %v2497
        %v2506 = vmul.f32 %v2474, %v2498
        %v2507 = vpack.c.bf16 %v2500, %v2499
        %v2508 = vpack.c.bf16 %v2502, %v2501
        %v2509 = vpack.c.bf16 %v2504, %v2503
        %v2510 = vpack.c.bf16 %v2506, %v2505
        %v2511 = vld [vmem:[%s10] sm:$0xf]
        %v2512 = vld [vmem:[%s10 + $0x4] sm:$0xf]
        %v2513 = vld [vmem:[%s10 + $0x8] sm:$0xf]
        %v2514 = vld [vmem:[%s10 + $0xc] sm:$0xf]
        %v2515 = vld [vmem:[%s10 + $0x10] sm:$0xf]
        %v2516 = vld [vmem:[%s10 + $0x14] sm:$0xf]
        %v2517 = vld [vmem:[%s10 + $0x18] sm:$0xf]
        %v2518 = vld [vmem:[%s10 + $0x1c] sm:$0xf]
        %v2519 = vld [vmem:[%s10 + $0x20] sm:$0xf]
        %v2520 = vld [vmem:[%s10 + $0x24] sm:$0xf]
        %v2521 = vld [vmem:[%s10 + $0x28] sm:$0xf]
        %v2522 = vld [vmem:[%s10 + $0x2c] sm:$0xf]
        %v2523 = vld [vmem:[%s10 + $0x30] sm:$0xf]
        %v2524 = vld [vmem:[%s10 + $0x34] sm:$0xf]
        %v2525 = vld [vmem:[%s10 + $0x38] sm:$0xf]
        %v2526 = vld [vmem:[%s10 + $0x3c] sm:$0xf]
        %v2527 = vld [vmem:[%s11] sm:$0x1]
        %v2529 = vlaneseq
        %v2530 = vshrl.u32 %v2529, 7
        %v2531 = vsub.s32 0, %v2530
        %v2532 = vrot.slane %v2527, %v2531
        %v2550 = vunpack.c.l.b16 %v2511
        %v2551 = vunpack.c.l.b16 %v2512
        %v2552 = vunpack.c.l.b16 %v2513
        %v2553 = vunpack.c.l.b16 %v2514
        %v2554 = vunpack.c.l.b16 %v2515
        %v2555 = vunpack.c.l.b16 %v2516
        %v2556 = vunpack.c.l.b16 %v2517
        %v2557 = vunpack.c.l.b16 %v2518
        %v2558 = vunpack.c.l.b16 %v2519
        %v2559 = vunpack.c.l.b16 %v2520
        %v2560 = vunpack.c.l.b16 %v2521
        %v2561 = vunpack.c.l.b16 %v2522
        %v2562 = vunpack.c.l.b16 %v2523
        %v2563 = vunpack.c.l.b16 %v2524
        %v2564 = vunpack.c.l.b16 %v2525
        %v2565 = vunpack.c.l.b16 %v2526
        %v2566 = vpack.c.b16 %v2551, %v2550
        %v2567 = vpack.c.b16 %v2553, %v2552
        %v2568 = vpack.c.b16 %v2555, %v2554
        %v2569 = vpack.c.b16 %v2557, %v2556
        %v2570 = vpack.c.b16 %v2559, %v2558
        %v2571 = vpack.c.b16 %v2561, %v2560
        %v2572 = vpack.c.b16 %v2563, %v2562
        %v2573 = vpack.c.b16 %v2565, %v2564
        %2582 = vmatprep.subr.bf16.mxu0 0
        %2583 = vmatpush1.bf16.msra.mxu0 %v2573
        %2584 = vmatprep.subr.bf16.mxu0 0
        %2585 = vmatpush1.bf16.msra.mxu0 %v2572
        %2586 = vmatprep.subr.bf16.mxu0 0
        %2587 = vmatpush1.bf16.msra.mxu0 %v2571
        %2588 = vmatprep.subr.bf16.mxu0 0
        %2589 = vmatpush1.bf16.msra.mxu0 %v2570
        %2590 = vmatprep.subr.bf16.mxu0 0
        %2591 = vmatpush1.bf16.msra.mxu0 %v2569
        %2592 = vmatprep.subr.bf16.mxu0 0
        %2593 = vmatpush1.bf16.msra.mxu0 %v2568
        %2594 = vmatprep.subr.bf16.mxu0 0
        %2595 = vmatpush1.bf16.msra.mxu0 %v2567
        %2596 = vmatprep.subr.bf16.mxu0 0
        %2597 = vmatpush1.bf16.msra.mxu0 %v2566
        %2598 = vmatprep.subr.bf16.mxu0 0
        %2599 = vmatpush2.bf16.msra.mxu0 0
        %2600 = vmatprep.subr.bf16.mxu0 0
        %2601 = vmatpush2.bf16.msra.mxu0 0
        %2602 = vmatprep.subr.bf16.mxu0 0
        %2603 = vmatpush2.bf16.msra.mxu0 0
        %2604 = vmatprep.subr.bf16.mxu0 0
        %2605 = vmatpush2.bf16.msra.mxu0 0
        %2606 = vmatprep.subr.bf16.mxu0 0
        %2607 = vmatpush2.bf16.msra.mxu0 0
        %2608 = vmatprep.subr.bf16.mxu0 0
        %2609 = vmatpush2.bf16.msra.mxu0 0
        %2610 = vmatprep.subr.bf16.mxu0 0
        %2611 = vmatpush2.bf16.msra.mxu0 0
        %2612 = vmatprep.subr.bf16.mxu0 0
        %2613 = vmatpush2.bf16.msra.mxu0 0
        %2614 = vmatprep.mubr.bf16.mxu0 0
        %2615 = vmatmul.mubr.bf16.gmra.mxu0 %v2507
        %v2616 = vpop.f32.mrf.mxu0
        %v2617 = vadd.f32 %v2532, %v2616
        %v2618 = vpop.f32.mrf.mxu0
        %v2619 = vpop.f32.mrf.mxu0
        %v2620 = vadd.f32 %v2532, %v2619
        %v2621 = vpop.f32.mrf.mxu0
        %2622 = vmatprep.mubr.bf16.mxu0 0
        %2623 = vmatmul.mubr.bf16.gmra.mxu0 %v2508
        %v2624 = vpop.f32.mrf.mxu0
        %v2625 = vadd.f32 %v2532, %v2624
        %v2626 = vpop.f32.mrf.mxu0
        %v2627 = vpop.f32.mrf.mxu0
        %v2628 = vadd.f32 %v2532, %v2627
        %v2629 = vpop.f32.mrf.mxu0
        %2630 = vmatprep.mubr.bf16.mxu0 0
        %2631 = vmatmul.mubr.bf16.gmra.mxu0 %v2509
        %v2632 = vpop.f32.mrf.mxu0
        %v2633 = vadd.f32 %v2532, %v2632
        %v2634 = vpop.f32.mrf.mxu0
        %v2635 = vpop.f32.mrf.mxu0
        %v2636 = vadd.f32 %v2532, %v2635
        %v2637 = vpop.f32.mrf.mxu0
        %2638 = vmatprep.mubr.bf16.mxu0 0
        %2639 = vmatmul.mubr.bf16.gmra.mxu0 %v2510
        %v2640 = vpop.f32.mrf.mxu0
        %v2641 = vadd.f32 %v2532, %v2640
        %v2642 = vpop.f32.mrf.mxu0
        %v2643 = vpop.f32.mrf.mxu0
        %v2644 = vadd.f32 %v2532, %v2643
        %v2645 = vpop.f32.mrf.mxu0
        %2646 = vdwg.mxu0
        %v2647 = vadd.f32 %v2219, %v2617
        %v2648 = vadd.f32 %v2220, %v2620
        %v2649 = vadd.f32 %v2221, %v2625
        %v2650 = vadd.f32 %v2222, %v2628
        %v2651 = vadd.f32 %v2223, %v2633
        %v2652 = vadd.f32 %v2224, %v2636
        %v2653 = vadd.f32 %v2225, %v2641
        %v2654 = vadd.f32 %v2226, %v2644
        %2655 = vst.msk [vmem:[%s488] sm:$0xff] %vm2227, %v2647
        %2656 = vst.msk [vmem:[%s488 + $0x8] sm:$0xff] %vm2227, %v2648
        %2657 = vst.msk [vmem:[%s488 + $0x10] sm:$0xff] %vm2227, %v2649
        %2658 = vst.msk [vmem:[%s488 + $0x18] sm:$0xff] %vm2227, %v2650
        %2659 = vst.msk [vmem:[%s488 + $0x20] sm:$0xff] %vm2227, %v2651
        %2660 = vst.msk [vmem:[%s488 + $0x28] sm:$0xff] %vm2227, %v2652
        %2661 = vst.msk [vmem:[%s488 + $0x30] sm:$0xff] %vm2227, %v2653
        %2662 = vst.msk [vmem:[%s488 + $0x38] sm:$0xff] %vm2227, %v2654
        %s2663 = sand.u32 %s324, 1
        %s2664 = scalar_lea.sflag [#allocation3], %s2663
        %s2665 = sand.u32 %s324, 1
        %s2666 = smul.addr %s2665, 64
        %s2667 = scalar_lea.vmem [#allocation2], %s2666
        // Predicated region
        $region69: #{nat_block_2d.3} parent=67 // pred_check
          %p2668 = pneg %p334
        $region70: #{nat_block_2d.3} parent=67 // pred_check_branch
          %2670 = sbr.rel (%p2668) target = $region72
        $region71: #{nat_block_2d.3} parent=67 // pred_region
          %s2671 = smul.u32 8, %s30
          %s2673 = ssub.s32 1024, 1024
          %2674 = vsyncadd %s2664, %s2673
          %s2675 = smul.addr %s31, 8
          %s2676 = sadd.s32 %s2671, %s2675
          %s2677 = smul.addr %s2676, 128
          %s2678 = scalar_lea.hbm %s12, %s2677
          %s2679 = sshll.u32 %s2667, 4
          %s2680 = int_to_ptr.vmem [resolvable:$true] %s2679
          %2685 = dma.vmem_to_hbm [thread:$0]  %s2680, 1024, %s2678, %s2664, 128, 128, 8
        $region72: #{nat_block_2d.3} parent=67 // pred_fallthru
          _
      $region68: #{nat_block_2d.3} parent=5 // pred_fallthru
        _
      %p2686 = scmp.le.s32.totalorder 2, %s21
      // Predicated region
      $region73: #{nat_block_2d.3} parent=5 // pred_check
        %p2687 = pneg %p2686
      $region74: #{nat_block_2d.3} parent=5 // pred_check_branch
        %2689 = sbr.rel (%p2687) target = $region76
      $region75: #{nat_block_2d.3} parent=5 // pred_region
        %s2690 = ssub.s32 %s21, 2
        // Predicated region
        $region77: #{nat_block_2d.3} parent=75 // pred_check
          %p2691 = pneg %p340
        $region78: #{nat_block_2d.3} parent=75 // pred_check_branch
          %2693 = sbr.rel (%p2691) target = $region80
        $region79: #{nat_block_2d.3} parent=75 // pred_region
          %s2694 = sand.u32 %s325, 1
          %s2695 = scalar_lea.sflag [#allocation3], %s2694
          %s2696 = sand.u32 %s325, 1
          %s2697 = smul.addr %s2696, 64
          %s2698 = scalar_lea.vmem [#allocation2], %s2697
          %2699 = dma.done %s2695, 1024
        $region80: #{nat_block_2d.3} parent=75 // pred_fallthru
          _
      $region76: #{nat_block_2d.3} parent=5 // pred_fallthru
        _
    $region6: #{nat_block_2d.3} parent=1 // loop_footer
      %s25 = sadd.s32 1, %s21
    $region7: #{nat_block_2d.3} parent=1 // loop_footer_branch
      %20 = sbr.rel target = $region3
    $region8: #{nat_block_2d.3} parent=1 // loop_exit
      _
    %2700 = vsyncpa [#allocation3], 1
    %s2701 = scalar_lea.sflag [#allocation3], 1
    %2702 = vsyncpa %s2701, 1

</llo_original>
